<compile_context>
chip_gen: v7x
topology: tpu7x:2x2x1
jax: 0.10.0
libtpu: 0.0.40
codegen_flags: <defaults>
</compile_context>

<pallas_src>
import functools

import jax
import jax.numpy as jnp
from jax.experimental import pallas as pl
from jax.experimental.pallas import tpu as pltpu


# ----------------------------------------------------------------------------
# Pallas kernel: the whole NeRF MLP hot path (13 lane-packed matmuls).
# All refs below are already in the lane-packed layout described above.
# ----------------------------------------------------------------------------
def _nerf_kernel(
    x_ref, d_ref,
    # xyz_mlp1 (4x Linear+ReLU)
    w10, b10, w11, b11, w12, b12, w13, b13,
    # xyz_mlp2 (layer0 split for the cat([h, x]) skip, then 3 more Linears)
    w20a, w20b, b20, w21, b21, w22, b22, w23, b23,
    # feature_encode
    wfe, bfe,
    # out_rgb layer0 (split for cat([fe, d]))
    r0a, r0b, r0bias,
    # fused final head: per point group the 4 output lanes are [r, g, b, sigma].
    # wout_r carries rgb1w (sigma column zero), wout_f carries sigw (rgb cols zero).
    wout_r, wout_f, bout,
    out_ref,
):
    adt = b10.dtype                      # elementwise/activation dtype (f32 or bf16)
    cdt = w10.dtype                      # MXU operand dtype
    mm = functools.partial(jnp.dot, preferred_element_type=adt)
    relu = lambda v: jnp.maximum(v, 0)
    c = lambda v: v.astype(cdt)

    x = c(x_ref[...])
    d = c(d_ref[...])

    # xyz_mlp1
    h = relu(mm(x, w10[...]) + b10[...])
    h = relu(mm(c(h), w11[...]) + b11[...])
    h = relu(mm(c(h), w12[...]) + b12[...])
    h = relu(mm(c(h), w13[...]) + b13[...])

    # xyz_mlp2 : cat([h, x]) @ W20 == h @ W20a + x @ W20b (same MXU K-pass count)
    f = relu(mm(c(h), w20a[...]) + mm(x, w20b[...]) + b20[...])
    f = relu(mm(c(f), w21[...]) + b21[...])
    f = relu(mm(c(f), w22[...]) + b22[...])
    f = mm(c(f), w23[...]) + b23[...]            # last mlp2 layer: no ReLU

    # feature_encode (no activation), lane-aligned G*hidden-wide output
    fe = mm(c(f), wfe[...]) + bfe[...]

    # rgb head layer0 : cat([fe, d]) @ R0 == fe @ R0a + d @ R0b
    r = relu(mm(c(fe), r0a[...]) + mm(d, r0b[...]) + r0bias[...])

    # fused final head: rgb1 and sigma land in the same (.., 4G) packed block.
    pre = mm(c(r), wout_r[...]) + mm(c(f), wout_f[...]) + bout[...]
    pre = pre.astype(jnp.float32)                # tiny block; keep nonlinearity in f32
    lane = jax.lax.broadcasted_iota(jnp.int32, pre.shape, 1)
    is_sigma = (lane % 4) == 3                   # lane 4g+3 is sigma, 4g..4g+2 are rgb
    out = jnp.where(is_sigma, jnp.maximum(pre, 0.0), jax.nn.sigmoid(pre))
    out_ref[...] = out.astype(out_ref.dtype)


# ----------------------------------------------------------------------------
# Parameter construction (PyTorch nn.Linear shapes, stored transposed (in, out))
# ----------------------------------------------------------------------------
def init_params(key, pos_xyz, pos_dir, hidden):
    def linear(k, fan_in, fan_out):
        k1, k2 = jax.random.split(k)
        bound = 1.0 / jnp.sqrt(fan_in)
        w = jax.random.uniform(k1, (fan_in, fan_out), jnp.float32, -bound, bound)
        b = jax.random.uniform(k2, (1, fan_out), jnp.float32, -bound, bound)
        return w, b

    keys = jax.random.split(key, 12)
    p = {}
    p["w10"], p["b10"] = linear(keys[0], pos_xyz, hidden)
    p["w11"], p["b11"] = linear(keys[1], hidden, hidden)
    p["w12"], p["b12"] = linear(keys[2], hidden, hidden)
    p["w13"], p["b13"] = linear(keys[3], hidden, hidden)
    p["w20"], p["b20"] = linear(keys[4], hidden + pos_xyz, hidden)
    p["w21"], p["b21"] = linear(keys[5], hidden, hidden)
    p["w22"], p["b22"] = linear(keys[6], hidden, hidden)
    p["w23"], p["b23"] = linear(keys[7], hidden, hidden)
    p["sigw"], p["sigb"] = linear(keys[8], hidden, 1)
    p["few"], p["feb"] = linear(keys[9], hidden, hidden)
    p["rgb0w"], p["rgb0bias"] = linear(keys[10], hidden + pos_dir, hidden // 2)
    p["rgb1w"], p["rgb1b"] = linear(keys[11], hidden // 2, 3)
    return p


# ----------------------------------------------------------------------------
# Lane-packing of weights (block-diagonal replication) and biases (lane tiling)
# ----------------------------------------------------------------------------
def _block_diag(w, groups):
    """Replicate a (Din, Dout) weight into a block-diagonal (G*Din, G*Dout)."""
    return jnp.kron(jnp.eye(groups, dtype=w.dtype), w)


def _pack_weights(p, groups, compute_dtype, act_dtype):
    hidden = p["w11"].shape[0]
    wc = lambda a: _block_diag(a, groups).astype(compute_dtype)
    bc = lambda a: jnp.tile(a, (1, groups)).astype(act_dtype)

    w20a, w20b = p["w20"][:hidden], p["w20"][hidden:]          # [h | x] split
    r0a, r0b = p["rgb0w"][:hidden], p["rgb0w"][hidden:]        # [fe | d] split
    # Fused final head: per point group the 4 output lanes are [r, g, b, sigma].
    rgb1_pad = jnp.pad(p["rgb1w"], ((0, 0), (0, 1)))           # (hidden//2, 4), col 3 = 0
    sig_pad = jnp.pad(p["sigw"], ((0, 0), (3, 0)))             # (hidden, 4), cols 0..2 = 0
    bout = jnp.concatenate([p["rgb1b"], p["sigb"]], axis=1)    # (1, 4)

    return [
        wc(p["w10"]), bc(p["b10"]),
        wc(p["w11"]), bc(p["b11"]),
        wc(p["w12"]), bc(p["b12"]),
        wc(p["w13"]), bc(p["b13"]),
        wc(w20a), wc(w20b), bc(p["b20"]),
        wc(p["w21"]), bc(p["b21"]),
        wc(p["w22"]), bc(p["b22"]),
        wc(p["w23"]), bc(p["b23"]),
        wc(p["few"]), bc(p["feb"]),
        wc(r0a), wc(r0b), bc(p["rgb0bias"]),
        wc(rgb1_pad), wc(sig_pad), bc(bout),
    ]


def _default_elementwise_dtype(compute_dtype):
    """bf16 bias/ReLU chain only where VPU/EUP natively support bf16 (v6e/v7x)."""
    if jnp.dtype(compute_dtype) != jnp.dtype(jnp.bfloat16):
        return jnp.float32
    try:
        kind = jax.devices()[0].device_kind.lower()
    except Exception:
        kind = ""
    if ("v6" in kind) or ("v7" in kind):
        return jnp.bfloat16
    return jnp.float32          # v5e and older: keep the elementwise path in f32


# ----------------------------------------------------------------------------
# Wrapper: lane-pack, tile over packed point rows, weights resident in VMEM.
# ----------------------------------------------------------------------------
def nerf_forward(encode_xyz, encode_dir, params, *, tile_n=1024,
                 compute_dtype=jnp.bfloat16, elementwise_dtype=None,
                 out_dtype=jnp.float32):
    if elementwise_dtype is None:
        elementwise_dtype = _default_elementwise_dtype(compute_dtype)

    n, dxyz = encode_xyz.shape
    n2, ddir = encode_dir.shape
    assert n == n2
    hidden = params["w11"].shape[0]
    g = max(1, 128 // hidden)                    # points packed per lane-row

    # tile_n points per grid step -> tile_n // g packed rows (multiple of 8).
    step = 8 * g
    tile_n = max(step, (tile_n // step) * step)
    tile_n = min(tile_n, ((n + step - 1) // step) * step)
    n_pad = ((n + tile_n - 1) // tile_n) * tile_n
    if n_pad != n:
        encode_xyz = jnp.pad(encode_xyz, ((0, n_pad - n), (0, 0)))   # zero pad: no NaNs
        encode_dir = jnp.pad(encode_dir, ((0, n_pad - n), (0, 0)))

    # Lane-pack g consecutive points per row: free row-major reshape.  Inputs stay
    # in their native dtype (single HBM read; MXU-operand cast happens in-kernel).
    xp = encode_xyz.reshape(n_pad // g, g * dxyz)
    dp = encode_dir.reshape(n_pad // g, g * ddir)
    weights = _pack_weights(params, g, compute_dtype, elementwise_dtype)

    m = n_pad // g
    tm = tile_n // g
    grid = (m // tm,)

    def row_spec(width):
        return pl.BlockSpec((tm, width), lambda i: (i, 0))

    def resident(a):
        # Constant block index -> Pallas keeps the small packed weights resident
        # in VMEM instead of re-DMA-ing them every grid step.
        return pl.BlockSpec(a.shape, lambda i: (0, 0))

    in_specs = [row_spec(g * dxyz), row_spec(g * ddir)] + [resident(a) for a in weights]
    out_specs = pl.BlockSpec((tm, 4 * g), lambda i: (i, 0))

    flops = 2 * m * sum(int(a.shape[0]) * int(a.shape[1])
                        for a in weights if a.shape[0] > 1)
    bytes_accessed = int(
        xp.size * xp.dtype.itemsize + dp.size * dp.dtype.itemsize
        + sum(int(a.size) * a.dtype.itemsize for a in weights)
        + m * 4 * g * jnp.dtype(out_dtype).itemsize)

    out = pl.pallas_call(
        _nerf_kernel,
        out_shape=jax.ShapeDtypeStruct((m, 4 * g), out_dtype),
        grid_spec=pltpu.PrefetchScalarGridSpec(
            num_scalar_prefetch=0,
            grid=grid,
            in_specs=in_specs,
            out_specs=out_specs,
        ),
        compiler_params=pltpu.CompilerParams(
            dimension_semantics=("parallel",),       # megacore sharding on v7x
            vmem_limit_bytes=32 * 1024 * 1024,       # explicit; fits every generation
        ),
        cost_estimate=pl.CostEstimate(
            flops=flops, transcendentals=3 * n_pad, bytes_accessed=bytes_accessed),
    )(xp, dp, *weights)

    out = out.reshape(n_pad, 4)[:n]                  # free reshape + trim pad rows
    return out[:, :3], out[:, 3:4]


# ----------------------------------------------------------------------------
# Pure-JAX reference (mirrors the PyTorch forward exactly, f32 everywhere)
# ----------------------------------------------------------------------------
def nerf_reference(x, d, p):
    relu = lambda v: jnp.maximum(v, 0.0)
    h = relu(x @ p["w10"] + p["b10"])
    h = relu(h @ p["w11"] + p["b11"])
    h = relu(h @ p["w12"] + p["b12"])
    h = relu(h @ p["w13"] + p["b13"])
    f = relu(jnp.concatenate([h, x], -1) @ p["w20"] + p["b20"])
    f = relu(f @ p["w21"] + p["b21"])
    f = relu(f @ p["w22"] + p["b22"])
    f = f @ p["w23"] + p["b23"]
    sigma = relu(f @ p["sigw"] + p["sigb"])
    fe = f @ p["few"] + p["feb"]
    r = relu(jnp.concatenate([fe, d], -1) @ p["rgb0w"] + p["rgb0bias"])
    rgb = jax.nn.sigmoid(r @ p["rgb1w"] + p["rgb1b"])
    return rgb, sigma


if __name__ == "__main__":
    # NeRF-like small shapes: positional-encoded xyz / view-dir features.
    N = 8192           # sampled points; tile_n=1024 -> 8 grid steps (>=4 per TC on v7x)
    POS_XYZ = 48       # encoded xyz dim
    POS_DIR = 24       # encoded view-dir dim
    HIDDEN = 32        # hidden width -> lane-pack 4 points per 128-lane row

    key = jax.random.PRNGKey(0)
    kx, kd, kp = jax.random.split(key, 3)
    encode_xyz = jax.random.normal(kx, (N, POS_XYZ), jnp.float32)
    encode_dir = jax.random.normal(kd, (N, POS_DIR), jnp.float32)
    params = init_params(kp, POS_XYZ, POS_DIR, HIDDEN)

    rgb_ref, sigma_ref = nerf_reference(encode_xyz, encode_dir, params)

    # 1) f32 MXU-operand path: structural check against the reference.
    rgb32, sigma32 = nerf_forward(encode_xyz, encode_dir, params, tile_n=1024,
                                  compute_dtype=jnp.float32,
                                  elementwise_dtype=jnp.float32)
    jax.block_until_ready((rgb32, sigma32))
    assert rgb32.shape == (N, 3) and sigma32.shape == (N, 1)
    assert jnp.allclose(rgb32, rgb_ref, atol=1e-4, rtol=1e-4)
    assert jnp.allclose(sigma32, sigma_ref, atol=1e-4, rtol=1e-4)

    # 2) Default bf16 MXU-operand fast path (bf16 elementwise on v6e/v7x).
    rgb, sigma = nerf_forward(encode_xyz, encode_dir, params, tile_n=1024)
    jax.block_until_ready((rgb, sigma))
    assert rgb.shape == (N, 3) and sigma.shape == (N, 1)
    assert jnp.allclose(rgb, rgb_ref, atol=8e-2, rtol=8e-2)
    assert jnp.allclose(sigma, sigma_ref, atol=2.5e-1, rtol=2.5e-1)

    # 3) Non-multiple N exercises the zero-padding / trim path.
    rgb_odd, sigma_odd = nerf_forward(encode_xyz[:1000], encode_dir[:1000], params,
                                      tile_n=1024)
    jax.block_until_ready((rgb_odd, sigma_odd))
    assert rgb_odd.shape == (1000, 3) and sigma_odd.shape == (1000, 1)

    print("KERNEL_OK")
</pallas_src>

<mosaic_0001>
module attributes {stable_mosaic.version = 11 : i64} {
  func.func @_nerf_kernel(%arg0: i32, %arg1: memref<256x192xf32, #tpu.memory_space<vmem>>, %arg2: memref<256x96xf32, #tpu.memory_space<vmem>>, %arg3: memref<192x128xf32, #tpu.memory_space<vmem>>, %arg4: memref<1x128xf32, #tpu.memory_space<vmem>>, %arg5: memref<128x128xf32, #tpu.memory_space<vmem>>, %arg6: memref<1x128xf32, #tpu.memory_space<vmem>>, %arg7: memref<128x128xf32, #tpu.memory_space<vmem>>, %arg8: memref<1x128xf32, #tpu.memory_space<vmem>>, %arg9: memref<128x128xf32, #tpu.memory_space<vmem>>, %arg10: memref<1x128xf32, #tpu.memory_space<vmem>>, %arg11: memref<128x128xf32, #tpu.memory_space<vmem>>, %arg12: memref<192x128xf32, #tpu.memory_space<vmem>>, %arg13: memref<1x128xf32, #tpu.memory_space<vmem>>, %arg14: memref<128x128xf32, #tpu.memory_space<vmem>>, %arg15: memref<1x128xf32, #tpu.memory_space<vmem>>, %arg16: memref<128x128xf32, #tpu.memory_space<vmem>>, %arg17: memref<1x128xf32, #tpu.memory_space<vmem>>, %arg18: memref<128x128xf32, #tpu.memory_space<vmem>>, %arg19: memref<1x128xf32, #tpu.memory_space<vmem>>, %arg20: memref<128x128xf32, #tpu.memory_space<vmem>>, %arg21: memref<1x128xf32, #tpu.memory_space<vmem>>, %arg22: memref<128x64xf32, #tpu.memory_space<vmem>>, %arg23: memref<96x64xf32, #tpu.memory_space<vmem>>, %arg24: memref<1x64xf32, #tpu.memory_space<vmem>>, %arg25: memref<64x16xf32, #tpu.memory_space<vmem>>, %arg26: memref<128x16xf32, #tpu.memory_space<vmem>>, %arg27: memref<1x16xf32, #tpu.memory_space<vmem>>, %arg28: memref<256x16xf32, #tpu.memory_space<vmem>>) attributes {dimension_semantics = [#tpu.dimension_semantics<parallel>], iteration_bounds = array<i64: 8>, scalar_prefetch = 0 : i64, scratch_operands = 0 : i64, tpu.core_type = #tpu.core_type<tc>, window_params = [{transform_indices = @transform_0, window_bounds = array<i64: 256, 192>}, {transform_indices = @transform_1, window_bounds = array<i64: 256, 96>}, {pipeline_mode = #tpu.pipeline_mode<synchronous>, transform_indices = @transform_2, window_bounds = array<i64: 192, 128>}, {pipeline_mode = #tpu.pipeline_mode<synchronous>, transform_indices = @transform_3, window_bounds = array<i64: 1, 128>}, {pipeline_mode = #tpu.pipeline_mode<synchronous>, transform_indices = @transform_4, window_bounds = array<i64: 128, 128>}, {pipeline_mode = #tpu.pipeline_mode<synchronous>, transform_indices = @transform_5, window_bounds = array<i64: 1, 128>}, {pipeline_mode = #tpu.pipeline_mode<synchronous>, transform_indices = @transform_6, window_bounds = array<i64: 128, 128>}, {pipeline_mode = #tpu.pipeline_mode<synchronous>, transform_indices = @transform_7, window_bounds = array<i64: 1, 128>}, {pipeline_mode = #tpu.pipeline_mode<synchronous>, transform_indices = @transform_8, window_bounds = array<i64: 128, 128>}, {pipeline_mode = #tpu.pipeline_mode<synchronous>, transform_indices = @transform_9, window_bounds = array<i64: 1, 128>}, {pipeline_mode = #tpu.pipeline_mode<synchronous>, transform_indices = @transform_10, window_bounds = array<i64: 128, 128>}, {pipeline_mode = #tpu.pipeline_mode<synchronous>, transform_indices = @transform_11, window_bounds = array<i64: 192, 128>}, {pipeline_mode = #tpu.pipeline_mode<synchronous>, transform_indices = @transform_12, window_bounds = array<i64: 1, 128>}, {pipeline_mode = #tpu.pipeline_mode<synchronous>, transform_indices = @transform_13, window_bounds = array<i64: 128, 128>}, {pipeline_mode = #tpu.pipeline_mode<synchronous>, transform_indices = @transform_14, window_bounds = array<i64: 1, 128>}, {pipeline_mode = #tpu.pipeline_mode<synchronous>, transform_indices = @transform_15, window_bounds = array<i64: 128, 128>}, {pipeline_mode = #tpu.pipeline_mode<synchronous>, transform_indices = @transform_16, window_bounds = array<i64: 1, 128>}, {pipeline_mode = #tpu.pipeline_mode<synchronous>, transform_indices = @transform_17, window_bounds = array<i64: 128, 128>}, {pipeline_mode = #tpu.pipeline_mode<synchronous>, transform_indices = @transform_18, window_bounds = array<i64: 1, 128>}, {pipeline_mode = #tpu.pipeline_mode<synchronous>, transform_indices = @transform_19, window_bounds = array<i64: 128, 128>}, {pipeline_mode = #tpu.pipeline_mode<synchronous>, transform_indices = @transform_20, window_bounds = array<i64: 1, 128>}, {pipeline_mode = #tpu.pipeline_mode<synchronous>, transform_indices = @transform_21, window_bounds = array<i64: 128, 64>}, {pipeline_mode = #tpu.pipeline_mode<synchronous>, transform_indices = @transform_22, window_bounds = array<i64: 96, 64>}, {pipeline_mode = #tpu.pipeline_mode<synchronous>, transform_indices = @transform_23, window_bounds = array<i64: 1, 64>}, {pipeline_mode = #tpu.pipeline_mode<synchronous>, transform_indices = @transform_24, window_bounds = array<i64: 64, 16>}, {pipeline_mode = #tpu.pipeline_mode<synchronous>, transform_indices = @transform_25, window_bounds = array<i64: 128, 16>}, {pipeline_mode = #tpu.pipeline_mode<synchronous>, transform_indices = @transform_26, window_bounds = array<i64: 1, 16>}, {transform_indices = @transform_27, window_bounds = array<i64: 256, 16>}]} {
    %c0 = arith.constant 0 : index
    %c0_0 = arith.constant 0 : index
    %0 = vector.load %arg1[%c0, %c0_0] : memref<256x192xf32, #tpu.memory_space<vmem>>, vector<256x192xf32>
    %c0_1 = arith.constant 0 : index
    %c0_2 = arith.constant 0 : index
    %1 = vector.load %arg2[%c0_1, %c0_2] : memref<256x96xf32, #tpu.memory_space<vmem>>, vector<256x96xf32>
    %c0_3 = arith.constant 0 : index
    %c0_4 = arith.constant 0 : index
    %2 = vector.load %arg3[%c0_3, %c0_4] : memref<192x128xf32, #tpu.memory_space<vmem>>, vector<192x128xf32>
    %cst = arith.constant dense<0.000000e+00> : vector<256x128xf32>
    %3 = tpu.matmul %0, %2, %cst {dimension_numbers = #tpu.dot_dimension_numbers<[1], [0], [0], [1], [0, 0, 1, 1], [], []>} : vector<256x192xf32>, vector<192x128xf32>, vector<256x128xf32> -> vector<256x128xf32>
    %c0_5 = arith.constant 0 : index
    %c0_6 = arith.constant 0 : index
    %4 = vector.load %arg4[%c0_5, %c0_6] : memref<1x128xf32, #tpu.memory_space<vmem>>, vector<1x128xf32>
    %5 = vector.broadcast %4 : vector<1x128xf32> to vector<256x128xf32>
    %6 = arith.addf %3, %5 : vector<256x128xf32>
    %cst_7 = arith.constant 0.000000e+00 : f32
    %7 = vector.broadcast %cst_7 : f32 to vector<256x128xf32>
    %8 = arith.maximumf %6, %7 : vector<256x128xf32>
    %c0_8 = arith.constant 0 : index
    %c0_9 = arith.constant 0 : index
    %9 = vector.load %arg5[%c0_8, %c0_9] : memref<128x128xf32, #tpu.memory_space<vmem>>, vector<128x128xf32>
    %cst_10 = arith.constant dense<0.000000e+00> : vector<256x128xf32>
    %10 = tpu.matmul %8, %9, %cst_10 {dimension_numbers = #tpu.dot_dimension_numbers<[1], [0], [0], [1], [0, 0, 1, 1], [], []>} : vector<256x128xf32>, vector<128x128xf32>, vector<256x128xf32> -> vector<256x128xf32>
    %c0_11 = arith.constant 0 : index
    %c0_12 = arith.constant 0 : index
    %11 = vector.load %arg6[%c0_11, %c0_12] : memref<1x128xf32, #tpu.memory_space<vmem>>, vector<1x128xf32>
    %12 = vector.broadcast %11 : vector<1x128xf32> to vector<256x128xf32>
    %13 = arith.addf %10, %12 : vector<256x128xf32>
    %cst_13 = arith.constant 0.000000e+00 : f32
    %14 = vector.broadcast %cst_13 : f32 to vector<256x128xf32>
    %15 = arith.maximumf %13, %14 : vector<256x128xf32>
    %c0_14 = arith.constant 0 : index
    %c0_15 = arith.constant 0 : index
    %16 = vector.load %arg7[%c0_14, %c0_15] : memref<128x128xf32, #tpu.memory_space<vmem>>, vector<128x128xf32>
    %cst_16 = arith.constant dense<0.000000e+00> : vector<256x128xf32>
    %17 = tpu.matmul %15, %16, %cst_16 {dimension_numbers = #tpu.dot_dimension_numbers<[1], [0], [0], [1], [0, 0, 1, 1], [], []>} : vector<256x128xf32>, vector<128x128xf32>, vector<256x128xf32> -> vector<256x128xf32>
    %c0_17 = arith.constant 0 : index
    %c0_18 = arith.constant 0 : index
    %18 = vector.load %arg8[%c0_17, %c0_18] : memref<1x128xf32, #tpu.memory_space<vmem>>, vector<1x128xf32>
    %19 = vector.broadcast %18 : vector<1x128xf32> to vector<256x128xf32>
    %20 = arith.addf %17, %19 : vector<256x128xf32>
    %cst_19 = arith.constant 0.000000e+00 : f32
    %21 = vector.broadcast %cst_19 : f32 to vector<256x128xf32>
    %22 = arith.maximumf %20, %21 : vector<256x128xf32>
    %c0_20 = arith.constant 0 : index
    %c0_21 = arith.constant 0 : index
    %23 = vector.load %arg9[%c0_20, %c0_21] : memref<128x128xf32, #tpu.memory_space<vmem>>, vector<128x128xf32>
    %cst_22 = arith.constant dense<0.000000e+00> : vector<256x128xf32>
    %24 = tpu.matmul %22, %23, %cst_22 {dimension_numbers = #tpu.dot_dimension_numbers<[1], [0], [0], [1], [0, 0, 1, 1], [], []>} : vector<256x128xf32>, vector<128x128xf32>, vector<256x128xf32> -> vector<256x128xf32>
    %c0_23 = arith.constant 0 : index
    %c0_24 = arith.constant 0 : index
    %25 = vector.load %arg10[%c0_23, %c0_24] : memref<1x128xf32, #tpu.memory_space<vmem>>, vector<1x128xf32>
    %26 = vector.broadcast %25 : vector<1x128xf32> to vector<256x128xf32>
    %27 = arith.addf %24, %26 : vector<256x128xf32>
    %cst_25 = arith.constant 0.000000e+00 : f32
    %28 = vector.broadcast %cst_25 : f32 to vector<256x128xf32>
    %29 = arith.maximumf %27, %28 : vector<256x128xf32>
    %c0_26 = arith.constant 0 : index
    %c0_27 = arith.constant 0 : index
    %30 = vector.load %arg11[%c0_26, %c0_27] : memref<128x128xf32, #tpu.memory_space<vmem>>, vector<128x128xf32>
    %cst_28 = arith.constant dense<0.000000e+00> : vector<256x128xf32>
    %31 = tpu.matmul %29, %30, %cst_28 {dimension_numbers = #tpu.dot_dimension_numbers<[1], [0], [0], [1], [0, 0, 1, 1], [], []>} : vector<256x128xf32>, vector<128x128xf32>, vector<256x128xf32> -> vector<256x128xf32>
    %c0_29 = arith.constant 0 : index
    %c0_30 = arith.constant 0 : index
    %32 = vector.load %arg12[%c0_29, %c0_30] : memref<192x128xf32, #tpu.memory_space<vmem>>, vector<192x128xf32>
    %cst_31 = arith.constant dense<0.000000e+00> : vector<256x128xf32>
    %33 = tpu.matmul %0, %32, %cst_31 {dimension_numbers = #tpu.dot_dimension_numbers<[1], [0], [0], [1], [0, 0, 1, 1], [], []>} : vector<256x192xf32>, vector<192x128xf32>, vector<256x128xf32> -> vector<256x128xf32>
    %34 = arith.addf %31, %33 : vector<256x128xf32>
    %c0_32 = arith.constant 0 : index
    %c0_33 = arith.constant 0 : index
    %35 = vector.load %arg13[%c0_32, %c0_33] : memref<1x128xf32, #tpu.memory_space<vmem>>, vector<1x128xf32>
    %36 = vector.broadcast %35 : vector<1x128xf32> to vector<256x128xf32>
    %37 = arith.addf %34, %36 : vector<256x128xf32>
    %cst_34 = arith.constant 0.000000e+00 : f32
    %38 = vector.broadcast %cst_34 : f32 to vector<256x128xf32>
    %39 = arith.maximumf %37, %38 : vector<256x128xf32>
    %c0_35 = arith.constant 0 : index
    %c0_36 = arith.constant 0 : index
    %40 = vector.load %arg14[%c0_35, %c0_36] : memref<128x128xf32, #tpu.memory_space<vmem>>, vector<128x128xf32>
    %cst_37 = arith.constant dense<0.000000e+00> : vector<256x128xf32>
    %41 = tpu.matmul %39, %40, %cst_37 {dimension_numbers = #tpu.dot_dimension_numbers<[1], [0], [0], [1], [0, 0, 1, 1], [], []>} : vector<256x128xf32>, vector<128x128xf32>, vector<256x128xf32> -> vector<256x128xf32>
    %c0_38 = arith.constant 0 : index
    %c0_39 = arith.constant 0 : index
    %42 = vector.load %arg15[%c0_38, %c0_39] : memref<1x128xf32, #tpu.memory_space<vmem>>, vector<1x128xf32>
    %43 = vector.broadcast %42 : vector<1x128xf32> to vector<256x128xf32>
    %44 = arith.addf %41, %43 : vector<256x128xf32>
    %cst_40 = arith.constant 0.000000e+00 : f32
    %45 = vector.broadcast %cst_40 : f32 to vector<256x128xf32>
    %46 = arith.maximumf %44, %45 : vector<256x128xf32>
    %c0_41 = arith.constant 0 : index
    %c0_42 = arith.constant 0 : index
    %47 = vector.load %arg16[%c0_41, %c0_42] : memref<128x128xf32, #tpu.memory_space<vmem>>, vector<128x128xf32>
    %cst_43 = arith.constant dense<0.000000e+00> : vector<256x128xf32>
    %48 = tpu.matmul %46, %47, %cst_43 {dimension_numbers = #tpu.dot_dimension_numbers<[1], [0], [0], [1], [0, 0, 1, 1], [], []>} : vector<256x128xf32>, vector<128x128xf32>, vector<256x128xf32> -> vector<256x128xf32>
    %c0_44 = arith.constant 0 : index
    %c0_45 = arith.constant 0 : index
    %49 = vector.load %arg17[%c0_44, %c0_45] : memref<1x128xf32, #tpu.memory_space<vmem>>, vector<1x128xf32>
    %50 = vector.broadcast %49 : vector<1x128xf32> to vector<256x128xf32>
    %51 = arith.addf %48, %50 : vector<256x128xf32>
    %cst_46 = arith.constant 0.000000e+00 : f32
    %52 = vector.broadcast %cst_46 : f32 to vector<256x128xf32>
    %53 = arith.maximumf %51, %52 : vector<256x128xf32>
    %c0_47 = arith.constant 0 : index
    %c0_48 = arith.constant 0 : index
    %54 = vector.load %arg18[%c0_47, %c0_48] : memref<128x128xf32, #tpu.memory_space<vmem>>, vector<128x128xf32>
    %cst_49 = arith.constant dense<0.000000e+00> : vector<256x128xf32>
    %55 = tpu.matmul %53, %54, %cst_49 {dimension_numbers = #tpu.dot_dimension_numbers<[1], [0], [0], [1], [0, 0, 1, 1], [], []>} : vector<256x128xf32>, vector<128x128xf32>, vector<256x128xf32> -> vector<256x128xf32>
    %c0_50 = arith.constant 0 : index
    %c0_51 = arith.constant 0 : index
    %56 = vector.load %arg19[%c0_50, %c0_51] : memref<1x128xf32, #tpu.memory_space<vmem>>, vector<1x128xf32>
    %57 = vector.broadcast %56 : vector<1x128xf32> to vector<256x128xf32>
    %58 = arith.addf %55, %57 : vector<256x128xf32>
    %c0_52 = arith.constant 0 : index
    %c0_53 = arith.constant 0 : index
    %59 = vector.load %arg20[%c0_52, %c0_53] : memref<128x128xf32, #tpu.memory_space<vmem>>, vector<128x128xf32>
    %cst_54 = arith.constant dense<0.000000e+00> : vector<256x128xf32>
    %60 = tpu.matmul %58, %59, %cst_54 {dimension_numbers = #tpu.dot_dimension_numbers<[1], [0], [0], [1], [0, 0, 1, 1], [], []>} : vector<256x128xf32>, vector<128x128xf32>, vector<256x128xf32> -> vector<256x128xf32>
    %c0_55 = arith.constant 0 : index
    %c0_56 = arith.constant 0 : index
    %61 = vector.load %arg21[%c0_55, %c0_56] : memref<1x128xf32, #tpu.memory_space<vmem>>, vector<1x128xf32>
    %62 = vector.broadcast %61 : vector<1x128xf32> to vector<256x128xf32>
    %63 = arith.addf %60, %62 : vector<256x128xf32>
    %c0_57 = arith.constant 0 : index
    %c0_58 = arith.constant 0 : index
    %64 = vector.load %arg22[%c0_57, %c0_58] : memref<128x64xf32, #tpu.memory_space<vmem>>, vector<128x64xf32>
    %cst_59 = arith.constant dense<0.000000e+00> : vector<256x64xf32>
    %65 = tpu.matmul %63, %64, %cst_59 {dimension_numbers = #tpu.dot_dimension_numbers<[1], [0], [0], [1], [0, 0, 1, 1], [], []>} : vector<256x128xf32>, vector<128x64xf32>, vector<256x64xf32> -> vector<256x64xf32>
    %c0_60 = arith.constant 0 : index
    %c0_61 = arith.constant 0 : index
    %66 = vector.load %arg23[%c0_60, %c0_61] : memref<96x64xf32, #tpu.memory_space<vmem>>, vector<96x64xf32>
    %cst_62 = arith.constant dense<0.000000e+00> : vector<256x64xf32>
    %67 = tpu.matmul %1, %66, %cst_62 {dimension_numbers = #tpu.dot_dimension_numbers<[1], [0], [0], [1], [0, 0, 1, 1], [], []>} : vector<256x96xf32>, vector<96x64xf32>, vector<256x64xf32> -> vector<256x64xf32>
    %68 = arith.addf %65, %67 : vector<256x64xf32>
    %c0_63 = arith.constant 0 : index
    %c0_64 = arith.constant 0 : index
    %69 = vector.load %arg24[%c0_63, %c0_64] : memref<1x64xf32, #tpu.memory_space<vmem>>, vector<1x64xf32>
    %70 = vector.broadcast %69 : vector<1x64xf32> to vector<256x64xf32>
    %71 = arith.addf %68, %70 : vector<256x64xf32>
    %cst_65 = arith.constant 0.000000e+00 : f32
    %72 = vector.broadcast %cst_65 : f32 to vector<256x64xf32>
    %73 = arith.maximumf %71, %72 : vector<256x64xf32>
    %c0_66 = arith.constant 0 : index
    %c0_67 = arith.constant 0 : index
    %74 = vector.load %arg25[%c0_66, %c0_67] : memref<64x16xf32, #tpu.memory_space<vmem>>, vector<64x16xf32>
    %cst_68 = arith.constant dense<0.000000e+00> : vector<256x16xf32>
    %75 = tpu.matmul %73, %74, %cst_68 {dimension_numbers = #tpu.dot_dimension_numbers<[1], [0], [0], [1], [0, 0, 1, 1], [], []>} : vector<256x64xf32>, vector<64x16xf32>, vector<256x16xf32> -> vector<256x16xf32>
    %c0_69 = arith.constant 0 : index
    %c0_70 = arith.constant 0 : index
    %76 = vector.load %arg26[%c0_69, %c0_70] : memref<128x16xf32, #tpu.memory_space<vmem>>, vector<128x16xf32>
    %cst_71 = arith.constant dense<0.000000e+00> : vector<256x16xf32>
    %77 = tpu.matmul %58, %76, %cst_71 {dimension_numbers = #tpu.dot_dimension_numbers<[1], [0], [0], [1], [0, 0, 1, 1], [], []>} : vector<256x128xf32>, vector<128x16xf32>, vector<256x16xf32> -> vector<256x16xf32>
    %78 = arith.addf %75, %77 : vector<256x16xf32>
    %c0_72 = arith.constant 0 : index
    %c0_73 = arith.constant 0 : index
    %79 = vector.load %arg27[%c0_72, %c0_73] : memref<1x16xf32, #tpu.memory_space<vmem>>, vector<1x16xf32>
    %80 = vector.broadcast %79 : vector<1x16xf32> to vector<256x16xf32>
    %81 = arith.addf %78, %80 : vector<256x16xf32>
    %82 = tpu.iota {dimensions = array<i32: 1>} : vector<256x16xi32>
    %c4_i32 = arith.constant 4 : i32
    %c0_i32 = arith.constant 0 : i32
    %83 = arith.cmpi eq, %c4_i32, %c0_i32 : i32
    %c1_i32 = arith.constant 1 : i32
    %84 = arith.select %83, %c1_i32, %c4_i32 : i32
    %85 = vector.broadcast %84 : i32 to vector<256x16xi32>
    %86 = arith.remsi %82, %85 : vector<256x16xi32>
    %c0_i32_74 = arith.constant 0 : i32
    %87 = vector.broadcast %c0_i32_74 : i32 to vector<256x16xi32>
    %88 = arith.cmpi ne, %86, %87 : vector<256x16xi32>
    %c0_i32_75 = arith.constant 0 : i32
    %89 = vector.broadcast %c0_i32_75 : i32 to vector<256x16xi32>
    %90 = arith.cmpi slt, %86, %89 : vector<256x16xi32>
    %c0_i32_76 = arith.constant 0 : i32
    %91 = arith.cmpi slt, %84, %c0_i32_76 : i32
    %92 = vector.broadcast %91 : i1 to vector<256x16xi1>
    %93 = vector.broadcast %92 : vector<256x16xi1> to vector<256x16xi1>
    %94 = arith.xori %90, %93 : vector<256x16xi1>
    %95 = arith.andi %94, %88 : vector<256x16xi1>
    %96 = vector.broadcast %84 : i32 to vector<256x16xi32>
    %97 = arith.addi %86, %96 : vector<256x16xi32>
    %98 = arith.select %95, %97, %86 : vector<256x16xi1>, vector<256x16xi32>
    %c3_i32 = arith.constant 3 : i32
    %99 = vector.broadcast %c3_i32 : i32 to vector<256x16xi32>
    %100 = arith.cmpi eq, %98, %99 : vector<256x16xi32>
    %cst_77 = arith.constant 0.000000e+00 : f32
    %101 = vector.broadcast %cst_77 : f32 to vector<256x16xf32>
    %102 = arith.maximumf %81, %101 : vector<256x16xf32>
    %103 = arith.negf %81 : vector<256x16xf32>
    %104 = math.exp %103 : vector<256x16xf32>
    %cst_78 = arith.constant 1.000000e+00 : f32
    %105 = vector.broadcast %cst_78 : f32 to vector<256x16xf32>
    %106 = arith.addf %105, %104 : vector<256x16xf32>
    %107 = arith.divf %105, %106 : vector<256x16xf32>
    %108 = arith.select %100, %102, %107 : vector<256x16xi1>, vector<256x16xf32>
    %c0_79 = arith.constant 0 : index
    %c0_80 = arith.constant 0 : index
    %109 = vector.load %arg28[%c0_79, %c0_80] : memref<256x16xf32, #tpu.memory_space<vmem>>, vector<256x16xf32>
    tpu.vector_store %arg28[%c0_79, %c0_80], %108 {strides = array<i32>} : memref<256x16xf32, #tpu.memory_space<vmem>>, vector<256x16xf32>,
    return
  }
  func.func @transform_0(%arg0: i32) -> (i32, i32) {
    %c0_i32 = arith.constant 0 : i32
    %c0_i32_0 = arith.constant 0 : i32
    return %arg0, %c0_i32 : i32, i32
  }
  func.func @transform_1(%arg0: i32) -> (i32, i32) {
    %c0_i32 = arith.constant 0 : i32
    %c0_i32_0 = arith.constant 0 : i32
    return %arg0, %c0_i32 : i32, i32
  }
  func.func @transform_2(%arg0: i32) -> (i32, i32) {
    %c0_i32 = arith.constant 0 : i32
    %c0_i32_0 = arith.constant 0 : i32
    %c0_i32_1 = arith.constant 0 : i32
    return %c0_i32, %c0_i32_0 : i32, i32
  }
  func.func @transform_3(%arg0: i32) -> (i32, i32) {
    %c0_i32 = arith.constant 0 : i32
    %c0_i32_0 = arith.constant 0 : i32
    %c0_i32_1 = arith.constant 0 : i32
    return %c0_i32, %c0_i32_0 : i32, i32
  }
  func.func @transform_4(%arg0: i32) -> (i32, i32) {
    %c0_i32 = arith.constant 0 : i32
    %c0_i32_0 = arith.constant 0 : i32
    %c0_i32_1 = arith.constant 0 : i32
    return %c0_i32, %c0_i32_0 : i32, i32
  }
  func.func @transform_5(%arg0: i32) -> (i32, i32) {
    %c0_i32 = arith.constant 0 : i32
    %c0_i32_0 = arith.constant 0 : i32
    %c0_i32_1 = arith.constant 0 : i32
    return %c0_i32, %c0_i32_0 : i32, i32
  }
  func.func @transform_6(%arg0: i32) -> (i32, i32) {
    %c0_i32 = arith.constant 0 : i32
    %c0_i32_0 = arith.constant 0 : i32
    %c0_i32_1 = arith.constant 0 : i32
    return %c0_i32, %c0_i32_0 : i32, i32
  }
  func.func @transform_7(%arg0: i32) -> (i32, i32) {
    %c0_i32 = arith.constant 0 : i32
    %c0_i32_0 = arith.constant 0 : i32
    %c0_i32_1 = arith.constant 0 : i32
    return %c0_i32, %c0_i32_0 : i32, i32
  }
  func.func @transform_8(%arg0: i32) -> (i32, i32) {
    %c0_i32 = arith.constant 0 : i32
    %c0_i32_0 = arith.constant 0 : i32
    %c0_i32_1 = arith.constant 0 : i32
    return %c0_i32, %c0_i32_0 : i32, i32
  }
  func.func @transform_9(%arg0: i32) -> (i32, i32) {
    %c0_i32 = arith.constant 0 : i32
    %c0_i32_0 = arith.constant 0 : i32
    %c0_i32_1 = arith.constant 0 : i32
    return %c0_i32, %c0_i32_0 : i32, i32
  }
  func.func @transform_10(%arg0: i32) -> (i32, i32) {
    %c0_i32 = arith.constant 0 : i32
    %c0_i32_0 = arith.constant 0 : i32
    %c0_i32_1 = arith.constant 0 : i32
    return %c0_i32, %c0_i32_0 : i32, i32
  }
  func.func @transform_11(%arg0: i32) -> (i32, i32) {
    %c0_i32 = arith.constant 0 : i32
    %c0_i32_0 = arith.constant 0 : i32
    %c0_i32_1 = arith.constant 0 : i32
    return %c0_i32, %c0_i32_0 : i32, i32
  }
  func.func @transform_12(%arg0: i32) -> (i32, i32) {
    %c0_i32 = arith.constant 0 : i32
    %c0_i32_0 = arith.constant 0 : i32
    %c0_i32_1 = arith.constant 0 : i32
    return %c0_i32, %c0_i32_0 : i32, i32
  }
  func.func @transform_13(%arg0: i32) -> (i32, i32) {
    %c0_i32 = arith.constant 0 : i32
    %c0_i32_0 = arith.constant 0 : i32
    %c0_i32_1 = arith.constant 0 : i32
    return %c0_i32, %c0_i32_0 : i32, i32
  }
  func.func @transform_14(%arg0: i32) -> (i32, i32) {
    %c0_i32 = arith.constant 0 : i32
    %c0_i32_0 = arith.constant 0 : i32
    %c0_i32_1 = arith.constant 0 : i32
    return %c0_i32, %c0_i32_0 : i32, i32
  }
  func.func @transform_15(%arg0: i32) -> (i32, i32) {
    %c0_i32 = arith.constant 0 : i32
    %c0_i32_0 = arith.constant 0 : i32
    %c0_i32_1 = arith.constant 0 : i32
    return %c0_i32, %c0_i32_0 : i32, i32
  }
  func.func @transform_16(%arg0: i32) -> (i32, i32) {
    %c0_i32 = arith.constant 0 : i32
    %c0_i32_0 = arith.constant 0 : i32
    %c0_i32_1 = arith.constant 0 : i32
    return %c0_i32, %c0_i32_0 : i32, i32
  }
  func.func @transform_17(%arg0: i32) -> (i32, i32) {
    %c0_i32 = arith.constant 0 : i32
    %c0_i32_0 = arith.constant 0 : i32
    %c0_i32_1 = arith.constant 0 : i32
    return %c0_i32, %c0_i32_0 : i32, i32
  }
  func.func @transform_18(%arg0: i32) -> (i32, i32) {
    %c0_i32 = arith.constant 0 : i32
    %c0_i32_0 = arith.constant 0 : i32
    %c0_i32_1 = arith.constant 0 : i32
    return %c0_i32, %c0_i32_0 : i32, i32
  }
  func.func @transform_19(%arg0: i32) -> (i32, i32) {
    %c0_i32 = arith.constant 0 : i32
    %c0_i32_0 = arith.constant 0 : i32
    %c0_i32_1 = arith.constant 0 : i32
    return %c0_i32, %c0_i32_0 : i32, i32
  }
  func.func @transform_20(%arg0: i32) -> (i32, i32) {
    %c0_i32 = arith.constant 0 : i32
    %c0_i32_0 = arith.constant 0 : i32
    %c0_i32_1 = arith.constant 0 : i32
    return %c0_i32, %c0_i32_0 : i32, i32
  }
  func.func @transform_21(%arg0: i32) -> (i32, i32) {
    %c0_i32 = arith.constant 0 : i32
    %c0_i32_0 = arith.constant 0 : i32
    %c0_i32_1 = arith.constant 0 : i32
    return %c0_i32, %c0_i32_0 : i32, i32
  }
  func.func @transform_22(%arg0: i32) -> (i32, i32) {
    %c0_i32 = arith.constant 0 : i32
    %c0_i32_0 = arith.constant 0 : i32
    %c0_i32_1 = arith.constant 0 : i32
    return %c0_i32, %c0_i32_0 : i32, i32
  }
  func.func @transform_23(%arg0: i32) -> (i32, i32) {
    %c0_i32 = arith.constant 0 : i32
    %c0_i32_0 = arith.constant 0 : i32
    %c0_i32_1 = arith.constant 0 : i32
    return %c0_i32, %c0_i32_0 : i32, i32
  }
  func.func @transform_24(%arg0: i32) -> (i32, i32) {
    %c0_i32 = arith.constant 0 : i32
    %c0_i32_0 = arith.constant 0 : i32
    %c0_i32_1 = arith.constant 0 : i32
    return %c0_i32, %c0_i32_0 : i32, i32
  }
  func.func @transform_25(%arg0: i32) -> (i32, i32) {
    %c0_i32 = arith.constant 0 : i32
    %c0_i32_0 = arith.constant 0 : i32
    %c0_i32_1 = arith.constant 0 : i32
    return %c0_i32, %c0_i32_0 : i32, i32
  }
  func.func @transform_26(%arg0: i32) -> (i32, i32) {
    %c0_i32 = arith.constant 0 : i32
    %c0_i32_0 = arith.constant 0 : i32
    %c0_i32_1 = arith.constant 0 : i32
    return %c0_i32, %c0_i32_0 : i32, i32
  }
  func.func @transform_27(%arg0: i32) -> (i32, i32) {
    %c0_i32 = arith.constant 0 : i32
    %c0_i32_0 = arith.constant 0 : i32
    return %arg0, %c0_i32 : i32, i32
  }
}

</mosaic_0001>

<llo_original>
// kernel: tpu_custom_call.1
$region0: #{tpu_custom_call.1}
  #allocation0 [shape = 'u32[]', space=smem, size = 0x4, offset = 0x4, fixed_abs, tag = 'smem constant byte address 0x4 - core index']
  #allocation1 [shape = 'u32[144,128]{1,0:T(1,128)}', space=vmem, size = 0x12000, scoped, tag = 'internal scratch']
  %s0 = inlined_call_operand.vmem [shape: f32[2048,192], index: 0, kind: input, shape index: {}]
  %s1 = inlined_call_operand.vmem [shape: f32[2048,96], index: 1, kind: input, shape index: {}]
  %s2 = inlined_call_operand.vmem [shape: f32[192,128], index: 2, kind: input, shape index: {}]
  %s3 = inlined_call_operand.vmem [shape: f32[1,128], index: 3, kind: input, shape index: {}]
  %s4 = inlined_call_operand.vmem [shape: f32[128,128], index: 4, kind: input, shape index: {}]
  %s5 = inlined_call_operand.vmem [shape: f32[1,128], index: 5, kind: input, shape index: {}]
  %s6 = inlined_call_operand.vmem [shape: f32[128,128], index: 6, kind: input, shape index: {}]
  %s7 = inlined_call_operand.vmem [shape: f32[1,128], index: 7, kind: input, shape index: {}]
  %s8 = inlined_call_operand.vmem [shape: f32[128,128], index: 8, kind: input, shape index: {}]
  %s9 = inlined_call_operand.vmem [shape: f32[1,128], index: 9, kind: input, shape index: {}]
  %s10 = inlined_call_operand.vmem [shape: f32[128,128], index: 10, kind: input, shape index: {}]
  %s11 = inlined_call_operand.vmem [shape: f32[192,128], index: 11, kind: input, shape index: {}]
  %s12 = inlined_call_operand.vmem [shape: f32[1,128], index: 12, kind: input, shape index: {}]
  %s13 = inlined_call_operand.vmem [shape: f32[128,128], index: 13, kind: input, shape index: {}]
  %s14 = inlined_call_operand.vmem [shape: f32[1,128], index: 14, kind: input, shape index: {}]
  %s15 = inlined_call_operand.vmem [shape: f32[128,128], index: 15, kind: input, shape index: {}]
  %s16 = inlined_call_operand.vmem [shape: f32[1,128], index: 16, kind: input, shape index: {}]
  %s17 = inlined_call_operand.vmem [shape: f32[128,128], index: 17, kind: input, shape index: {}]
  %s18 = inlined_call_operand.vmem [shape: f32[1,128], index: 18, kind: input, shape index: {}]
  %s19 = inlined_call_operand.vmem [shape: f32[128,128], index: 19, kind: input, shape index: {}]
  %s20 = inlined_call_operand.vmem [shape: f32[1,128], index: 20, kind: input, shape index: {}]
  %s21 = inlined_call_operand.vmem [shape: f32[128,64], index: 21, kind: input, shape index: {}]
  %s22 = inlined_call_operand.vmem [shape: f32[96,64], index: 22, kind: input, shape index: {}]
  %s23 = inlined_call_operand.vmem [shape: f32[1,64], index: 23, kind: input, shape index: {}]
  %s24 = inlined_call_operand.vmem [shape: f32[64,16], index: 24, kind: input, shape index: {}]
  %s25 = inlined_call_operand.vmem [shape: f32[128,16], index: 25, kind: input, shape index: {}]
  %s26 = inlined_call_operand.vmem [shape: f32[1,16], index: 26, kind: input, shape index: {}]
  %s27 = inlined_call_operand.vmem [shape: f32[2048,16], index: 27, kind: output, shape index: {}]
  %s28 = sld [smem:[#allocation0]]
  $region141: #{tpu_custom_call.1} parent=0
    _
  %s30 = ssub.s32 1, %s28
  %s31 = scalar_select 0, %s30, %s28
  loop: start=0, step=1, limit=10
  $region2: #{tpu_custom_call.1} parent=0 // loop_pre_header
    _
  $region3: #{tpu_custom_call.1} parent=0 // loop_header
    %s33 = sphi 0, %s37
    %p34 = scmp.ge.s32.totalorder %s33, 10
    %s43 = sphi 0, %s45
    %s46 = sphi 0, %s43
    %s47 = sphi 0, %s46
    %s63 = sphi 0, %s47
    %s69 = sphi 0, %s71
    %s72 = sphi 0, %s69
    %s73 = sphi 0, %s72
    %s89 = sphi 0, %s73
    %s93 = sphi 0, %s93
    %s95 = sphi 0, %s93
    %s96 = sphi 0, %s95
    %s110 = sphi 0, %s96
    %s114 = sphi 0, %s114
    %s116 = sphi 0, %s114
    %s117 = sphi 0, %s116
    %s131 = sphi 0, %s117
    %s135 = sphi 0, %s135
    %s137 = sphi 0, %s135
    %s138 = sphi 0, %s137
    %s152 = sphi 0, %s138
    %s156 = sphi 0, %s156
    %s158 = sphi 0, %s156
    %s159 = sphi 0, %s158
    %s173 = sphi 0, %s159
    %s177 = sphi 0, %s177
    %s179 = sphi 0, %s177
    %s180 = sphi 0, %s179
    %s194 = sphi 0, %s180
    %s198 = sphi 0, %s198
    %s200 = sphi 0, %s198
    %s201 = sphi 0, %s200
    %s215 = sphi 0, %s201
    %s219 = sphi 0, %s219
    %s221 = sphi 0, %s219
    %s222 = sphi 0, %s221
    %s236 = sphi 0, %s222
    %s240 = sphi 0, %s240
    %s242 = sphi 0, %s240
    %s243 = sphi 0, %s242
    %s257 = sphi 0, %s243
    %s261 = sphi 0, %s261
    %s263 = sphi 0, %s261
    %s264 = sphi 0, %s263
    %s278 = sphi 0, %s264
    %s282 = sphi 0, %s282
    %s284 = sphi 0, %s282
    %s285 = sphi 0, %s284
    %s299 = sphi 0, %s285
    %s303 = sphi 0, %s303
    %s305 = sphi 0, %s303
    %s306 = sphi 0, %s305
    %s320 = sphi 0, %s306
    %s324 = sphi 0, %s324
    %s326 = sphi 0, %s324
    %s327 = sphi 0, %s326
    %s341 = sphi 0, %s327
    %s345 = sphi 0, %s345
    %s347 = sphi 0, %s345
    %s348 = sphi 0, %s347
    %s362 = sphi 0, %s348
    %s366 = sphi 0, %s366
    %s368 = sphi 0, %s366
    %s369 = sphi 0, %s368
    %s383 = sphi 0, %s369
    %s387 = sphi 0, %s387
    %s389 = sphi 0, %s387
    %s390 = sphi 0, %s389
    %s404 = sphi 0, %s390
    %s408 = sphi 0, %s408
    %s410 = sphi 0, %s408
    %s411 = sphi 0, %s410
    %s425 = sphi 0, %s411
    %s429 = sphi 0, %s429
    %s431 = sphi 0, %s429
    %s432 = sphi 0, %s431
    %s446 = sphi 0, %s432
    %s450 = sphi 0, %s450
    %s452 = sphi 0, %s450
    %s453 = sphi 0, %s452
    %s467 = sphi 0, %s453
    %s471 = sphi 0, %s471
    %s473 = sphi 0, %s471
    %s474 = sphi 0, %s473
    %s488 = sphi 0, %s474
    %s492 = sphi 0, %s492
    %s494 = sphi 0, %s492
    %s495 = sphi 0, %s494
    %s509 = sphi 0, %s495
    %s513 = sphi 0, %s513
    %s515 = sphi 0, %s513
    %s516 = sphi 0, %s515
    %s530 = sphi 0, %s516
    %s534 = sphi 0, %s534
    %s536 = sphi 0, %s534
    %s537 = sphi 0, %s536
    %s551 = sphi 0, %s537
    %s555 = sphi 0, %s555
    %s557 = sphi 0, %s555
    %s558 = sphi 0, %s557
    %s572 = sphi 0, %s558
    %s576 = sphi 0, %s576
    %s578 = sphi 0, %s576
    %s579 = sphi 0, %s578
    %s593 = sphi 0, %s579
    %s597 = sphi 0, %s597
    %s599 = sphi 0, %s597
    %s600 = sphi 0, %s599
    %s614 = sphi 0, %s600
    %s620 = sphi 0, %s622
    %s623 = sphi 0, %s620
    %s624 = sphi 0, %s623
    %s640 = sphi 0, %s624
  $region4: #{tpu_custom_call.1} parent=0 // loop_header_branch
    %36 = sbr.rel (%p34) target = $region8
  $region5: #{tpu_custom_call.1} parent=0 // loop_body
    %s38 = ssub.s32 %s33, 1
    %s39 = ssub.s32 %s33, 2
    %s40 = sadd.s32 %s33, 1
    %s41 = ssub.s32 %s33, %s40
    %p42 = scmp.eq.s32.totalorder %s41, 0
    %s44 = sadd.s32 %s43, 1
    %s45 = scalar_select %p42, %s43, %s44
    %p48 = pneg %p42
    %p49 = scmp.eq.s32.totalorder %s33, 7
    %p50 = por %p48, %p49
    %p51 = scmp.ne.s32.totalorder %s43, %s46
    %p52 = scmp.eq.s32.totalorder %s33, 0
    %p53 = por %p51, %p52
    %p54 = scmp.ne.s32.totalorder %s43, %s46
    %p55 = scmp.eq.s32.totalorder %s38, 7
    %p56 = por %p54, %p55
    %p57 = scmp.ne.s32.totalorder %s46, %s47
    %p58 = scmp.eq.s32.totalorder %s38, 0
    %p59 = por %p57, %p58
    %p60 = scmp.ne.s32.totalorder %s46, %s47
    %p61 = scmp.eq.s32.totalorder %s39, 7
    %p62 = por %p60, %p61
    %p64 = scmp.ne.s32.totalorder %s47, %s63
    %p65 = scmp.eq.s32.totalorder %s39, 0
    %p66 = por %p64, %p65
    %s67 = ssub.s32 %s33, %s40
    %p68 = scmp.eq.s32.totalorder %s67, 0
    %s70 = sadd.s32 %s69, 1
    %s71 = scalar_select %p68, %s69, %s70
    %p74 = pneg %p68
    %p75 = scmp.eq.s32.totalorder %s33, 7
    %p76 = por %p74, %p75
    %p77 = scmp.ne.s32.totalorder %s69, %s72
    %p78 = scmp.eq.s32.totalorder %s33, 0
    %p79 = por %p77, %p78
    %p80 = scmp.ne.s32.totalorder %s69, %s72
    %p81 = scmp.eq.s32.totalorder %s38, 7
    %p82 = por %p80, %p81
    %p83 = scmp.ne.s32.totalorder %s72, %s73
    %p84 = scmp.eq.s32.totalorder %s38, 0
    %p85 = por %p83, %p84
    %p86 = scmp.ne.s32.totalorder %s72, %s73
    %p87 = scmp.eq.s32.totalorder %s39, 7
    %p88 = por %p86, %p87
    %p90 = scmp.ne.s32.totalorder %s73, %s89
    %p91 = scmp.eq.s32.totalorder %s39, 0
    %p92 = por %p90, %p91
    %s94 = sadd.s32 %s93, 1
    %p97 = scmp.eq.s32.totalorder %s33, 7
    %p98 = scmp.ne.s32.totalorder %s93, %s95
    %p99 = scmp.eq.s32.totalorder %s33, 0
    %p100 = por %p98, %p99
    %p101 = scmp.ne.s32.totalorder %s93, %s95
    %p102 = scmp.eq.s32.totalorder %s38, 7
    %p103 = por %p101, %p102
    %p104 = scmp.ne.s32.totalorder %s95, %s96
    %p105 = scmp.eq.s32.totalorder %s38, 0
    %p106 = por %p104, %p105
    %p107 = scmp.ne.s32.totalorder %s95, %s96
    %p108 = scmp.eq.s32.totalorder %s39, 7
    %p109 = por %p107, %p108
    %p111 = scmp.ne.s32.totalorder %s96, %s110
    %p112 = scmp.eq.s32.totalorder %s39, 0
    %p113 = por %p111, %p112
    %s115 = sadd.s32 %s114, 1
    %p118 = scmp.eq.s32.totalorder %s33, 7
    %p119 = scmp.ne.s32.totalorder %s114, %s116
    %p120 = scmp.eq.s32.totalorder %s33, 0
    %p121 = por %p119, %p120
    %p122 = scmp.ne.s32.totalorder %s114, %s116
    %p123 = scmp.eq.s32.totalorder %s38, 7
    %p124 = por %p122, %p123
    %p125 = scmp.ne.s32.totalorder %s116, %s117
    %p126 = scmp.eq.s32.totalorder %s38, 0
    %p127 = por %p125, %p126
    %p128 = scmp.ne.s32.totalorder %s116, %s117
    %p129 = scmp.eq.s32.totalorder %s39, 7
    %p130 = por %p128, %p129
    %p132 = scmp.ne.s32.totalorder %s117, %s131
    %p133 = scmp.eq.s32.totalorder %s39, 0
    %p134 = por %p132, %p133
    %s136 = sadd.s32 %s135, 1
    %p139 = scmp.eq.s32.totalorder %s33, 7
    %p140 = scmp.ne.s32.totalorder %s135, %s137
    %p141 = scmp.eq.s32.totalorder %s33, 0
    %p142 = por %p140, %p141
    %p143 = scmp.ne.s32.totalorder %s135, %s137
    %p144 = scmp.eq.s32.totalorder %s38, 7
    %p145 = por %p143, %p144
    %p146 = scmp.ne.s32.totalorder %s137, %s138
    %p147 = scmp.eq.s32.totalorder %s38, 0
    %p148 = por %p146, %p147
    %p149 = scmp.ne.s32.totalorder %s137, %s138
    %p150 = scmp.eq.s32.totalorder %s39, 7
    %p151 = por %p149, %p150
    %p153 = scmp.ne.s32.totalorder %s138, %s152
    %p154 = scmp.eq.s32.totalorder %s39, 0
    %p155 = por %p153, %p154
    %s157 = sadd.s32 %s156, 1
    %p160 = scmp.eq.s32.totalorder %s33, 7
    %p161 = scmp.ne.s32.totalorder %s156, %s158
    %p162 = scmp.eq.s32.totalorder %s33, 0
    %p163 = por %p161, %p162
    %p164 = scmp.ne.s32.totalorder %s156, %s158
    %p165 = scmp.eq.s32.totalorder %s38, 7
    %p166 = por %p164, %p165
    %p167 = scmp.ne.s32.totalorder %s158, %s159
    %p168 = scmp.eq.s32.totalorder %s38, 0
    %p169 = por %p167, %p168
    %p170 = scmp.ne.s32.totalorder %s158, %s159
    %p171 = scmp.eq.s32.totalorder %s39, 7
    %p172 = por %p170, %p171
    %p174 = scmp.ne.s32.totalorder %s159, %s173
    %p175 = scmp.eq.s32.totalorder %s39, 0
    %p176 = por %p174, %p175
    %s178 = sadd.s32 %s177, 1
    %p181 = scmp.eq.s32.totalorder %s33, 7
    %p182 = scmp.ne.s32.totalorder %s177, %s179
    %p183 = scmp.eq.s32.totalorder %s33, 0
    %p184 = por %p182, %p183
    %p185 = scmp.ne.s32.totalorder %s177, %s179
    %p186 = scmp.eq.s32.totalorder %s38, 7
    %p187 = por %p185, %p186
    %p188 = scmp.ne.s32.totalorder %s179, %s180
    %p189 = scmp.eq.s32.totalorder %s38, 0
    %p190 = por %p188, %p189
    %p191 = scmp.ne.s32.totalorder %s179, %s180
    %p192 = scmp.eq.s32.totalorder %s39, 7
    %p193 = por %p191, %p192
    %p195 = scmp.ne.s32.totalorder %s180, %s194
    %p196 = scmp.eq.s32.totalorder %s39, 0
    %p197 = por %p195, %p196
    %s199 = sadd.s32 %s198, 1
    %p202 = scmp.eq.s32.totalorder %s33, 7
    %p203 = scmp.ne.s32.totalorder %s198, %s200
    %p204 = scmp.eq.s32.totalorder %s33, 0
    %p205 = por %p203, %p204
    %p206 = scmp.ne.s32.totalorder %s198, %s200
    %p207 = scmp.eq.s32.totalorder %s38, 7
    %p208 = por %p206, %p207
    %p209 = scmp.ne.s32.totalorder %s200, %s201
    %p210 = scmp.eq.s32.totalorder %s38, 0
    %p211 = por %p209, %p210
    %p212 = scmp.ne.s32.totalorder %s200, %s201
    %p213 = scmp.eq.s32.totalorder %s39, 7
    %p214 = por %p212, %p213
    %p216 = scmp.ne.s32.totalorder %s201, %s215
    %p217 = scmp.eq.s32.totalorder %s39, 0
    %p218 = por %p216, %p217
    %s220 = sadd.s32 %s219, 1
    %p223 = scmp.eq.s32.totalorder %s33, 7
    %p224 = scmp.ne.s32.totalorder %s219, %s221
    %p225 = scmp.eq.s32.totalorder %s33, 0
    %p226 = por %p224, %p225
    %p227 = scmp.ne.s32.totalorder %s219, %s221
    %p228 = scmp.eq.s32.totalorder %s38, 7
    %p229 = por %p227, %p228
    %p230 = scmp.ne.s32.totalorder %s221, %s222
    %p231 = scmp.eq.s32.totalorder %s38, 0
    %p232 = por %p230, %p231
    %p233 = scmp.ne.s32.totalorder %s221, %s222
    %p234 = scmp.eq.s32.totalorder %s39, 7
    %p235 = por %p233, %p234
    %p237 = scmp.ne.s32.totalorder %s222, %s236
    %p238 = scmp.eq.s32.totalorder %s39, 0
    %p239 = por %p237, %p238
    %s241 = sadd.s32 %s240, 1
    %p244 = scmp.eq.s32.totalorder %s33, 7
    %p245 = scmp.ne.s32.totalorder %s240, %s242
    %p246 = scmp.eq.s32.totalorder %s33, 0
    %p247 = por %p245, %p246
    %p248 = scmp.ne.s32.totalorder %s240, %s242
    %p249 = scmp.eq.s32.totalorder %s38, 7
    %p250 = por %p248, %p249
    %p251 = scmp.ne.s32.totalorder %s242, %s243
    %p252 = scmp.eq.s32.totalorder %s38, 0
    %p253 = por %p251, %p252
    %p254 = scmp.ne.s32.totalorder %s242, %s243
    %p255 = scmp.eq.s32.totalorder %s39, 7
    %p256 = por %p254, %p255
    %p258 = scmp.ne.s32.totalorder %s243, %s257
    %p259 = scmp.eq.s32.totalorder %s39, 0
    %p260 = por %p258, %p259
    %s262 = sadd.s32 %s261, 1
    %p265 = scmp.eq.s32.totalorder %s33, 7
    %p266 = scmp.ne.s32.totalorder %s261, %s263
    %p267 = scmp.eq.s32.totalorder %s33, 0
    %p268 = por %p266, %p267
    %p269 = scmp.ne.s32.totalorder %s261, %s263
    %p270 = scmp.eq.s32.totalorder %s38, 7
    %p271 = por %p269, %p270
    %p272 = scmp.ne.s32.totalorder %s263, %s264
    %p273 = scmp.eq.s32.totalorder %s38, 0
    %p274 = por %p272, %p273
    %p275 = scmp.ne.s32.totalorder %s263, %s264
    %p276 = scmp.eq.s32.totalorder %s39, 7
    %p277 = por %p275, %p276
    %p279 = scmp.ne.s32.totalorder %s264, %s278
    %p280 = scmp.eq.s32.totalorder %s39, 0
    %p281 = por %p279, %p280
    %s283 = sadd.s32 %s282, 1
    %p286 = scmp.eq.s32.totalorder %s33, 7
    %p287 = scmp.ne.s32.totalorder %s282, %s284
    %p288 = scmp.eq.s32.totalorder %s33, 0
    %p289 = por %p287, %p288
    %p290 = scmp.ne.s32.totalorder %s282, %s284
    %p291 = scmp.eq.s32.totalorder %s38, 7
    %p292 = por %p290, %p291
    %p293 = scmp.ne.s32.totalorder %s284, %s285
    %p294 = scmp.eq.s32.totalorder %s38, 0
    %p295 = por %p293, %p294
    %p296 = scmp.ne.s32.totalorder %s284, %s285
    %p297 = scmp.eq.s32.totalorder %s39, 7
    %p298 = por %p296, %p297
    %p300 = scmp.ne.s32.totalorder %s285, %s299
    %p301 = scmp.eq.s32.totalorder %s39, 0
    %p302 = por %p300, %p301
    %s304 = sadd.s32 %s303, 1
    %p307 = scmp.eq.s32.totalorder %s33, 7
    %p308 = scmp.ne.s32.totalorder %s303, %s305
    %p309 = scmp.eq.s32.totalorder %s33, 0
    %p310 = por %p308, %p309
    %p311 = scmp.ne.s32.totalorder %s303, %s305
    %p312 = scmp.eq.s32.totalorder %s38, 7
    %p313 = por %p311, %p312
    %p314 = scmp.ne.s32.totalorder %s305, %s306
    %p315 = scmp.eq.s32.totalorder %s38, 0
    %p316 = por %p314, %p315
    %p317 = scmp.ne.s32.totalorder %s305, %s306
    %p318 = scmp.eq.s32.totalorder %s39, 7
    %p319 = por %p317, %p318
    %p321 = scmp.ne.s32.totalorder %s306, %s320
    %p322 = scmp.eq.s32.totalorder %s39, 0
    %p323 = por %p321, %p322
    %s325 = sadd.s32 %s324, 1
    %p328 = scmp.eq.s32.totalorder %s33, 7
    %p329 = scmp.ne.s32.totalorder %s324, %s326
    %p330 = scmp.eq.s32.totalorder %s33, 0
    %p331 = por %p329, %p330
    %p332 = scmp.ne.s32.totalorder %s324, %s326
    %p333 = scmp.eq.s32.totalorder %s38, 7
    %p334 = por %p332, %p333
    %p335 = scmp.ne.s32.totalorder %s326, %s327
    %p336 = scmp.eq.s32.totalorder %s38, 0
    %p337 = por %p335, %p336
    %p338 = scmp.ne.s32.totalorder %s326, %s327
    %p339 = scmp.eq.s32.totalorder %s39, 7
    %p340 = por %p338, %p339
    %p342 = scmp.ne.s32.totalorder %s327, %s341
    %p343 = scmp.eq.s32.totalorder %s39, 0
    %p344 = por %p342, %p343
    %s346 = sadd.s32 %s345, 1
    %p349 = scmp.eq.s32.totalorder %s33, 7
    %p350 = scmp.ne.s32.totalorder %s345, %s347
    %p351 = scmp.eq.s32.totalorder %s33, 0
    %p352 = por %p350, %p351
    %p353 = scmp.ne.s32.totalorder %s345, %s347
    %p354 = scmp.eq.s32.totalorder %s38, 7
    %p355 = por %p353, %p354
    %p356 = scmp.ne.s32.totalorder %s347, %s348
    %p357 = scmp.eq.s32.totalorder %s38, 0
    %p358 = por %p356, %p357
    %p359 = scmp.ne.s32.totalorder %s347, %s348
    %p360 = scmp.eq.s32.totalorder %s39, 7
    %p361 = por %p359, %p360
    %p363 = scmp.ne.s32.totalorder %s348, %s362
    %p364 = scmp.eq.s32.totalorder %s39, 0
    %p365 = por %p363, %p364
    %s367 = sadd.s32 %s366, 1
    %p370 = scmp.eq.s32.totalorder %s33, 7
    %p371 = scmp.ne.s32.totalorder %s366, %s368
    %p372 = scmp.eq.s32.totalorder %s33, 0
    %p373 = por %p371, %p372
    %p374 = scmp.ne.s32.totalorder %s366, %s368
    %p375 = scmp.eq.s32.totalorder %s38, 7
    %p376 = por %p374, %p375
    %p377 = scmp.ne.s32.totalorder %s368, %s369
    %p378 = scmp.eq.s32.totalorder %s38, 0
    %p379 = por %p377, %p378
    %p380 = scmp.ne.s32.totalorder %s368, %s369
    %p381 = scmp.eq.s32.totalorder %s39, 7
    %p382 = por %p380, %p381
    %p384 = scmp.ne.s32.totalorder %s369, %s383
    %p385 = scmp.eq.s32.totalorder %s39, 0
    %p386 = por %p384, %p385
    %s388 = sadd.s32 %s387, 1
    %p391 = scmp.eq.s32.totalorder %s33, 7
    %p392 = scmp.ne.s32.totalorder %s387, %s389
    %p393 = scmp.eq.s32.totalorder %s33, 0
    %p394 = por %p392, %p393
    %p395 = scmp.ne.s32.totalorder %s387, %s389
    %p396 = scmp.eq.s32.totalorder %s38, 7
    %p397 = por %p395, %p396
    %p398 = scmp.ne.s32.totalorder %s389, %s390
    %p399 = scmp.eq.s32.totalorder %s38, 0
    %p400 = por %p398, %p399
    %p401 = scmp.ne.s32.totalorder %s389, %s390
    %p402 = scmp.eq.s32.totalorder %s39, 7
    %p403 = por %p401, %p402
    %p405 = scmp.ne.s32.totalorder %s390, %s404
    %p406 = scmp.eq.s32.totalorder %s39, 0
    %p407 = por %p405, %p406
    %s409 = sadd.s32 %s408, 1
    %p412 = scmp.eq.s32.totalorder %s33, 7
    %p413 = scmp.ne.s32.totalorder %s408, %s410
    %p414 = scmp.eq.s32.totalorder %s33, 0
    %p415 = por %p413, %p414
    %p416 = scmp.ne.s32.totalorder %s408, %s410
    %p417 = scmp.eq.s32.totalorder %s38, 7
    %p418 = por %p416, %p417
    %p419 = scmp.ne.s32.totalorder %s410, %s411
    %p420 = scmp.eq.s32.totalorder %s38, 0
    %p421 = por %p419, %p420
    %p422 = scmp.ne.s32.totalorder %s410, %s411
    %p423 = scmp.eq.s32.totalorder %s39, 7
    %p424 = por %p422, %p423
    %p426 = scmp.ne.s32.totalorder %s411, %s425
    %p427 = scmp.eq.s32.totalorder %s39, 0
    %p428 = por %p426, %p427
    %s430 = sadd.s32 %s429, 1
    %p433 = scmp.eq.s32.totalorder %s33, 7
    %p434 = scmp.ne.s32.totalorder %s429, %s431
    %p435 = scmp.eq.s32.totalorder %s33, 0
    %p436 = por %p434, %p435
    %p437 = scmp.ne.s32.totalorder %s429, %s431
    %p438 = scmp.eq.s32.totalorder %s38, 7
    %p439 = por %p437, %p438
    %p440 = scmp.ne.s32.totalorder %s431, %s432
    %p441 = scmp.eq.s32.totalorder %s38, 0
    %p442 = por %p440, %p441
    %p443 = scmp.ne.s32.totalorder %s431, %s432
    %p444 = scmp.eq.s32.totalorder %s39, 7
    %p445 = por %p443, %p444
    %p447 = scmp.ne.s32.totalorder %s432, %s446
    %p448 = scmp.eq.s32.totalorder %s39, 0
    %p449 = por %p447, %p448
    %s451 = sadd.s32 %s450, 1
    %p454 = scmp.eq.s32.totalorder %s33, 7
    %p455 = scmp.ne.s32.totalorder %s450, %s452
    %p456 = scmp.eq.s32.totalorder %s33, 0
    %p457 = por %p455, %p456
    %p458 = scmp.ne.s32.totalorder %s450, %s452
    %p459 = scmp.eq.s32.totalorder %s38, 7
    %p460 = por %p458, %p459
    %p461 = scmp.ne.s32.totalorder %s452, %s453
    %p462 = scmp.eq.s32.totalorder %s38, 0
    %p463 = por %p461, %p462
    %p464 = scmp.ne.s32.totalorder %s452, %s453
    %p465 = scmp.eq.s32.totalorder %s39, 7
    %p466 = por %p464, %p465
    %p468 = scmp.ne.s32.totalorder %s453, %s467
    %p469 = scmp.eq.s32.totalorder %s39, 0
    %p470 = por %p468, %p469
    %s472 = sadd.s32 %s471, 1
    %p475 = scmp.eq.s32.totalorder %s33, 7
    %p476 = scmp.ne.s32.totalorder %s471, %s473
    %p477 = scmp.eq.s32.totalorder %s33, 0
    %p478 = por %p476, %p477
    %p479 = scmp.ne.s32.totalorder %s471, %s473
    %p480 = scmp.eq.s32.totalorder %s38, 7
    %p481 = por %p479, %p480
    %p482 = scmp.ne.s32.totalorder %s473, %s474
    %p483 = scmp.eq.s32.totalorder %s38, 0
    %p484 = por %p482, %p483
    %p485 = scmp.ne.s32.totalorder %s473, %s474
    %p486 = scmp.eq.s32.totalorder %s39, 7
    %p487 = por %p485, %p486
    %p489 = scmp.ne.s32.totalorder %s474, %s488
    %p490 = scmp.eq.s32.totalorder %s39, 0
    %p491 = por %p489, %p490
    %s493 = sadd.s32 %s492, 1
    %p496 = scmp.eq.s32.totalorder %s33, 7
    %p497 = scmp.ne.s32.totalorder %s492, %s494
    %p498 = scmp.eq.s32.totalorder %s33, 0
    %p499 = por %p497, %p498
    %p500 = scmp.ne.s32.totalorder %s492, %s494
    %p501 = scmp.eq.s32.totalorder %s38, 7
    %p502 = por %p500, %p501
    %p503 = scmp.ne.s32.totalorder %s494, %s495
    %p504 = scmp.eq.s32.totalorder %s38, 0
    %p505 = por %p503, %p504
    %p506 = scmp.ne.s32.totalorder %s494, %s495
    %p507 = scmp.eq.s32.totalorder %s39, 7
    %p508 = por %p506, %p507
    %p510 = scmp.ne.s32.totalorder %s495, %s509
    %p511 = scmp.eq.s32.totalorder %s39, 0
    %p512 = por %p510, %p511
    %s514 = sadd.s32 %s513, 1
    %p517 = scmp.eq.s32.totalorder %s33, 7
    %p518 = scmp.ne.s32.totalorder %s513, %s515
    %p519 = scmp.eq.s32.totalorder %s33, 0
    %p520 = por %p518, %p519
    %p521 = scmp.ne.s32.totalorder %s513, %s515
    %p522 = scmp.eq.s32.totalorder %s38, 7
    %p523 = por %p521, %p522
    %p524 = scmp.ne.s32.totalorder %s515, %s516
    %p525 = scmp.eq.s32.totalorder %s38, 0
    %p526 = por %p524, %p525
    %p527 = scmp.ne.s32.totalorder %s515, %s516
    %p528 = scmp.eq.s32.totalorder %s39, 7
    %p529 = por %p527, %p528
    %p531 = scmp.ne.s32.totalorder %s516, %s530
    %p532 = scmp.eq.s32.totalorder %s39, 0
    %p533 = por %p531, %p532
    %s535 = sadd.s32 %s534, 1
    %p538 = scmp.eq.s32.totalorder %s33, 7
    %p539 = scmp.ne.s32.totalorder %s534, %s536
    %p540 = scmp.eq.s32.totalorder %s33, 0
    %p541 = por %p539, %p540
    %p542 = scmp.ne.s32.totalorder %s534, %s536
    %p543 = scmp.eq.s32.totalorder %s38, 7
    %p544 = por %p542, %p543
    %p545 = scmp.ne.s32.totalorder %s536, %s537
    %p546 = scmp.eq.s32.totalorder %s38, 0
    %p547 = por %p545, %p546
    %p548 = scmp.ne.s32.totalorder %s536, %s537
    %p549 = scmp.eq.s32.totalorder %s39, 7
    %p550 = por %p548, %p549
    %p552 = scmp.ne.s32.totalorder %s537, %s551
    %p553 = scmp.eq.s32.totalorder %s39, 0
    %p554 = por %p552, %p553
    %s556 = sadd.s32 %s555, 1
    %p559 = scmp.eq.s32.totalorder %s33, 7
    %p560 = scmp.ne.s32.totalorder %s555, %s557
    %p561 = scmp.eq.s32.totalorder %s33, 0
    %p562 = por %p560, %p561
    %p563 = scmp.ne.s32.totalorder %s555, %s557
    %p564 = scmp.eq.s32.totalorder %s38, 7
    %p565 = por %p563, %p564
    %p566 = scmp.ne.s32.totalorder %s557, %s558
    %p567 = scmp.eq.s32.totalorder %s38, 0
    %p568 = por %p566, %p567
    %p569 = scmp.ne.s32.totalorder %s557, %s558
    %p570 = scmp.eq.s32.totalorder %s39, 7
    %p571 = por %p569, %p570
    %p573 = scmp.ne.s32.totalorder %s558, %s572
    %p574 = scmp.eq.s32.totalorder %s39, 0
    %p575 = por %p573, %p574
    %s577 = sadd.s32 %s576, 1
    %p580 = scmp.eq.s32.totalorder %s33, 7
    %p581 = scmp.ne.s32.totalorder %s576, %s578
    %p582 = scmp.eq.s32.totalorder %s33, 0
    %p583 = por %p581, %p582
    %p584 = scmp.ne.s32.totalorder %s576, %s578
    %p585 = scmp.eq.s32.totalorder %s38, 7
    %p586 = por %p584, %p585
    %p587 = scmp.ne.s32.totalorder %s578, %s579
    %p588 = scmp.eq.s32.totalorder %s38, 0
    %p589 = por %p587, %p588
    %p590 = scmp.ne.s32.totalorder %s578, %s579
    %p591 = scmp.eq.s32.totalorder %s39, 7
    %p592 = por %p590, %p591
    %p594 = scmp.ne.s32.totalorder %s579, %s593
    %p595 = scmp.eq.s32.totalorder %s39, 0
    %p596 = por %p594, %p595
    %s598 = sadd.s32 %s597, 1
    %p601 = scmp.eq.s32.totalorder %s33, 7
    %p602 = scmp.ne.s32.totalorder %s597, %s599
    %p603 = scmp.eq.s32.totalorder %s33, 0
    %p604 = por %p602, %p603
    %p605 = scmp.ne.s32.totalorder %s597, %s599
    %p606 = scmp.eq.s32.totalorder %s38, 7
    %p607 = por %p605, %p606
    %p608 = scmp.ne.s32.totalorder %s599, %s600
    %p609 = scmp.eq.s32.totalorder %s38, 0
    %p610 = por %p608, %p609
    %p611 = scmp.ne.s32.totalorder %s599, %s600
    %p612 = scmp.eq.s32.totalorder %s39, 7
    %p613 = por %p611, %p612
    %p615 = scmp.ne.s32.totalorder %s600, %s614
    %p616 = scmp.eq.s32.totalorder %s39, 0
    %p617 = por %p615, %p616
    %s618 = ssub.s32 %s33, %s40
    %p619 = scmp.eq.s32.totalorder %s618, 0
    %s621 = sadd.s32 %s620, 1
    %s622 = scalar_select %p619, %s620, %s621
    %p625 = pneg %p619
    %p626 = scmp.eq.s32.totalorder %s33, 7
    %p627 = por %p625, %p626
    %p628 = scmp.ne.s32.totalorder %s620, %s623
    %p629 = scmp.eq.s32.totalorder %s33, 0
    %p630 = por %p628, %p629
    %p631 = scmp.ne.s32.totalorder %s620, %s623
    %p632 = scmp.eq.s32.totalorder %s38, 7
    %p633 = por %p631, %p632
    %p634 = scmp.ne.s32.totalorder %s623, %s624
    %p635 = scmp.eq.s32.totalorder %s38, 0
    %p636 = por %p634, %p635
    %p637 = scmp.ne.s32.totalorder %s623, %s624
    %p638 = scmp.eq.s32.totalorder %s39, 7
    %p639 = por %p637, %p638
    %p641 = scmp.ne.s32.totalorder %s624, %s640
    %p642 = scmp.eq.s32.totalorder %s39, 0
    %p643 = por %p641, %p642
    %p644 = scmp.le.s32.totalorder 1, %s33
    %p645 = scmp.lt.s32.totalorder %s33, 9
    %p646 = pnand %p644, %p645
    %p647 = pneg %p646
    // Predicated region
    $region9: #{tpu_custom_call.1} parent=5 // pred_check
      _
    $region10: #{tpu_custom_call.1} parent=5 // pred_check_branch
      %649 = sbr.rel (%p646) target = $region12
    $region11: #{tpu_custom_call.1} parent=5 // pred_region
      %s650 = ssub.s32 %s33, 1
      // Predicated region
      $region13: #{tpu_custom_call.1} parent=11 // pred_check
        %p651 = pneg %p106
      $region14: #{tpu_custom_call.1} parent=11 // pred_check_branch
        %653 = sbr.rel (%p651) target = $region16
      $region15: #{tpu_custom_call.1} parent=11 // pred_region
        _
      $region16: #{tpu_custom_call.1} parent=11 // pred_fallthru
        _
      // Predicated region
      $region17: #{tpu_custom_call.1} parent=11 // pred_check
        %p654 = pneg %p127
      $region18: #{tpu_custom_call.1} parent=11 // pred_check_branch
        %656 = sbr.rel (%p654) target = $region20
      $region19: #{tpu_custom_call.1} parent=11 // pred_region
        _
      $region20: #{tpu_custom_call.1} parent=11 // pred_fallthru
        _
      // Predicated region
      $region21: #{tpu_custom_call.1} parent=11 // pred_check
        %p657 = pneg %p148
      $region22: #{tpu_custom_call.1} parent=11 // pred_check_branch
        %659 = sbr.rel (%p657) target = $region24
      $region23: #{tpu_custom_call.1} parent=11 // pred_region
        _
      $region24: #{tpu_custom_call.1} parent=11 // pred_fallthru
        _
      // Predicated region
      $region25: #{tpu_custom_call.1} parent=11 // pred_check
        %p660 = pneg %p169
      $region26: #{tpu_custom_call.1} parent=11 // pred_check_branch
        %662 = sbr.rel (%p660) target = $region28
      $region27: #{tpu_custom_call.1} parent=11 // pred_region
        _
      $region28: #{tpu_custom_call.1} parent=11 // pred_fallthru
        _
      // Predicated region
      $region29: #{tpu_custom_call.1} parent=11 // pred_check
        %p663 = pneg %p190
      $region30: #{tpu_custom_call.1} parent=11 // pred_check_branch
        %665 = sbr.rel (%p663) target = $region32
      $region31: #{tpu_custom_call.1} parent=11 // pred_region
        _
      $region32: #{tpu_custom_call.1} parent=11 // pred_fallthru
        _
      // Predicated region
      $region33: #{tpu_custom_call.1} parent=11 // pred_check
        %p666 = pneg %p211
      $region34: #{tpu_custom_call.1} parent=11 // pred_check_branch
        %668 = sbr.rel (%p666) target = $region36
      $region35: #{tpu_custom_call.1} parent=11 // pred_region
        _
      $region36: #{tpu_custom_call.1} parent=11 // pred_fallthru
        _
      // Predicated region
      $region37: #{tpu_custom_call.1} parent=11 // pred_check
        %p669 = pneg %p232
      $region38: #{tpu_custom_call.1} parent=11 // pred_check_branch
        %671 = sbr.rel (%p669) target = $region40
      $region39: #{tpu_custom_call.1} parent=11 // pred_region
        _
      $region40: #{tpu_custom_call.1} parent=11 // pred_fallthru
        _
      // Predicated region
      $region41: #{tpu_custom_call.1} parent=11 // pred_check
        %p672 = pneg %p253
      $region42: #{tpu_custom_call.1} parent=11 // pred_check_branch
        %674 = sbr.rel (%p672) target = $region44
      $region43: #{tpu_custom_call.1} parent=11 // pred_region
        _
      $region44: #{tpu_custom_call.1} parent=11 // pred_fallthru
        _
      // Predicated region
      $region45: #{tpu_custom_call.1} parent=11 // pred_check
        %p675 = pneg %p274
      $region46: #{tpu_custom_call.1} parent=11 // pred_check_branch
        %677 = sbr.rel (%p675) target = $region48
      $region47: #{tpu_custom_call.1} parent=11 // pred_region
        _
      $region48: #{tpu_custom_call.1} parent=11 // pred_fallthru
        _
      // Predicated region
      $region49: #{tpu_custom_call.1} parent=11 // pred_check
        %p678 = pneg %p295
      $region50: #{tpu_custom_call.1} parent=11 // pred_check_branch
        %680 = sbr.rel (%p678) target = $region52
      $region51: #{tpu_custom_call.1} parent=11 // pred_region
        _
      $region52: #{tpu_custom_call.1} parent=11 // pred_fallthru
        _
      // Predicated region
      $region53: #{tpu_custom_call.1} parent=11 // pred_check
        %p681 = pneg %p316
      $region54: #{tpu_custom_call.1} parent=11 // pred_check_branch
        %683 = sbr.rel (%p681) target = $region56
      $region55: #{tpu_custom_call.1} parent=11 // pred_region
        _
      $region56: #{tpu_custom_call.1} parent=11 // pred_fallthru
        _
      // Predicated region
      $region57: #{tpu_custom_call.1} parent=11 // pred_check
        %p684 = pneg %p337
      $region58: #{tpu_custom_call.1} parent=11 // pred_check_branch
        %686 = sbr.rel (%p684) target = $region60
      $region59: #{tpu_custom_call.1} parent=11 // pred_region
        _
      $region60: #{tpu_custom_call.1} parent=11 // pred_fallthru
        _
      // Predicated region
      $region61: #{tpu_custom_call.1} parent=11 // pred_check
        %p687 = pneg %p358
      $region62: #{tpu_custom_call.1} parent=11 // pred_check_branch
        %689 = sbr.rel (%p687) target = $region64
      $region63: #{tpu_custom_call.1} parent=11 // pred_region
        _
      $region64: #{tpu_custom_call.1} parent=11 // pred_fallthru
        _
      // Predicated region
      $region65: #{tpu_custom_call.1} parent=11 // pred_check
        %p690 = pneg %p379
      $region66: #{tpu_custom_call.1} parent=11 // pred_check_branch
        %692 = sbr.rel (%p690) target = $region68
      $region67: #{tpu_custom_call.1} parent=11 // pred_region
        _
      $region68: #{tpu_custom_call.1} parent=11 // pred_fallthru
        _
      // Predicated region
      $region69: #{tpu_custom_call.1} parent=11 // pred_check
        %p693 = pneg %p400
      $region70: #{tpu_custom_call.1} parent=11 // pred_check_branch
        %695 = sbr.rel (%p693) target = $region72
      $region71: #{tpu_custom_call.1} parent=11 // pred_region
        _
      $region72: #{tpu_custom_call.1} parent=11 // pred_fallthru
        _
      // Predicated region
      $region73: #{tpu_custom_call.1} parent=11 // pred_check
        %p696 = pneg %p421
      $region74: #{tpu_custom_call.1} parent=11 // pred_check_branch
        %698 = sbr.rel (%p696) target = $region76
      $region75: #{tpu_custom_call.1} parent=11 // pred_region
        _
      $region76: #{tpu_custom_call.1} parent=11 // pred_fallthru
        _
      // Predicated region
      $region77: #{tpu_custom_call.1} parent=11 // pred_check
        %p699 = pneg %p442
      $region78: #{tpu_custom_call.1} parent=11 // pred_check_branch
        %701 = sbr.rel (%p699) target = $region80
      $region79: #{tpu_custom_call.1} parent=11 // pred_region
        _
      $region80: #{tpu_custom_call.1} parent=11 // pred_fallthru
        _
      // Predicated region
      $region81: #{tpu_custom_call.1} parent=11 // pred_check
        %p702 = pneg %p463
      $region82: #{tpu_custom_call.1} parent=11 // pred_check_branch
        %704 = sbr.rel (%p702) target = $region84
      $region83: #{tpu_custom_call.1} parent=11 // pred_region
        _
      $region84: #{tpu_custom_call.1} parent=11 // pred_fallthru
        _
      // Predicated region
      $region85: #{tpu_custom_call.1} parent=11 // pred_check
        %p705 = pneg %p484
      $region86: #{tpu_custom_call.1} parent=11 // pred_check_branch
        %707 = sbr.rel (%p705) target = $region88
      $region87: #{tpu_custom_call.1} parent=11 // pred_region
        _
      $region88: #{tpu_custom_call.1} parent=11 // pred_fallthru
        _
      // Predicated region
      $region89: #{tpu_custom_call.1} parent=11 // pred_check
        %p708 = pneg %p505
      $region90: #{tpu_custom_call.1} parent=11 // pred_check_branch
        %710 = sbr.rel (%p708) target = $region92
      $region91: #{tpu_custom_call.1} parent=11 // pred_region
        _
      $region92: #{tpu_custom_call.1} parent=11 // pred_fallthru
        _
      // Predicated region
      $region93: #{tpu_custom_call.1} parent=11 // pred_check
        %p711 = pneg %p526
      $region94: #{tpu_custom_call.1} parent=11 // pred_check_branch
        %713 = sbr.rel (%p711) target = $region96
      $region95: #{tpu_custom_call.1} parent=11 // pred_region
        _
      $region96: #{tpu_custom_call.1} parent=11 // pred_fallthru
        _
      // Predicated region
      $region97: #{tpu_custom_call.1} parent=11 // pred_check
        %p714 = pneg %p547
      $region98: #{tpu_custom_call.1} parent=11 // pred_check_branch
        %716 = sbr.rel (%p714) target = $region100
      $region99: #{tpu_custom_call.1} parent=11 // pred_region
        _
      $region100: #{tpu_custom_call.1} parent=11 // pred_fallthru
        _
      // Predicated region
      $region101: #{tpu_custom_call.1} parent=11 // pred_check
        %p717 = pneg %p568
      $region102: #{tpu_custom_call.1} parent=11 // pred_check_branch
        %719 = sbr.rel (%p717) target = $region104
      $region103: #{tpu_custom_call.1} parent=11 // pred_region
        _
      $region104: #{tpu_custom_call.1} parent=11 // pred_fallthru
        _
      // Predicated region
      $region105: #{tpu_custom_call.1} parent=11 // pred_check
        %p720 = pneg %p589
      $region106: #{tpu_custom_call.1} parent=11 // pred_check_branch
        %722 = sbr.rel (%p720) target = $region108
      $region107: #{tpu_custom_call.1} parent=11 // pred_region
        _
      $region108: #{tpu_custom_call.1} parent=11 // pred_fallthru
        _
      // Predicated region
      $region109: #{tpu_custom_call.1} parent=11 // pred_check
        %p723 = pneg %p610
      $region110: #{tpu_custom_call.1} parent=11 // pred_check_branch
        %725 = sbr.rel (%p723) target = $region112
      $region111: #{tpu_custom_call.1} parent=11 // pred_region
        _
      $region112: #{tpu_custom_call.1} parent=11 // pred_fallthru
        _
    $region12: #{tpu_custom_call.1} parent=5 // pred_fallthru
      _
    %p726 = scmp.lt.s32.totalorder %s33, 8
    // Predicated region
    $region113: #{tpu_custom_call.1} parent=5 // pred_check
      %p727 = pneg %p726
    $region114: #{tpu_custom_call.1} parent=5 // pred_check_branch
      %729 = sbr.rel (%p727) target = $region116
    $region115: #{tpu_custom_call.1} parent=5 // pred_region
      // Predicated region
      $region117: #{tpu_custom_call.1} parent=115 // pred_check
        %p730 = pneg %p53
      $region118: #{tpu_custom_call.1} parent=115 // pred_check_branch
        %732 = sbr.rel (%p730) target = $region120
      $region119: #{tpu_custom_call.1} parent=115 // pred_region
        %s733 = smul.u32 32, %s33
        %p734 = scmp.lt.s32.totalorder %s733, 255
        %s735 = scalar_select %p734, %s733, 255
        %s736 = smul.addr %s735, 2
        %s737 = smul.addr %s736, 8
        %s738 = scalar_lea.vmem %s0, %s737
        %s739 = smul.u32 32, %s33
      $region120: #{tpu_custom_call.1} parent=115 // pred_fallthru
        _
      // Predicated region
      $region121: #{tpu_custom_call.1} parent=115 // pred_check
        %p740 = pneg %p79
      $region122: #{tpu_custom_call.1} parent=115 // pred_check_branch
        %742 = sbr.rel (%p740) target = $region124
      $region123: #{tpu_custom_call.1} parent=115 // pred_region
        %s743 = smul.u32 32, %s33
        %p744 = scmp.lt.s32.totalorder %s743, 255
        %s745 = scalar_select %p744, %s743, 255
        %s746 = smul.addr %s745, 8
        %s747 = scalar_lea.vmem %s1, %s746
        %s748 = smul.u32 32, %s33
      $region124: #{tpu_custom_call.1} parent=115 // pred_fallthru
        _
    $region116: #{tpu_custom_call.1} parent=5 // pred_fallthru
      _
    %p749 = scmp.le.s32.totalorder 1, %s33
    %p750 = scmp.lt.s32.totalorder %s33, 9
    %p751 = pnand %p749, %p750
    %p752 = pneg %p751
    // Predicated region
    $region125: #{tpu_custom_call.1} parent=5 // pred_check
      _
    $region126: #{tpu_custom_call.1} parent=5 // pred_check_branch
      %754 = sbr.rel (%p751) target = $region128
    $region127: #{tpu_custom_call.1} parent=5 // pred_region
      %s755 = ssub.s32 %s33, 1
      %s756 = smul.u32 32, %s38
      %p757 = scmp.lt.s32.totalorder %s756, 255
      %s758 = scalar_select %p757, %s756, 255
      %s759 = smul.addr %s758, 2
      %s760 = smul.addr %s759, 8
      %s761 = scalar_lea.vmem %s0, %s760
      %p762 = pneg %p59
      %p763 = pneg %p56
      %s764 = smul.u32 32, %s38
      %p765 = scmp.lt.s32.totalorder %s764, 255
      %s766 = scalar_select %p765, %s764, 255
      %s767 = smul.addr %s766, 8
      %s768 = scalar_lea.vmem %s1, %s767
      %p769 = pneg %p85
      %p770 = pneg %p82
      %p771 = pneg %p106
      %p772 = pneg %p103
      %p773 = pneg %p127
      %p774 = pneg %p124
      %p775 = pneg %p148
      %p776 = pneg %p145
      %p777 = pneg %p169
      %p778 = pneg %p166
      %p779 = pneg %p190
      %p780 = pneg %p187
      %p781 = pneg %p211
      %p782 = pneg %p208
      %p783 = pneg %p232
      %p784 = pneg %p229
      %p785 = pneg %p253
      %p786 = pneg %p250
      %p787 = pneg %p274
      %p788 = pneg %p271
      %p789 = pneg %p295
      %p790 = pneg %p292
      %p791 = pneg %p316
      %p792 = pneg %p313
      %p793 = pneg %p337
      %p794 = pneg %p334
      %p795 = pneg %p358
      %p796 = pneg %p355
      %p797 = pneg %p379
      %p798 = pneg %p376
      %p799 = pneg %p400
      %p800 = pneg %p397
      %p801 = pneg %p421
      %p802 = pneg %p418
      %p803 = pneg %p442
      %p804 = pneg %p439
      %p805 = pneg %p463
      %p806 = pneg %p460
      %p807 = pneg %p484
      %p808 = pneg %p481
      %p809 = pneg %p505
      %p810 = pneg %p502
      %p811 = pneg %p526
      %p812 = pneg %p523
      %p813 = pneg %p547
      %p814 = pneg %p544
      %p815 = pneg %p568
      %p816 = pneg %p565
      %p817 = pneg %p589
      %p818 = pneg %p586
      %p819 = pneg %p610
      %p820 = pneg %p607
      %p821 = pneg %p636
      %p822 = pneg %p633
      %s823 = smul.u32 32, %s38
      %p824 = scmp.lt.s32.totalorder %s823, 255
      %s825 = scalar_select %p824, %s823, 255
      %s826 = smul.addr %s825, 8
      %s827 = scalar_lea.vmem %s27, %s826
      %s828 = smul.u32 32, %s38
      %p829 = scmp.lt.s32.totalorder %s828, 255
      %s830 = scalar_select %p829, %s828, 255
      %s831 = smul.addr %s830, 2
      %s832 = smul.addr %s831, 8
      %s833 = scalar_lea.vmem %s0, %s832
      %s834 = smul.u32 32, %s38
      %s835 = smul.u32 32, %s38
      %p836 = scmp.lt.s32.totalorder %s835, 255
      %s837 = scalar_select %p836, %s835, 255
      %s838 = smul.addr %s837, 8
      %s839 = scalar_lea.vmem %s1, %s838
      %s840 = smul.u32 32, %s38
      %s841 = smul.u32 32, %s38
      %p842 = scmp.lt.s32.totalorder %s841, 255
      %s843 = scalar_select %p842, %s841, 255
      %s844 = smul.addr %s843, 8
      %s845 = scalar_lea.vmem %s27, %s844
      %s846 = smul.u32 32, %s38
      %v847 = vld [vmem:[%s833] sm:$0xff]
      %v848 = vld [vmem:[%s833 + $0x8] sm:$0xff]
      %v849 = vld [vmem:[%s833 + $0x10] sm:$0xff]
      %v850 = vld [vmem:[%s833 + $0x18] sm:$0xff]
      %v851 = vld [vmem:[%s833 + $0x20] sm:$0xff]
      %v852 = vld [vmem:[%s833 + $0x28] sm:$0xff]
      %v853 = vld [vmem:[%s833 + $0x30] sm:$0xff]
      %v854 = vld [vmem:[%s833 + $0x38] sm:$0xff]
      %v855 = vld [vmem:[%s833 + $0x40] sm:$0xff]
      %v856 = vld [vmem:[%s833 + $0x48] sm:$0xff]
      %v857 = vld [vmem:[%s833 + $0x50] sm:$0xff]
      %v858 = vld [vmem:[%s833 + $0x58] sm:$0xff]
      %v859 = vld [vmem:[%s833 + $0x60] sm:$0xff]
      %v860 = vld [vmem:[%s833 + $0x68] sm:$0xff]
      %v861 = vld [vmem:[%s833 + $0x70] sm:$0xff]
      %v862 = vld [vmem:[%s833 + $0x78] sm:$0xff]
      %v863 = vld [vmem:[%s833 + $0x80] sm:$0xff]
      %v864 = vld [vmem:[%s833 + $0x88] sm:$0xff]
      %v865 = vld [vmem:[%s833 + $0x90] sm:$0xff]
      %v866 = vld [vmem:[%s833 + $0x98] sm:$0xff]
      %v867 = vld [vmem:[%s833 + $0xa0] sm:$0xff]
      %v868 = vld [vmem:[%s833 + $0xa8] sm:$0xff]
      %v869 = vld [vmem:[%s833 + $0xb0] sm:$0xff]
      %v870 = vld [vmem:[%s833 + $0xb8] sm:$0xff]
      %v871 = vld [vmem:[%s833 + $0xc0] sm:$0xff]
      %v872 = vld [vmem:[%s833 + $0xc8] sm:$0xff]
      %v873 = vld [vmem:[%s833 + $0xd0] sm:$0xff]
      %v874 = vld [vmem:[%s833 + $0xd8] sm:$0xff]
      %v875 = vld [vmem:[%s833 + $0xe0] sm:$0xff]
      %v876 = vld [vmem:[%s833 + $0xe8] sm:$0xff]
      %v877 = vld [vmem:[%s833 + $0xf0] sm:$0xff]
      %v878 = vld [vmem:[%s833 + $0xf8] sm:$0xff]
      %v879 = vld [vmem:[%s833 + $0x100] sm:$0xff]
      %v880 = vld [vmem:[%s833 + $0x108] sm:$0xff]
      %v881 = vld [vmem:[%s833 + $0x110] sm:$0xff]
      %v882 = vld [vmem:[%s833 + $0x118] sm:$0xff]
      %v883 = vld [vmem:[%s833 + $0x120] sm:$0xff]
      %v884 = vld [vmem:[%s833 + $0x128] sm:$0xff]
      %v885 = vld [vmem:[%s833 + $0x130] sm:$0xff]
      %v886 = vld [vmem:[%s833 + $0x138] sm:$0xff]
      %v887 = vld [vmem:[%s833 + $0x140] sm:$0xff]
      %v888 = vld [vmem:[%s833 + $0x148] sm:$0xff]
      %v889 = vld [vmem:[%s833 + $0x150] sm:$0xff]
      %v890 = vld [vmem:[%s833 + $0x158] sm:$0xff]
      %v891 = vld [vmem:[%s833 + $0x160] sm:$0xff]
      %v892 = vld [vmem:[%s833 + $0x168] sm:$0xff]
      %v893 = vld [vmem:[%s833 + $0x170] sm:$0xff]
      %v894 = vld [vmem:[%s833 + $0x178] sm:$0xff]
      %v895 = vld [vmem:[%s833 + $0x180] sm:$0xff]
      %v896 = vld [vmem:[%s833 + $0x188] sm:$0xff]
      %v897 = vld [vmem:[%s833 + $0x190] sm:$0xff]
      %v898 = vld [vmem:[%s833 + $0x198] sm:$0xff]
      %v899 = vld [vmem:[%s833 + $0x1a0] sm:$0xff]
      %v900 = vld [vmem:[%s833 + $0x1a8] sm:$0xff]
      %v901 = vld [vmem:[%s833 + $0x1b0] sm:$0xff]
      %v902 = vld [vmem:[%s833 + $0x1b8] sm:$0xff]
      %v903 = vld [vmem:[%s833 + $0x1c0] sm:$0xff]
      %v904 = vld [vmem:[%s833 + $0x1c8] sm:$0xff]
      %v905 = vld [vmem:[%s833 + $0x1d0] sm:$0xff]
      %v906 = vld [vmem:[%s833 + $0x1d8] sm:$0xff]
      %v907 = vld [vmem:[%s833 + $0x1e0] sm:$0xff]
      %v908 = vld [vmem:[%s833 + $0x1e8] sm:$0xff]
      %v909 = vld [vmem:[%s833 + $0x1f0] sm:$0xff]
      %v910 = vld [vmem:[%s833 + $0x1f8] sm:$0xff]
      %v911 = vld [vmem:[%s839] sm:$0xff]
      %v912 = vld [vmem:[%s839 + $0x8] sm:$0xff]
      %v913 = vld [vmem:[%s839 + $0x10] sm:$0xff]
      %v914 = vld [vmem:[%s839 + $0x18] sm:$0xff]
      %v915 = vld [vmem:[%s839 + $0x20] sm:$0xff]
      %v916 = vld [vmem:[%s839 + $0x28] sm:$0xff]
      %v917 = vld [vmem:[%s839 + $0x30] sm:$0xff]
      %v918 = vld [vmem:[%s839 + $0x38] sm:$0xff]
      %v919 = vld [vmem:[%s839 + $0x40] sm:$0xff]
      %v920 = vld [vmem:[%s839 + $0x48] sm:$0xff]
      %v921 = vld [vmem:[%s839 + $0x50] sm:$0xff]
      %v922 = vld [vmem:[%s839 + $0x58] sm:$0xff]
      %v923 = vld [vmem:[%s839 + $0x60] sm:$0xff]
      %v924 = vld [vmem:[%s839 + $0x68] sm:$0xff]
      %v925 = vld [vmem:[%s839 + $0x70] sm:$0xff]
      %v926 = vld [vmem:[%s839 + $0x78] sm:$0xff]
      %v927 = vld [vmem:[%s839 + $0x80] sm:$0xff]
      %v928 = vld [vmem:[%s839 + $0x88] sm:$0xff]
      %v929 = vld [vmem:[%s839 + $0x90] sm:$0xff]
      %v930 = vld [vmem:[%s839 + $0x98] sm:$0xff]
      %v931 = vld [vmem:[%s839 + $0xa0] sm:$0xff]
      %v932 = vld [vmem:[%s839 + $0xa8] sm:$0xff]
      %v933 = vld [vmem:[%s839 + $0xb0] sm:$0xff]
      %v934 = vld [vmem:[%s839 + $0xb8] sm:$0xff]
      %v935 = vld [vmem:[%s839 + $0xc0] sm:$0xff]
      %v936 = vld [vmem:[%s839 + $0xc8] sm:$0xff]
      %v937 = vld [vmem:[%s839 + $0xd0] sm:$0xff]
      %v938 = vld [vmem:[%s839 + $0xd8] sm:$0xff]
      %v939 = vld [vmem:[%s839 + $0xe0] sm:$0xff]
      %v940 = vld [vmem:[%s839 + $0xe8] sm:$0xff]
      %v941 = vld [vmem:[%s839 + $0xf0] sm:$0xff]
      %v942 = vld [vmem:[%s839 + $0xf8] sm:$0xff]
      %v943 = vld [vmem:[%s2] sm:$0xff]
      %v944 = vld [vmem:[%s2 + $0x8] sm:$0xff]
      %v945 = vld [vmem:[%s2 + $0x10] sm:$0xff]
      %v946 = vld [vmem:[%s2 + $0x18] sm:$0xff]
      %v947 = vld [vmem:[%s2 + $0x20] sm:$0xff]
      %v948 = vld [vmem:[%s2 + $0x28] sm:$0xff]
      %v949 = vld [vmem:[%s2 + $0x30] sm:$0xff]
      %v950 = vld [vmem:[%s2 + $0x38] sm:$0xff]
      %v951 = vld [vmem:[%s2 + $0x40] sm:$0xff]
      %v952 = vld [vmem:[%s2 + $0x48] sm:$0xff]
      %v953 = vld [vmem:[%s2 + $0x50] sm:$0xff]
      %v954 = vld [vmem:[%s2 + $0x58] sm:$0xff]
      %v955 = vld [vmem:[%s2 + $0x60] sm:$0xff]
      %v956 = vld [vmem:[%s2 + $0x68] sm:$0xff]
      %v957 = vld [vmem:[%s2 + $0x70] sm:$0xff]
      %v958 = vld [vmem:[%s2 + $0x78] sm:$0xff]
      %v959 = vld [vmem:[%s2 + $0x80] sm:$0xff]
      %v960 = vld [vmem:[%s2 + $0x88] sm:$0xff]
      %v961 = vld [vmem:[%s2 + $0x90] sm:$0xff]
      %v962 = vld [vmem:[%s2 + $0x98] sm:$0xff]
      %v963 = vld [vmem:[%s2 + $0xa0] sm:$0xff]
      %v964 = vld [vmem:[%s2 + $0xa8] sm:$0xff]
      %v965 = vld [vmem:[%s2 + $0xb0] sm:$0xff]
      %v966 = vld [vmem:[%s2 + $0xb8] sm:$0xff]
      %v967 = vld [vmem:[%s3] sm:$0x1]
      %v969 = vlaneseq
      %v970 = vshrl.u32 %v969, 7
      %v971 = vsub.s32 0, %v970
      %v972 = vrot.slane %v967, %v971
      %vm974 = vcmask 523264
      %v976 = vsel %vm974, %v848, 0
      %v979 = vsel %vm974, %v850, 0
      %v982 = vsel %vm974, %v852, 0
      %v985 = vsel %vm974, %v854, 0
      %v988 = vsel %vm974, %v856, 0
      %v991 = vsel %vm974, %v858, 0
      %v994 = vsel %vm974, %v860, 0
      %v997 = vsel %vm974, %v862, 0
      %v1000 = vsel %vm974, %v864, 0
      %v1003 = vsel %vm974, %v866, 0
      %v1006 = vsel %vm974, %v868, 0
      %v1009 = vsel %vm974, %v870, 0
      %v1012 = vsel %vm974, %v872, 0
      %v1015 = vsel %vm974, %v874, 0
      %v1018 = vsel %vm974, %v876, 0
      %v1021 = vsel %vm974, %v878, 0
      %v1024 = vsel %vm974, %v880, 0
      %v1027 = vsel %vm974, %v882, 0
      %v1030 = vsel %vm974, %v884, 0
      %v1033 = vsel %vm974, %v886, 0
      %v1036 = vsel %vm974, %v888, 0
      %v1039 = vsel %vm974, %v890, 0
      %v1042 = vsel %vm974, %v892, 0
      %v1045 = vsel %vm974, %v894, 0
      %v1048 = vsel %vm974, %v896, 0
      %v1051 = vsel %vm974, %v898, 0
      %v1054 = vsel %vm974, %v900, 0
      %v1057 = vsel %vm974, %v902, 0
      %v1060 = vsel %vm974, %v904, 0
      %v1063 = vsel %vm974, %v906, 0
      %v1066 = vsel %vm974, %v908, 0
      %v1069 = vsel %vm974, %v910, 0
      %1071 = vmatprep.subr.mxu0 0.0
      %1072 = vmatpush1.msra.mxu0 %v943
      %1073 = vmatprep.subr.mxu0 0.0
      %1074 = vmatpush1.msra.mxu0 %v944
      %1075 = vmatprep.subr.mxu0 0.0
      %1076 = vmatpush1.msra.mxu0 %v945
      %1077 = vmatprep.subr.mxu0 0.0
      %1078 = vmatpush1.msra.mxu0 %v946
      %1079 = vmatprep.subr.mxu0 0.0
      %1080 = vmatpush1.msra.mxu0 %v947
      %1081 = vmatprep.subr.mxu0 0.0
      %1082 = vmatpush1.msra.mxu0 %v948
      %1083 = vmatprep.subr.mxu0 0.0
      %1084 = vmatpush1.msra.mxu0 %v949
      %1085 = vmatprep.subr.mxu0 0.0
      %1086 = vmatpush1.msra.mxu0 %v950
      %1087 = vmatprep.subr.mxu0 0.0
      %1088 = vmatpush1.msra.mxu0 %v951
      %1089 = vmatprep.subr.mxu0 0.0
      %1090 = vmatpush1.msra.mxu0 %v952
      %1091 = vmatprep.subr.mxu0 0.0
      %1092 = vmatpush1.msra.mxu0 %v953
      %1093 = vmatprep.subr.mxu0 0.0
      %1094 = vmatpush1.msra.mxu0 %v954
      %1095 = vmatprep.subr.mxu0 0.0
      %1096 = vmatpush1.msra.mxu0 %v955
      %1097 = vmatprep.subr.mxu0 0.0
      %1098 = vmatpush1.msra.mxu0 %v956
      %1099 = vmatprep.subr.mxu0 0.0
      %1100 = vmatpush1.msra.mxu0 %v957
      %1101 = vmatprep.subr.mxu0 0.0
      %1102 = vmatpush1.msra.mxu0 %v958
      %1103 = vmatprep.subr.mxu0 0.0
      %1104 = vmatpush1.msra.mxu0 %v959
      %1105 = vmatprep.subr.mxu0 0.0
      %1106 = vmatpush1.msra.mxu0 %v960
      %1107 = vmatprep.subr.mxu0 0.0
      %1108 = vmatpush1.msra.mxu0 %v961
      %1109 = vmatprep.subr.mxu0 0.0
      %1110 = vmatpush1.msra.mxu0 %v962
      %1111 = vmatprep.subr.mxu0 0.0
      %1112 = vmatpush1.msra.mxu0 %v963
      %1113 = vmatprep.subr.mxu0 0.0
      %1114 = vmatpush1.msra.mxu0 %v964
      %1115 = vmatprep.subr.mxu0 0.0
      %1116 = vmatpush1.msra.mxu0 %v965
      %1117 = vmatprep.subr.mxu0 0.0
      %1118 = vmatpush1.msra.mxu0 %v966
      %1119 = vmatprep.subr.mxu0 0.0
      %1120 = vmatpush1.msra.mxu0 0.0
      %1121 = vmatprep.subr.mxu0 0.0
      %1122 = vmatpush1.msra.mxu0 0.0
      %1123 = vmatprep.subr.mxu0 0.0
      %1124 = vmatpush1.msra.mxu0 0.0
      %1125 = vmatprep.subr.mxu0 0.0
      %1126 = vmatpush1.msra.mxu0 0.0
      %1127 = vmatprep.subr.mxu0 0.0
      %1128 = vmatpush1.msra.mxu0 0.0
      %1129 = vmatprep.subr.mxu0 0.0
      %1130 = vmatpush1.msra.mxu0 0.0
      %1131 = vmatprep.subr.mxu0 0.0
      %1132 = vmatpush1.msra.mxu0 0.0
      %1133 = vmatprep.subr.mxu0 0.0
      %1134 = vmatpush1.msra.mxu0 0.0
      %1135 = vmatprep.mubr.f32.mxu0 %v976
      %1136 = vmatmul.mubr.f32.gmra.mrb[0].mxu0 %v847
      %v1137 = vpop.f32.mrb[0].mxu0
      %v1138 = vadd.f32 %v972, %v1137
      %v1139 = vpop.f32.mrb[0].mxu0
      %1140 = vmatprep.mubr.f32.mxu0 %v979
      %1141 = vmatmul.mubr.f32.gmra.mrb[0].mxu0 %v849
      %v1142 = vpop.f32.mrb[0].mxu0
      %v1143 = vadd.f32 %v972, %v1142
      %v1144 = vpop.f32.mrb[0].mxu0
      %1145 = vmatprep.mubr.f32.mxu0 %v982
      %1146 = vmatmul.mubr.f32.gmra.mrb[0].mxu0 %v851
      %v1147 = vpop.f32.mrb[0].mxu0
      %v1148 = vadd.f32 %v972, %v1147
      %v1149 = vpop.f32.mrb[0].mxu0
      %1150 = vmatprep.mubr.f32.mxu0 %v985
      %1151 = vmatmul.mubr.f32.gmra.mrb[0].mxu0 %v853
      %v1152 = vpop.f32.mrb[0].mxu0
      %v1153 = vadd.f32 %v972, %v1152
      %v1154 = vpop.f32.mrb[0].mxu0
      %1155 = vmatprep.mubr.f32.mxu0 %v988
      %1156 = vmatmul.mubr.f32.gmra.mrb[0].mxu0 %v855
      %v1157 = vpop.f32.mrb[0].mxu0
      %v1158 = vadd.f32 %v972, %v1157
      %v1159 = vpop.f32.mrb[0].mxu0
      %1160 = vmatprep.mubr.f32.mxu0 %v991
      %1161 = vmatmul.mubr.f32.gmra.mrb[0].mxu0 %v857
      %v1162 = vpop.f32.mrb[0].mxu0
      %v1163 = vadd.f32 %v972, %v1162
      %v1164 = vpop.f32.mrb[0].mxu0
      %1165 = vmatprep.mubr.f32.mxu0 %v994
      %1166 = vmatmul.mubr.f32.gmra.mrb[0].mxu0 %v859
      %v1167 = vpop.f32.mrb[0].mxu0
      %v1168 = vadd.f32 %v972, %v1167
      %v1169 = vpop.f32.mrb[0].mxu0
      %1170 = vmatprep.mubr.f32.mxu0 %v997
      %1171 = vmatmul.mubr.f32.gmra.mrb[0].mxu0 %v861
      %v1172 = vpop.f32.mrb[0].mxu0
      %v1173 = vadd.f32 %v972, %v1172
      %v1174 = vpop.f32.mrb[0].mxu0
      %1175 = vmatprep.mubr.f32.mxu0 %v1000
      %1176 = vmatmul.mubr.f32.gmra.mrb[0].mxu0 %v863
      %v1177 = vpop.f32.mrb[0].mxu0
      %v1178 = vadd.f32 %v972, %v1177
      %v1179 = vpop.f32.mrb[0].mxu0
      %1180 = vmatprep.mubr.f32.mxu0 %v1003
      %1181 = vmatmul.mubr.f32.gmra.mrb[0].mxu0 %v865
      %v1182 = vpop.f32.mrb[0].mxu0
      %v1183 = vadd.f32 %v972, %v1182
      %v1184 = vpop.f32.mrb[0].mxu0
      %1185 = vmatprep.mubr.f32.mxu0 %v1006
      %1186 = vmatmul.mubr.f32.gmra.mrb[0].mxu0 %v867
      %v1187 = vpop.f32.mrb[0].mxu0
      %v1188 = vadd.f32 %v972, %v1187
      %v1189 = vpop.f32.mrb[0].mxu0
      %1190 = vmatprep.mubr.f32.mxu0 %v1009
      %1191 = vmatmul.mubr.f32.gmra.mrb[0].mxu0 %v869
      %v1192 = vpop.f32.mrb[0].mxu0
      %v1193 = vadd.f32 %v972, %v1192
      %v1194 = vpop.f32.mrb[0].mxu0
      %1195 = vmatprep.mubr.f32.mxu0 %v1012
      %1196 = vmatmul.mubr.f32.gmra.mrb[0].mxu0 %v871
      %v1197 = vpop.f32.mrb[0].mxu0
      %v1198 = vadd.f32 %v972, %v1197
      %v1199 = vpop.f32.mrb[0].mxu0
      %1200 = vmatprep.mubr.f32.mxu0 %v1015
      %1201 = vmatmul.mubr.f32.gmra.mrb[0].mxu0 %v873
      %v1202 = vpop.f32.mrb[0].mxu0
      %v1203 = vadd.f32 %v972, %v1202
      %v1204 = vpop.f32.mrb[0].mxu0
      %1205 = vmatprep.mubr.f32.mxu0 %v1018
      %1206 = vmatmul.mubr.f32.gmra.mrb[0].mxu0 %v875
      %v1207 = vpop.f32.mrb[0].mxu0
      %v1208 = vadd.f32 %v972, %v1207
      %v1209 = vpop.f32.mrb[0].mxu0
      %1210 = vmatprep.mubr.f32.mxu0 %v1021
      %1211 = vmatmul.mubr.f32.gmra.mrb[0].mxu0 %v877
      %v1212 = vpop.f32.mrb[0].mxu0
      %v1213 = vadd.f32 %v972, %v1212
      %v1214 = vpop.f32.mrb[0].mxu0
      %1215 = vmatprep.mubr.f32.mxu0 %v1024
      %1216 = vmatmul.mubr.f32.gmra.mrb[0].mxu0 %v879
      %v1217 = vpop.f32.mrb[0].mxu0
      %v1218 = vadd.f32 %v972, %v1217
      %v1219 = vpop.f32.mrb[0].mxu0
      %1220 = vmatprep.mubr.f32.mxu0 %v1027
      %1221 = vmatmul.mubr.f32.gmra.mrb[0].mxu0 %v881
      %v1222 = vpop.f32.mrb[0].mxu0
      %v1223 = vadd.f32 %v972, %v1222
      %v1224 = vpop.f32.mrb[0].mxu0
      %1225 = vmatprep.mubr.f32.mxu0 %v1030
      %1226 = vmatmul.mubr.f32.gmra.mrb[0].mxu0 %v883
      %v1227 = vpop.f32.mrb[0].mxu0
      %v1228 = vadd.f32 %v972, %v1227
      %v1229 = vpop.f32.mrb[0].mxu0
      %1230 = vmatprep.mubr.f32.mxu0 %v1033
      %1231 = vmatmul.mubr.f32.gmra.mrb[0].mxu0 %v885
      %v1232 = vpop.f32.mrb[0].mxu0
      %v1233 = vadd.f32 %v972, %v1232
      %v1234 = vpop.f32.mrb[0].mxu0
      %1235 = vmatprep.mubr.f32.mxu0 %v1036
      %1236 = vmatmul.mubr.f32.gmra.mrb[0].mxu0 %v887
      %v1237 = vpop.f32.mrb[0].mxu0
      %v1238 = vadd.f32 %v972, %v1237
      %v1239 = vpop.f32.mrb[0].mxu0
      %1240 = vmatprep.mubr.f32.mxu0 %v1039
      %1241 = vmatmul.mubr.f32.gmra.mrb[0].mxu0 %v889
      %v1242 = vpop.f32.mrb[0].mxu0
      %v1243 = vadd.f32 %v972, %v1242
      %v1244 = vpop.f32.mrb[0].mxu0
      %1245 = vmatprep.mubr.f32.mxu0 %v1042
      %1246 = vmatmul.mubr.f32.gmra.mrb[0].mxu0 %v891
      %v1247 = vpop.f32.mrb[0].mxu0
      %v1248 = vadd.f32 %v972, %v1247
      %v1249 = vpop.f32.mrb[0].mxu0
      %1250 = vmatprep.mubr.f32.mxu0 %v1045
      %1251 = vmatmul.mubr.f32.gmra.mrb[0].mxu0 %v893
      %v1252 = vpop.f32.mrb[0].mxu0
      %v1253 = vadd.f32 %v972, %v1252
      %v1254 = vpop.f32.mrb[0].mxu0
      %1255 = vmatprep.mubr.f32.mxu0 %v1048
      %1256 = vmatmul.mubr.f32.gmra.mrb[0].mxu0 %v895
      %v1257 = vpop.f32.mrb[0].mxu0
      %v1258 = vadd.f32 %v972, %v1257
      %v1259 = vpop.f32.mrb[0].mxu0
      %1260 = vmatprep.mubr.f32.mxu0 %v1051
      %1261 = vmatmul.mubr.f32.gmra.mrb[0].mxu0 %v897
      %v1262 = vpop.f32.mrb[0].mxu0
      %v1263 = vadd.f32 %v972, %v1262
      %v1264 = vpop.f32.mrb[0].mxu0
      %1265 = vmatprep.mubr.f32.mxu0 %v1054
      %1266 = vmatmul.mubr.f32.gmra.mrb[0].mxu0 %v899
      %v1267 = vpop.f32.mrb[0].mxu0
      %v1268 = vadd.f32 %v972, %v1267
      %v1269 = vpop.f32.mrb[0].mxu0
      %1270 = vmatprep.mubr.f32.mxu0 %v1057
      %1271 = vmatmul.mubr.f32.gmra.mrb[0].mxu0 %v901
      %v1272 = vpop.f32.mrb[0].mxu0
      %v1273 = vadd.f32 %v972, %v1272
      %v1274 = vpop.f32.mrb[0].mxu0
      %1275 = vmatprep.mubr.f32.mxu0 %v1060
      %1276 = vmatmul.mubr.f32.gmra.mrb[0].mxu0 %v903
      %v1277 = vpop.f32.mrb[0].mxu0
      %v1278 = vadd.f32 %v972, %v1277
      %v1279 = vpop.f32.mrb[0].mxu0
      %1280 = vmatprep.mubr.f32.mxu0 %v1063
      %1281 = vmatmul.mubr.f32.gmra.mrb[0].mxu0 %v905
      %v1282 = vpop.f32.mrb[0].mxu0
      %v1283 = vadd.f32 %v972, %v1282
      %v1284 = vpop.f32.mrb[0].mxu0
      %1285 = vmatprep.mubr.f32.mxu0 %v1066
      %1286 = vmatmul.mubr.f32.gmra.mrb[0].mxu0 %v907
      %v1287 = vpop.f32.mrb[0].mxu0
      %v1288 = vadd.f32 %v972, %v1287
      %v1289 = vpop.f32.mrb[0].mxu0
      %1290 = vmatprep.mubr.f32.mxu0 %v1069
      %1291 = vmatmul.mubr.f32.gmra.mrb[0].mxu0 %v909
      %v1292 = vpop.f32.mrb[0].mxu0
      %v1293 = vadd.f32 %v972, %v1292
      %v1294 = vpop.f32.mrb[0].mxu0
      %1295 = vdwg.mxu0
      %v1296 = vmax.f32 %v1138, 0.0
      %v1297 = vmax.f32 %v1143, 0.0
      %v1298 = vmax.f32 %v1148, 0.0
      %v1299 = vmax.f32 %v1153, 0.0
      %v1300 = vmax.f32 %v1158, 0.0
      %v1301 = vmax.f32 %v1163, 0.0
      %v1302 = vmax.f32 %v1168, 0.0
      %v1303 = vmax.f32 %v1173, 0.0
      %v1304 = vmax.f32 %v1178, 0.0
      %v1305 = vmax.f32 %v1183, 0.0
      %v1306 = vmax.f32 %v1188, 0.0
      %v1307 = vmax.f32 %v1193, 0.0
      %v1308 = vmax.f32 %v1198, 0.0
      %v1309 = vmax.f32 %v1203, 0.0
      %v1310 = vmax.f32 %v1208, 0.0
      %v1311 = vmax.f32 %v1213, 0.0
      %v1312 = vmax.f32 %v1218, 0.0
      %v1313 = vmax.f32 %v1223, 0.0
      %v1314 = vmax.f32 %v1228, 0.0
      %v1315 = vmax.f32 %v1233, 0.0
      %v1316 = vmax.f32 %v1238, 0.0
      %v1317 = vmax.f32 %v1243, 0.0
      %v1318 = vmax.f32 %v1248, 0.0
      %v1319 = vmax.f32 %v1253, 0.0
      %v1320 = vmax.f32 %v1258, 0.0
      %v1321 = vmax.f32 %v1263, 0.0
      %v1322 = vmax.f32 %v1268, 0.0
      %v1323 = vmax.f32 %v1273, 0.0
      %v1324 = vmax.f32 %v1278, 0.0
      %v1325 = vmax.f32 %v1283, 0.0
      %v1326 = vmax.f32 %v1288, 0.0
      %v1327 = vmax.f32 %v1293, 0.0
      %v1328 = vld [vmem:[%s4] sm:$0xff]
      %v1329 = vld [vmem:[%s4 + $0x8] sm:$0xff]
      %v1330 = vld [vmem:[%s4 + $0x10] sm:$0xff]
      %v1331 = vld [vmem:[%s4 + $0x18] sm:$0xff]
      %v1332 = vld [vmem:[%s4 + $0x20] sm:$0xff]
      %v1333 = vld [vmem:[%s4 + $0x28] sm:$0xff]
      %v1334 = vld [vmem:[%s4 + $0x30] sm:$0xff]
      %v1335 = vld [vmem:[%s4 + $0x38] sm:$0xff]
      %v1336 = vld [vmem:[%s4 + $0x40] sm:$0xff]
      %v1337 = vld [vmem:[%s4 + $0x48] sm:$0xff]
      %v1338 = vld [vmem:[%s4 + $0x50] sm:$0xff]
      %v1339 = vld [vmem:[%s4 + $0x58] sm:$0xff]
      %v1340 = vld [vmem:[%s4 + $0x60] sm:$0xff]
      %v1341 = vld [vmem:[%s4 + $0x68] sm:$0xff]
      %v1342 = vld [vmem:[%s4 + $0x70] sm:$0xff]
      %v1343 = vld [vmem:[%s4 + $0x78] sm:$0xff]
      %v1344 = vld [vmem:[%s5] sm:$0x1]
      %v1346 = vlaneseq
      %v1347 = vshrl.u32 %v1346, 7
      %v1348 = vsub.s32 0, %v1347
      %v1349 = vrot.slane %v1344, %v1348
      %1351 = vmatprep.subr.mxu0 0.0
      %1352 = vmatpush1.msra.mxu0 %v1328
      %1353 = vmatprep.subr.mxu0 0.0
      %1354 = vmatpush1.msra.mxu0 %v1329
      %1355 = vmatprep.subr.mxu0 0.0
      %1356 = vmatpush1.msra.mxu0 %v1330
      %1357 = vmatprep.subr.mxu0 0.0
      %1358 = vmatpush1.msra.mxu0 %v1331
      %1359 = vmatprep.subr.mxu0 0.0
      %1360 = vmatpush1.msra.mxu0 %v1332
      %1361 = vmatprep.subr.mxu0 0.0
      %1362 = vmatpush1.msra.mxu0 %v1333
      %1363 = vmatprep.subr.mxu0 0.0
      %1364 = vmatpush1.msra.mxu0 %v1334
      %1365 = vmatprep.subr.mxu0 0.0
      %1366 = vmatpush1.msra.mxu0 %v1335
      %1367 = vmatprep.subr.mxu0 0.0
      %1368 = vmatpush1.msra.mxu0 %v1336
      %1369 = vmatprep.subr.mxu0 0.0
      %1370 = vmatpush1.msra.mxu0 %v1337
      %1371 = vmatprep.subr.mxu0 0.0
      %1372 = vmatpush1.msra.mxu0 %v1338
      %1373 = vmatprep.subr.mxu0 0.0
      %1374 = vmatpush1.msra.mxu0 %v1339
      %1375 = vmatprep.subr.mxu0 0.0
      %1376 = vmatpush1.msra.mxu0 %v1340
      %1377 = vmatprep.subr.mxu0 0.0
      %1378 = vmatpush1.msra.mxu0 %v1341
      %1379 = vmatprep.subr.mxu0 0.0
      %1380 = vmatpush1.msra.mxu0 %v1342
      %1381 = vmatprep.subr.mxu0 0.0
      %1382 = vmatpush1.msra.mxu0 %v1343
      %1383 = vmatprep.subr.mxu0 0.0
      %1384 = vmatpush1.msra.mxu0 0.0
      %1385 = vmatprep.subr.mxu0 0.0
      %1386 = vmatpush1.msra.mxu0 0.0
      %1387 = vmatprep.subr.mxu0 0.0
      %1388 = vmatpush1.msra.mxu0 0.0
      %1389 = vmatprep.subr.mxu0 0.0
      %1390 = vmatpush1.msra.mxu0 0.0
      %1391 = vmatprep.subr.mxu0 0.0
      %1392 = vmatpush1.msra.mxu0 0.0
      %1393 = vmatprep.subr.mxu0 0.0
      %1394 = vmatpush1.msra.mxu0 0.0
      %1395 = vmatprep.subr.mxu0 0.0
      %1396 = vmatpush1.msra.mxu0 0.0
      %1397 = vmatprep.subr.mxu0 0.0
      %1398 = vmatpush1.msra.mxu0 0.0
      %1399 = vmatprep.subr.mxu0 0.0
      %1400 = vmatpush1.msra.mxu0 0.0
      %1401 = vmatprep.subr.mxu0 0.0
      %1402 = vmatpush1.msra.mxu0 0.0
      %1403 = vmatprep.subr.mxu0 0.0
      %1404 = vmatpush1.msra.mxu0 0.0
      %1405 = vmatprep.subr.mxu0 0.0
      %1406 = vmatpush1.msra.mxu0 0.0
      %1407 = vmatprep.subr.mxu0 0.0
      %1408 = vmatpush1.msra.mxu0 0.0
      %1409 = vmatprep.subr.mxu0 0.0
      %1410 = vmatpush1.msra.mxu0 0.0
      %1411 = vmatprep.subr.mxu0 0.0
      %1412 = vmatpush1.msra.mxu0 0.0
      %1413 = vmatprep.subr.mxu0 0.0
      %1414 = vmatpush1.msra.mxu0 0.0
      %1415 = vmatprep.mubr.f32.mxu0 0.0
      %1416 = vmatmul.mubr.f32.gmra.mrb[0].mxu0 %v1296
      %v1417 = vpop.f32.mrb[0].mxu0
      %v1418 = vadd.f32 %v1349, %v1417
      %v1419 = vpop.f32.mrb[0].mxu0
      %1420 = vmatprep.mubr.f32.mxu0 0.0
      %1421 = vmatmul.mubr.f32.gmra.mrb[0].mxu0 %v1297
      %v1422 = vpop.f32.mrb[0].mxu0
      %v1423 = vadd.f32 %v1349, %v1422
      %v1424 = vpop.f32.mrb[0].mxu0
      %1425 = vmatprep.mubr.f32.mxu0 0.0
      %1426 = vmatmul.mubr.f32.gmra.mrb[0].mxu0 %v1298
      %v1427 = vpop.f32.mrb[0].mxu0
      %v1428 = vadd.f32 %v1349, %v1427
      %v1429 = vpop.f32.mrb[0].mxu0
      %1430 = vmatprep.mubr.f32.mxu0 0.0
      %1431 = vmatmul.mubr.f32.gmra.mrb[0].mxu0 %v1299
      %v1432 = vpop.f32.mrb[0].mxu0
      %v1433 = vadd.f32 %v1349, %v1432
      %v1434 = vpop.f32.mrb[0].mxu0
      %1435 = vmatprep.mubr.f32.mxu0 0.0
      %1436 = vmatmul.mubr.f32.gmra.mrb[0].mxu0 %v1300
      %v1437 = vpop.f32.mrb[0].mxu0
      %v1438 = vadd.f32 %v1349, %v1437
      %v1439 = vpop.f32.mrb[0].mxu0
      %1440 = vmatprep.mubr.f32.mxu0 0.0
      %1441 = vmatmul.mubr.f32.gmra.mrb[0].mxu0 %v1301
      %v1442 = vpop.f32.mrb[0].mxu0
      %v1443 = vadd.f32 %v1349, %v1442
      %v1444 = vpop.f32.mrb[0].mxu0
      %1445 = vmatprep.mubr.f32.mxu0 0.0
      %1446 = vmatmul.mubr.f32.gmra.mrb[0].mxu0 %v1302
      %v1447 = vpop.f32.mrb[0].mxu0
      %v1448 = vadd.f32 %v1349, %v1447
      %v1449 = vpop.f32.mrb[0].mxu0
      %1450 = vmatprep.mubr.f32.mxu0 0.0
      %1451 = vmatmul.mubr.f32.gmra.mrb[0].mxu0 %v1303
      %v1452 = vpop.f32.mrb[0].mxu0
      %v1453 = vadd.f32 %v1349, %v1452
      %v1454 = vpop.f32.mrb[0].mxu0
      %1455 = vmatprep.mubr.f32.mxu0 0.0
      %1456 = vmatmul.mubr.f32.gmra.mrb[0].mxu0 %v1304
      %v1457 = vpop.f32.mrb[0].mxu0
      %v1458 = vadd.f32 %v1349, %v1457
      %v1459 = vpop.f32.mrb[0].mxu0
      %1460 = vmatprep.mubr.f32.mxu0 0.0
      %1461 = vmatmul.mubr.f32.gmra.mrb[0].mxu0 %v1305
      %v1462 = vpop.f32.mrb[0].mxu0
      %v1463 = vadd.f32 %v1349, %v1462
      %v1464 = vpop.f32.mrb[0].mxu0
      %1465 = vmatprep.mubr.f32.mxu0 0.0
      %1466 = vmatmul.mubr.f32.gmra.mrb[0].mxu0 %v1306
      %v1467 = vpop.f32.mrb[0].mxu0
      %v1468 = vadd.f32 %v1349, %v1467
      %v1469 = vpop.f32.mrb[0].mxu0
      %1470 = vmatprep.mubr.f32.mxu0 0.0
      %1471 = vmatmul.mubr.f32.gmra.mrb[0].mxu0 %v1307
      %v1472 = vpop.f32.mrb[0].mxu0
      %v1473 = vadd.f32 %v1349, %v1472
      %v1474 = vpop.f32.mrb[0].mxu0
      %1475 = vmatprep.mubr.f32.mxu0 0.0
      %1476 = vmatmul.mubr.f32.gmra.mrb[0].mxu0 %v1308
      %v1477 = vpop.f32.mrb[0].mxu0
      %v1478 = vadd.f32 %v1349, %v1477
      %v1479 = vpop.f32.mrb[0].mxu0
      %1480 = vmatprep.mubr.f32.mxu0 0.0
      %1481 = vmatmul.mubr.f32.gmra.mrb[0].mxu0 %v1309
      %v1482 = vpop.f32.mrb[0].mxu0
      %v1483 = vadd.f32 %v1349, %v1482
      %v1484 = vpop.f32.mrb[0].mxu0
      %1485 = vmatprep.mubr.f32.mxu0 0.0
      %1486 = vmatmul.mubr.f32.gmra.mrb[0].mxu0 %v1310
      %v1487 = vpop.f32.mrb[0].mxu0
      %v1488 = vadd.f32 %v1349, %v1487
      %v1489 = vpop.f32.mrb[0].mxu0
      %1490 = vmatprep.mubr.f32.mxu0 0.0
      %1491 = vmatmul.mubr.f32.gmra.mrb[0].mxu0 %v1311
      %v1492 = vpop.f32.mrb[0].mxu0
      %v1493 = vadd.f32 %v1349, %v1492
      %v1494 = vpop.f32.mrb[0].mxu0
      %1495 = vmatprep.mubr.f32.mxu0 0.0
      %1496 = vmatmul.mubr.f32.gmra.mrb[0].mxu0 %v1312
      %v1497 = vpop.f32.mrb[0].mxu0
      %v1498 = vadd.f32 %v1349, %v1497
      %v1499 = vpop.f32.mrb[0].mxu0
      %1500 = vmatprep.mubr.f32.mxu0 0.0
      %1501 = vmatmul.mubr.f32.gmra.mrb[0].mxu0 %v1313
      %v1502 = vpop.f32.mrb[0].mxu0
      %v1503 = vadd.f32 %v1349, %v1502
      %v1504 = vpop.f32.mrb[0].mxu0
      %1505 = vmatprep.mubr.f32.mxu0 0.0
      %1506 = vmatmul.mubr.f32.gmra.mrb[0].mxu0 %v1314
      %v1507 = vpop.f32.mrb[0].mxu0
      %v1508 = vadd.f32 %v1349, %v1507
      %v1509 = vpop.f32.mrb[0].mxu0
      %1510 = vmatprep.mubr.f32.mxu0 0.0
      %1511 = vmatmul.mubr.f32.gmra.mrb[0].mxu0 %v1315
      %v1512 = vpop.f32.mrb[0].mxu0
      %v1513 = vadd.f32 %v1349, %v1512
      %v1514 = vpop.f32.mrb[0].mxu0
      %1515 = vmatprep.mubr.f32.mxu0 0.0
      %1516 = vmatmul.mubr.f32.gmra.mrb[0].mxu0 %v1316
      %v1517 = vpop.f32.mrb[0].mxu0
      %v1518 = vadd.f32 %v1349, %v1517
      %v1519 = vpop.f32.mrb[0].mxu0
      %1520 = vmatprep.mubr.f32.mxu0 0.0
      %1521 = vmatmul.mubr.f32.gmra.mrb[0].mxu0 %v1317
      %v1522 = vpop.f32.mrb[0].mxu0
      %v1523 = vadd.f32 %v1349, %v1522
      %v1524 = vpop.f32.mrb[0].mxu0
      %1525 = vmatprep.mubr.f32.mxu0 0.0
      %1526 = vmatmul.mubr.f32.gmra.mrb[0].mxu0 %v1318
      %v1527 = vpop.f32.mrb[0].mxu0
      %v1528 = vadd.f32 %v1349, %v1527
      %v1529 = vpop.f32.mrb[0].mxu0
      %1530 = vmatprep.mubr.f32.mxu0 0.0
      %1531 = vmatmul.mubr.f32.gmra.mrb[0].mxu0 %v1319
      %v1532 = vpop.f32.mrb[0].mxu0
      %v1533 = vadd.f32 %v1349, %v1532
      %v1534 = vpop.f32.mrb[0].mxu0
      %1535 = vmatprep.mubr.f32.mxu0 0.0
      %1536 = vmatmul.mubr.f32.gmra.mrb[0].mxu0 %v1320
      %v1537 = vpop.f32.mrb[0].mxu0
      %v1538 = vadd.f32 %v1349, %v1537
      %v1539 = vpop.f32.mrb[0].mxu0
      %1540 = vmatprep.mubr.f32.mxu0 0.0
      %1541 = vmatmul.mubr.f32.gmra.mrb[0].mxu0 %v1321
      %v1542 = vpop.f32.mrb[0].mxu0
      %v1543 = vadd.f32 %v1349, %v1542
      %v1544 = vpop.f32.mrb[0].mxu0
      %1545 = vmatprep.mubr.f32.mxu0 0.0
      %1546 = vmatmul.mubr.f32.gmra.mrb[0].mxu0 %v1322
      %v1547 = vpop.f32.mrb[0].mxu0
      %v1548 = vadd.f32 %v1349, %v1547
      %v1549 = vpop.f32.mrb[0].mxu0
      %1550 = vmatprep.mubr.f32.mxu0 0.0
      %1551 = vmatmul.mubr.f32.gmra.mrb[0].mxu0 %v1323
      %v1552 = vpop.f32.mrb[0].mxu0
      %v1553 = vadd.f32 %v1349, %v1552
      %v1554 = vpop.f32.mrb[0].mxu0
      %1555 = vmatprep.mubr.f32.mxu0 0.0
      %1556 = vmatmul.mubr.f32.gmra.mrb[0].mxu0 %v1324
      %v1557 = vpop.f32.mrb[0].mxu0
      %v1558 = vadd.f32 %v1349, %v1557
      %v1559 = vpop.f32.mrb[0].mxu0
      %1560 = vmatprep.mubr.f32.mxu0 0.0
      %1561 = vmatmul.mubr.f32.gmra.mrb[0].mxu0 %v1325
      %v1562 = vpop.f32.mrb[0].mxu0
      %v1563 = vadd.f32 %v1349, %v1562
      %v1564 = vpop.f32.mrb[0].mxu0
      %1565 = vmatprep.mubr.f32.mxu0 0.0
      %1566 = vmatmul.mubr.f32.gmra.mrb[0].mxu0 %v1326
      %v1567 = vpop.f32.mrb[0].mxu0
      %v1568 = vadd.f32 %v1349, %v1567
      %v1569 = vpop.f32.mrb[0].mxu0
      %1570 = vmatprep.mubr.f32.mxu0 0.0
      %1571 = vmatmul.mubr.f32.gmra.mrb[0].mxu0 %v1327
      %v1572 = vpop.f32.mrb[0].mxu0
      %v1573 = vadd.f32 %v1349, %v1572
      %v1574 = vpop.f32.mrb[0].mxu0
      %1575 = vdwg.mxu0
      %v1576 = vmax.f32 %v1418, 0.0
      %v1577 = vmax.f32 %v1423, 0.0
      %v1578 = vmax.f32 %v1428, 0.0
      %v1579 = vmax.f32 %v1433, 0.0
      %v1580 = vmax.f32 %v1438, 0.0
      %v1581 = vmax.f32 %v1443, 0.0
      %v1582 = vmax.f32 %v1448, 0.0
      %v1583 = vmax.f32 %v1453, 0.0
      %v1584 = vmax.f32 %v1458, 0.0
      %v1585 = vmax.f32 %v1463, 0.0
      %v1586 = vmax.f32 %v1468, 0.0
      %v1587 = vmax.f32 %v1473, 0.0
      %v1588 = vmax.f32 %v1478, 0.0
      %v1589 = vmax.f32 %v1483, 0.0
      %v1590 = vmax.f32 %v1488, 0.0
      %v1591 = vmax.f32 %v1493, 0.0
      %v1592 = vmax.f32 %v1498, 0.0
      %v1593 = vmax.f32 %v1503, 0.0
      %v1594 = vmax.f32 %v1508, 0.0
      %v1595 = vmax.f32 %v1513, 0.0
      %v1596 = vmax.f32 %v1518, 0.0
      %v1597 = vmax.f32 %v1523, 0.0
      %v1598 = vmax.f32 %v1528, 0.0
      %v1599 = vmax.f32 %v1533, 0.0
      %v1600 = vmax.f32 %v1538, 0.0
      %v1601 = vmax.f32 %v1543, 0.0
      %v1602 = vmax.f32 %v1548, 0.0
      %v1603 = vmax.f32 %v1553, 0.0
      %v1604 = vmax.f32 %v1558, 0.0
      %v1605 = vmax.f32 %v1563, 0.0
      %v1606 = vmax.f32 %v1568, 0.0
      %v1607 = vmax.f32 %v1573, 0.0
      %v1608 = vld [vmem:[%s6] sm:$0xff]
      %v1609 = vld [vmem:[%s6 + $0x8] sm:$0xff]
      %v1610 = vld [vmem:[%s6 + $0x10] sm:$0xff]
      %v1611 = vld [vmem:[%s6 + $0x18] sm:$0xff]
      %v1612 = vld [vmem:[%s6 + $0x20] sm:$0xff]
      %v1613 = vld [vmem:[%s6 + $0x28] sm:$0xff]
      %v1614 = vld [vmem:[%s6 + $0x30] sm:$0xff]
      %v1615 = vld [vmem:[%s6 + $0x38] sm:$0xff]
      %v1616 = vld [vmem:[%s6 + $0x40] sm:$0xff]
      %v1617 = vld [vmem:[%s6 + $0x48] sm:$0xff]
      %v1618 = vld [vmem:[%s6 + $0x50] sm:$0xff]
      %v1619 = vld [vmem:[%s6 + $0x58] sm:$0xff]
      %v1620 = vld [vmem:[%s6 + $0x60] sm:$0xff]
      %v1621 = vld [vmem:[%s6 + $0x68] sm:$0xff]
      %v1622 = vld [vmem:[%s6 + $0x70] sm:$0xff]
      %v1623 = vld [vmem:[%s6 + $0x78] sm:$0xff]
      %v1624 = vld [vmem:[%s7] sm:$0x1]
      %v1626 = vlaneseq
      %v1627 = vshrl.u32 %v1626, 7
      %v1628 = vsub.s32 0, %v1627
      %v1629 = vrot.slane %v1624, %v1628
      %1631 = vmatprep.subr.mxu0 0.0
      %1632 = vmatpush1.msra.mxu0 %v1608
      %1633 = vmatprep.subr.mxu0 0.0
      %1634 = vmatpush1.msra.mxu0 %v1609
      %1635 = vmatprep.subr.mxu0 0.0
      %1636 = vmatpush1.msra.mxu0 %v1610
      %1637 = vmatprep.subr.mxu0 0.0
      %1638 = vmatpush1.msra.mxu0 %v1611
      %1639 = vmatprep.subr.mxu0 0.0
      %1640 = vmatpush1.msra.mxu0 %v1612
      %1641 = vmatprep.subr.mxu0 0.0
      %1642 = vmatpush1.msra.mxu0 %v1613
      %1643 = vmatprep.subr.mxu0 0.0
      %1644 = vmatpush1.msra.mxu0 %v1614
      %1645 = vmatprep.subr.mxu0 0.0
      %1646 = vmatpush1.msra.mxu0 %v1615
      %1647 = vmatprep.subr.mxu0 0.0
      %1648 = vmatpush1.msra.mxu0 %v1616
      %1649 = vmatprep.subr.mxu0 0.0
      %1650 = vmatpush1.msra.mxu0 %v1617
      %1651 = vmatprep.subr.mxu0 0.0
      %1652 = vmatpush1.msra.mxu0 %v1618
      %1653 = vmatprep.subr.mxu0 0.0
      %1654 = vmatpush1.msra.mxu0 %v1619
      %1655 = vmatprep.subr.mxu0 0.0
      %1656 = vmatpush1.msra.mxu0 %v1620
      %1657 = vmatprep.subr.mxu0 0.0
      %1658 = vmatpush1.msra.mxu0 %v1621
      %1659 = vmatprep.subr.mxu0 0.0
      %1660 = vmatpush1.msra.mxu0 %v1622
      %1661 = vmatprep.subr.mxu0 0.0
      %1662 = vmatpush1.msra.mxu0 %v1623
      %1663 = vmatprep.subr.mxu0 0.0
      %1664 = vmatpush1.msra.mxu0 0.0
      %1665 = vmatprep.subr.mxu0 0.0
      %1666 = vmatpush1.msra.mxu0 0.0
      %1667 = vmatprep.subr.mxu0 0.0
      %1668 = vmatpush1.msra.mxu0 0.0
      %1669 = vmatprep.subr.mxu0 0.0
      %1670 = vmatpush1.msra.mxu0 0.0
      %1671 = vmatprep.subr.mxu0 0.0
      %1672 = vmatpush1.msra.mxu0 0.0
      %1673 = vmatprep.subr.mxu0 0.0
      %1674 = vmatpush1.msra.mxu0 0.0
      %1675 = vmatprep.subr.mxu0 0.0
      %1676 = vmatpush1.msra.mxu0 0.0
      %1677 = vmatprep.subr.mxu0 0.0
      %1678 = vmatpush1.msra.mxu0 0.0
      %1679 = vmatprep.subr.mxu0 0.0
      %1680 = vmatpush1.msra.mxu0 0.0
      %1681 = vmatprep.subr.mxu0 0.0
      %1682 = vmatpush1.msra.mxu0 0.0
      %1683 = vmatprep.subr.mxu0 0.0
      %1684 = vmatpush1.msra.mxu0 0.0
      %1685 = vmatprep.subr.mxu0 0.0
      %1686 = vmatpush1.msra.mxu0 0.0
      %1687 = vmatprep.subr.mxu0 0.0
      %1688 = vmatpush1.msra.mxu0 0.0
      %1689 = vmatprep.subr.mxu0 0.0
      %1690 = vmatpush1.msra.mxu0 0.0
      %1691 = vmatprep.subr.mxu0 0.0
      %1692 = vmatpush1.msra.mxu0 0.0
      %1693 = vmatprep.subr.mxu0 0.0
      %1694 = vmatpush1.msra.mxu0 0.0
      %1695 = vmatprep.mubr.f32.mxu0 0.0
      %1696 = vmatmul.mubr.f32.gmra.mrb[0].mxu0 %v1576
      %v1697 = vpop.f32.mrb[0].mxu0
      %v1698 = vadd.f32 %v1629, %v1697
      %v1699 = vpop.f32.mrb[0].mxu0
      %1700 = vmatprep.mubr.f32.mxu0 0.0
      %1701 = vmatmul.mubr.f32.gmra.mrb[0].mxu0 %v1577
      %v1702 = vpop.f32.mrb[0].mxu0
      %v1703 = vadd.f32 %v1629, %v1702
      %v1704 = vpop.f32.mrb[0].mxu0
      %1705 = vmatprep.mubr.f32.mxu0 0.0
      %1706 = vmatmul.mubr.f32.gmra.mrb[0].mxu0 %v1578
      %v1707 = vpop.f32.mrb[0].mxu0
      %v1708 = vadd.f32 %v1629, %v1707
      %v1709 = vpop.f32.mrb[0].mxu0
      %1710 = vmatprep.mubr.f32.mxu0 0.0
      %1711 = vmatmul.mubr.f32.gmra.mrb[0].mxu0 %v1579
      %v1712 = vpop.f32.mrb[0].mxu0
      %v1713 = vadd.f32 %v1629, %v1712
      %v1714 = vpop.f32.mrb[0].mxu0
      %1715 = vmatprep.mubr.f32.mxu0 0.0
      %1716 = vmatmul.mubr.f32.gmra.mrb[0].mxu0 %v1580
      %v1717 = vpop.f32.mrb[0].mxu0
      %v1718 = vadd.f32 %v1629, %v1717
      %v1719 = vpop.f32.mrb[0].mxu0
      %1720 = vmatprep.mubr.f32.mxu0 0.0
      %1721 = vmatmul.mubr.f32.gmra.mrb[0].mxu0 %v1581
      %v1722 = vpop.f32.mrb[0].mxu0
      %v1723 = vadd.f32 %v1629, %v1722
      %v1724 = vpop.f32.mrb[0].mxu0
      %1725 = vmatprep.mubr.f32.mxu0 0.0
      %1726 = vmatmul.mubr.f32.gmra.mrb[0].mxu0 %v1582
      %v1727 = vpop.f32.mrb[0].mxu0
      %v1728 = vadd.f32 %v1629, %v1727
      %v1729 = vpop.f32.mrb[0].mxu0
      %1730 = vmatprep.mubr.f32.mxu0 0.0
      %1731 = vmatmul.mubr.f32.gmra.mrb[0].mxu0 %v1583
      %v1732 = vpop.f32.mrb[0].mxu0
      %v1733 = vadd.f32 %v1629, %v1732
      %v1734 = vpop.f32.mrb[0].mxu0
      %1735 = vmatprep.mubr.f32.mxu0 0.0
      %1736 = vmatmul.mubr.f32.gmra.mrb[0].mxu0 %v1584
      %v1737 = vpop.f32.mrb[0].mxu0
      %v1738 = vadd.f32 %v1629, %v1737
      %v1739 = vpop.f32.mrb[0].mxu0
      %1740 = vmatprep.mubr.f32.mxu0 0.0
      %1741 = vmatmul.mubr.f32.gmra.mrb[0].mxu0 %v1585
      %v1742 = vpop.f32.mrb[0].mxu0
      %v1743 = vadd.f32 %v1629, %v1742
      %v1744 = vpop.f32.mrb[0].mxu0
      %1745 = vmatprep.mubr.f32.mxu0 0.0
      %1746 = vmatmul.mubr.f32.gmra.mrb[0].mxu0 %v1586
      %v1747 = vpop.f32.mrb[0].mxu0
      %v1748 = vadd.f32 %v1629, %v1747
      %v1749 = vpop.f32.mrb[0].mxu0
      %1750 = vmatprep.mubr.f32.mxu0 0.0
      %1751 = vmatmul.mubr.f32.gmra.mrb[0].mxu0 %v1587
      %v1752 = vpop.f32.mrb[0].mxu0
      %v1753 = vadd.f32 %v1629, %v1752
      %v1754 = vpop.f32.mrb[0].mxu0
      %1755 = vmatprep.mubr.f32.mxu0 0.0
      %1756 = vmatmul.mubr.f32.gmra.mrb[0].mxu0 %v1588
      %v1757 = vpop.f32.mrb[0].mxu0
      %v1758 = vadd.f32 %v1629, %v1757
      %v1759 = vpop.f32.mrb[0].mxu0
      %1760 = vmatprep.mubr.f32.mxu0 0.0
      %1761 = vmatmul.mubr.f32.gmra.mrb[0].mxu0 %v1589
      %v1762 = vpop.f32.mrb[0].mxu0
      %v1763 = vadd.f32 %v1629, %v1762
      %v1764 = vpop.f32.mrb[0].mxu0
      %1765 = vmatprep.mubr.f32.mxu0 0.0
      %1766 = vmatmul.mubr.f32.gmra.mrb[0].mxu0 %v1590
      %v1767 = vpop.f32.mrb[0].mxu0
      %v1768 = vadd.f32 %v1629, %v1767
      %v1769 = vpop.f32.mrb[0].mxu0
      %1770 = vmatprep.mubr.f32.mxu0 0.0
      %1771 = vmatmul.mubr.f32.gmra.mrb[0].mxu0 %v1591
      %v1772 = vpop.f32.mrb[0].mxu0
      %v1773 = vadd.f32 %v1629, %v1772
      %v1774 = vpop.f32.mrb[0].mxu0
      %1775 = vmatprep.mubr.f32.mxu0 0.0
      %1776 = vmatmul.mubr.f32.gmra.mrb[0].mxu0 %v1592
      %v1777 = vpop.f32.mrb[0].mxu0
      %v1778 = vadd.f32 %v1629, %v1777
      %v1779 = vpop.f32.mrb[0].mxu0
      %1780 = vmatprep.mubr.f32.mxu0 0.0
      %1781 = vmatmul.mubr.f32.gmra.mrb[0].mxu0 %v1593
      %v1782 = vpop.f32.mrb[0].mxu0
      %v1783 = vadd.f32 %v1629, %v1782
      %v1784 = vpop.f32.mrb[0].mxu0
      %1785 = vmatprep.mubr.f32.mxu0 0.0
      %1786 = vmatmul.mubr.f32.gmra.mrb[0].mxu0 %v1594
      %v1787 = vpop.f32.mrb[0].mxu0
      %v1788 = vadd.f32 %v1629, %v1787
      %v1789 = vpop.f32.mrb[0].mxu0
      %1790 = vmatprep.mubr.f32.mxu0 0.0
      %1791 = vmatmul.mubr.f32.gmra.mrb[0].mxu0 %v1595
      %v1792 = vpop.f32.mrb[0].mxu0
      %v1793 = vadd.f32 %v1629, %v1792
      %v1794 = vpop.f32.mrb[0].mxu0
      %1795 = vmatprep.mubr.f32.mxu0 0.0
      %1796 = vmatmul.mubr.f32.gmra.mrb[0].mxu0 %v1596
      %v1797 = vpop.f32.mrb[0].mxu0
      %v1798 = vadd.f32 %v1629, %v1797
      %v1799 = vpop.f32.mrb[0].mxu0
      %1800 = vmatprep.mubr.f32.mxu0 0.0
      %1801 = vmatmul.mubr.f32.gmra.mrb[0].mxu0 %v1597
      %v1802 = vpop.f32.mrb[0].mxu0
      %v1803 = vadd.f32 %v1629, %v1802
      %v1804 = vpop.f32.mrb[0].mxu0
      %1805 = vmatprep.mubr.f32.mxu0 0.0
      %1806 = vmatmul.mubr.f32.gmra.mrb[0].mxu0 %v1598
      %v1807 = vpop.f32.mrb[0].mxu0
      %v1808 = vadd.f32 %v1629, %v1807
      %v1809 = vpop.f32.mrb[0].mxu0
      %1810 = vmatprep.mubr.f32.mxu0 0.0
      %1811 = vmatmul.mubr.f32.gmra.mrb[0].mxu0 %v1599
      %v1812 = vpop.f32.mrb[0].mxu0
      %v1813 = vadd.f32 %v1629, %v1812
      %v1814 = vpop.f32.mrb[0].mxu0
      %1815 = vmatprep.mubr.f32.mxu0 0.0
      %1816 = vmatmul.mubr.f32.gmra.mrb[0].mxu0 %v1600
      %v1817 = vpop.f32.mrb[0].mxu0
      %v1818 = vadd.f32 %v1629, %v1817
      %v1819 = vpop.f32.mrb[0].mxu0
      %1820 = vmatprep.mubr.f32.mxu0 0.0
      %1821 = vmatmul.mubr.f32.gmra.mrb[0].mxu0 %v1601
      %v1822 = vpop.f32.mrb[0].mxu0
      %v1823 = vadd.f32 %v1629, %v1822
      %v1824 = vpop.f32.mrb[0].mxu0
      %1825 = vmatprep.mubr.f32.mxu0 0.0
      %1826 = vmatmul.mubr.f32.gmra.mrb[0].mxu0 %v1602
      %v1827 = vpop.f32.mrb[0].mxu0
      %v1828 = vadd.f32 %v1629, %v1827
      %v1829 = vpop.f32.mrb[0].mxu0
      %1830 = vmatprep.mubr.f32.mxu0 0.0
      %1831 = vmatmul.mubr.f32.gmra.mrb[0].mxu0 %v1603
      %v1832 = vpop.f32.mrb[0].mxu0
      %v1833 = vadd.f32 %v1629, %v1832
      %v1834 = vpop.f32.mrb[0].mxu0
      %1835 = vmatprep.mubr.f32.mxu0 0.0
      %1836 = vmatmul.mubr.f32.gmra.mrb[0].mxu0 %v1604
      %v1837 = vpop.f32.mrb[0].mxu0
      %v1838 = vadd.f32 %v1629, %v1837
      %v1839 = vpop.f32.mrb[0].mxu0
      %1840 = vmatprep.mubr.f32.mxu0 0.0
      %1841 = vmatmul.mubr.f32.gmra.mrb[0].mxu0 %v1605
      %v1842 = vpop.f32.mrb[0].mxu0
      %v1843 = vadd.f32 %v1629, %v1842
      %v1844 = vpop.f32.mrb[0].mxu0
      %1845 = vmatprep.mubr.f32.mxu0 0.0
      %1846 = vmatmul.mubr.f32.gmra.mrb[0].mxu0 %v1606
      %v1847 = vpop.f32.mrb[0].mxu0
      %v1848 = vadd.f32 %v1629, %v1847
      %v1849 = vpop.f32.mrb[0].mxu0
      %1850 = vmatprep.mubr.f32.mxu0 0.0
      %1851 = vmatmul.mubr.f32.gmra.mrb[0].mxu0 %v1607
      %v1852 = vpop.f32.mrb[0].mxu0
      %v1853 = vadd.f32 %v1629, %v1852
      %v1854 = vpop.f32.mrb[0].mxu0
      %1855 = vdwg.mxu0
      %v1856 = vmax.f32 %v1698, 0.0
      %v1857 = vmax.f32 %v1703, 0.0
      %v1858 = vmax.f32 %v1708, 0.0
      %v1859 = vmax.f32 %v1713, 0.0
      %v1860 = vmax.f32 %v1718, 0.0
      %v1861 = vmax.f32 %v1723, 0.0
      %v1862 = vmax.f32 %v1728, 0.0
      %v1863 = vmax.f32 %v1733, 0.0
      %v1864 = vmax.f32 %v1738, 0.0
      %v1865 = vmax.f32 %v1743, 0.0
      %v1866 = vmax.f32 %v1748, 0.0
      %v1867 = vmax.f32 %v1753, 0.0
      %v1868 = vmax.f32 %v1758, 0.0
      %v1869 = vmax.f32 %v1763, 0.0
      %v1870 = vmax.f32 %v1768, 0.0
      %v1871 = vmax.f32 %v1773, 0.0
      %v1872 = vmax.f32 %v1778, 0.0
      %v1873 = vmax.f32 %v1783, 0.0
      %v1874 = vmax.f32 %v1788, 0.0
      %v1875 = vmax.f32 %v1793, 0.0
      %v1876 = vmax.f32 %v1798, 0.0
      %v1877 = vmax.f32 %v1803, 0.0
      %v1878 = vmax.f32 %v1808, 0.0
      %v1879 = vmax.f32 %v1813, 0.0
      %v1880 = vmax.f32 %v1818, 0.0
      %v1881 = vmax.f32 %v1823, 0.0
      %v1882 = vmax.f32 %v1828, 0.0
      %v1883 = vmax.f32 %v1833, 0.0
      %v1884 = vmax.f32 %v1838, 0.0
      %v1885 = vmax.f32 %v1843, 0.0
      %v1886 = vmax.f32 %v1848, 0.0
      %v1887 = vmax.f32 %v1853, 0.0
      %v1888 = vld [vmem:[%s8] sm:$0xff]
      %v1889 = vld [vmem:[%s8 + $0x8] sm:$0xff]
      %v1890 = vld [vmem:[%s8 + $0x10] sm:$0xff]
      %v1891 = vld [vmem:[%s8 + $0x18] sm:$0xff]
      %v1892 = vld [vmem:[%s8 + $0x20] sm:$0xff]
      %v1893 = vld [vmem:[%s8 + $0x28] sm:$0xff]
      %v1894 = vld [vmem:[%s8 + $0x30] sm:$0xff]
      %v1895 = vld [vmem:[%s8 + $0x38] sm:$0xff]
      %v1896 = vld [vmem:[%s8 + $0x40] sm:$0xff]
      %v1897 = vld [vmem:[%s8 + $0x48] sm:$0xff]
      %v1898 = vld [vmem:[%s8 + $0x50] sm:$0xff]
      %v1899 = vld [vmem:[%s8 + $0x58] sm:$0xff]
      %v1900 = vld [vmem:[%s8 + $0x60] sm:$0xff]
      %v1901 = vld [vmem:[%s8 + $0x68] sm:$0xff]
      %v1902 = vld [vmem:[%s8 + $0x70] sm:$0xff]
      %v1903 = vld [vmem:[%s8 + $0x78] sm:$0xff]
      %v1904 = vld [vmem:[%s9] sm:$0x1]
      %v1906 = vlaneseq
      %v1907 = vshrl.u32 %v1906, 7
      %v1908 = vsub.s32 0, %v1907
      %v1909 = vrot.slane %v1904, %v1908
      %1911 = vmatprep.subr.mxu0 0.0
      %1912 = vmatpush1.msra.mxu0 %v1888
      %1913 = vmatprep.subr.mxu0 0.0
      %1914 = vmatpush1.msra.mxu0 %v1889
      %1915 = vmatprep.subr.mxu0 0.0
      %1916 = vmatpush1.msra.mxu0 %v1890
      %1917 = vmatprep.subr.mxu0 0.0
      %1918 = vmatpush1.msra.mxu0 %v1891
      %1919 = vmatprep.subr.mxu0 0.0
      %1920 = vmatpush1.msra.mxu0 %v1892
      %1921 = vmatprep.subr.mxu0 0.0
      %1922 = vmatpush1.msra.mxu0 %v1893
      %1923 = vmatprep.subr.mxu0 0.0
      %1924 = vmatpush1.msra.mxu0 %v1894
      %1925 = vmatprep.subr.mxu0 0.0
      %1926 = vmatpush1.msra.mxu0 %v1895
      %1927 = vmatprep.subr.mxu0 0.0
      %1928 = vmatpush1.msra.mxu0 %v1896
      %1929 = vmatprep.subr.mxu0 0.0
      %1930 = vmatpush1.msra.mxu0 %v1897
      %1931 = vmatprep.subr.mxu0 0.0
      %1932 = vmatpush1.msra.mxu0 %v1898
      %1933 = vmatprep.subr.mxu0 0.0
      %1934 = vmatpush1.msra.mxu0 %v1899
      %1935 = vmatprep.subr.mxu0 0.0
      %1936 = vmatpush1.msra.mxu0 %v1900
      %1937 = vmatprep.subr.mxu0 0.0
      %1938 = vmatpush1.msra.mxu0 %v1901
      %1939 = vmatprep.subr.mxu0 0.0
      %1940 = vmatpush1.msra.mxu0 %v1902
      %1941 = vmatprep.subr.mxu0 0.0
      %1942 = vmatpush1.msra.mxu0 %v1903
      %1943 = vmatprep.subr.mxu0 0.0
      %1944 = vmatpush1.msra.mxu0 0.0
      %1945 = vmatprep.subr.mxu0 0.0
      %1946 = vmatpush1.msra.mxu0 0.0
      %1947 = vmatprep.subr.mxu0 0.0
      %1948 = vmatpush1.msra.mxu0 0.0
      %1949 = vmatprep.subr.mxu0 0.0
      %1950 = vmatpush1.msra.mxu0 0.0
      %1951 = vmatprep.subr.mxu0 0.0
      %1952 = vmatpush1.msra.mxu0 0.0
      %1953 = vmatprep.subr.mxu0 0.0
      %1954 = vmatpush1.msra.mxu0 0.0
      %1955 = vmatprep.subr.mxu0 0.0
      %1956 = vmatpush1.msra.mxu0 0.0
      %1957 = vmatprep.subr.mxu0 0.0
      %1958 = vmatpush1.msra.mxu0 0.0
      %1959 = vmatprep.subr.mxu0 0.0
      %1960 = vmatpush1.msra.mxu0 0.0
      %1961 = vmatprep.subr.mxu0 0.0
      %1962 = vmatpush1.msra.mxu0 0.0
      %1963 = vmatprep.subr.mxu0 0.0
      %1964 = vmatpush1.msra.mxu0 0.0
      %1965 = vmatprep.subr.mxu0 0.0
      %1966 = vmatpush1.msra.mxu0 0.0
      %1967 = vmatprep.subr.mxu0 0.0
      %1968 = vmatpush1.msra.mxu0 0.0
      %1969 = vmatprep.subr.mxu0 0.0
      %1970 = vmatpush1.msra.mxu0 0.0
      %1971 = vmatprep.subr.mxu0 0.0
      %1972 = vmatpush1.msra.mxu0 0.0
      %1973 = vmatprep.subr.mxu0 0.0
      %1974 = vmatpush1.msra.mxu0 0.0
      %1975 = vmatprep.mubr.f32.mxu0 0.0
      %1976 = vmatmul.mubr.f32.gmra.mrb[0].mxu0 %v1856
      %v1977 = vpop.f32.mrb[0].mxu0
      %v1978 = vadd.f32 %v1909, %v1977
      %v1979 = vpop.f32.mrb[0].mxu0
      %1980 = vmatprep.mubr.f32.mxu0 0.0
      %1981 = vmatmul.mubr.f32.gmra.mrb[0].mxu0 %v1857
      %v1982 = vpop.f32.mrb[0].mxu0
      %v1983 = vadd.f32 %v1909, %v1982
      %v1984 = vpop.f32.mrb[0].mxu0
      %1985 = vmatprep.mubr.f32.mxu0 0.0
      %1986 = vmatmul.mubr.f32.gmra.mrb[0].mxu0 %v1858
      %v1987 = vpop.f32.mrb[0].mxu0
      %v1988 = vadd.f32 %v1909, %v1987
      %v1989 = vpop.f32.mrb[0].mxu0
      %1990 = vmatprep.mubr.f32.mxu0 0.0
      %1991 = vmatmul.mubr.f32.gmra.mrb[0].mxu0 %v1859
      %v1992 = vpop.f32.mrb[0].mxu0
      %v1993 = vadd.f32 %v1909, %v1992
      %v1994 = vpop.f32.mrb[0].mxu0
      %1995 = vmatprep.mubr.f32.mxu0 0.0
      %1996 = vmatmul.mubr.f32.gmra.mrb[0].mxu0 %v1860
      %v1997 = vpop.f32.mrb[0].mxu0
      %v1998 = vadd.f32 %v1909, %v1997
      %v1999 = vpop.f32.mrb[0].mxu0
      %2000 = vmatprep.mubr.f32.mxu0 0.0
      %2001 = vmatmul.mubr.f32.gmra.mrb[0].mxu0 %v1861
      %v2002 = vpop.f32.mrb[0].mxu0
      %v2003 = vadd.f32 %v1909, %v2002
      %v2004 = vpop.f32.mrb[0].mxu0
      %2005 = vmatprep.mubr.f32.mxu0 0.0
      %2006 = vmatmul.mubr.f32.gmra.mrb[0].mxu0 %v1862
      %v2007 = vpop.f32.mrb[0].mxu0
      %v2008 = vadd.f32 %v1909, %v2007
      %v2009 = vpop.f32.mrb[0].mxu0
      %2010 = vmatprep.mubr.f32.mxu0 0.0
      %2011 = vmatmul.mubr.f32.gmra.mrb[0].mxu0 %v1863
      %v2012 = vpop.f32.mrb[0].mxu0
      %v2013 = vadd.f32 %v1909, %v2012
      %v2014 = vpop.f32.mrb[0].mxu0
      %2015 = vmatprep.mubr.f32.mxu0 0.0
      %2016 = vmatmul.mubr.f32.gmra.mrb[0].mxu0 %v1864
      %v2017 = vpop.f32.mrb[0].mxu0
      %v2018 = vadd.f32 %v1909, %v2017
      %v2019 = vpop.f32.mrb[0].mxu0
      %2020 = vmatprep.mubr.f32.mxu0 0.0
      %2021 = vmatmul.mubr.f32.gmra.mrb[0].mxu0 %v1865
      %v2022 = vpop.f32.mrb[0].mxu0
      %v2023 = vadd.f32 %v1909, %v2022
      %v2024 = vpop.f32.mrb[0].mxu0
      %2025 = vmatprep.mubr.f32.mxu0 0.0
      %2026 = vmatmul.mubr.f32.gmra.mrb[0].mxu0 %v1866
      %v2027 = vpop.f32.mrb[0].mxu0
      %v2028 = vadd.f32 %v1909, %v2027
      %v2029 = vpop.f32.mrb[0].mxu0
      %2030 = vmatprep.mubr.f32.mxu0 0.0
      %2031 = vmatmul.mubr.f32.gmra.mrb[0].mxu0 %v1867
      %v2032 = vpop.f32.mrb[0].mxu0
      %v2033 = vadd.f32 %v1909, %v2032
      %v2034 = vpop.f32.mrb[0].mxu0
      %2035 = vmatprep.mubr.f32.mxu0 0.0
      %2036 = vmatmul.mubr.f32.gmra.mrb[0].mxu0 %v1868
      %v2037 = vpop.f32.mrb[0].mxu0
      %v2038 = vadd.f32 %v1909, %v2037
      %v2039 = vpop.f32.mrb[0].mxu0
      %2040 = vmatprep.mubr.f32.mxu0 0.0
      %2041 = vmatmul.mubr.f32.gmra.mrb[0].mxu0 %v1869
      %v2042 = vpop.f32.mrb[0].mxu0
      %v2043 = vadd.f32 %v1909, %v2042
      %v2044 = vpop.f32.mrb[0].mxu0
      %2045 = vmatprep.mubr.f32.mxu0 0.0
      %2046 = vmatmul.mubr.f32.gmra.mrb[0].mxu0 %v1870
      %v2047 = vpop.f32.mrb[0].mxu0
      %v2048 = vadd.f32 %v1909, %v2047
      %v2049 = vpop.f32.mrb[0].mxu0
      %2050 = vmatprep.mubr.f32.mxu0 0.0
      %2051 = vmatmul.mubr.f32.gmra.mrb[0].mxu0 %v1871
      %v2052 = vpop.f32.mrb[0].mxu0
      %v2053 = vadd.f32 %v1909, %v2052
      %v2054 = vpop.f32.mrb[0].mxu0
      %2055 = vmatprep.mubr.f32.mxu0 0.0
      %2056 = vmatmul.mubr.f32.gmra.mrb[0].mxu0 %v1872
      %v2057 = vpop.f32.mrb[0].mxu0
      %v2058 = vadd.f32 %v1909, %v2057
      %v2059 = vpop.f32.mrb[0].mxu0
      %2060 = vmatprep.mubr.f32.mxu0 0.0
      %2061 = vmatmul.mubr.f32.gmra.mrb[0].mxu0 %v1873
      %v2062 = vpop.f32.mrb[0].mxu0
      %v2063 = vadd.f32 %v1909, %v2062
      %v2064 = vpop.f32.mrb[0].mxu0
      %2065 = vmatprep.mubr.f32.mxu0 0.0
      %2066 = vmatmul.mubr.f32.gmra.mrb[0].mxu0 %v1874
      %v2067 = vpop.f32.mrb[0].mxu0
      %v2068 = vadd.f32 %v1909, %v2067
      %v2069 = vpop.f32.mrb[0].mxu0
      %2070 = vmatprep.mubr.f32.mxu0 0.0
      %2071 = vmatmul.mubr.f32.gmra.mrb[0].mxu0 %v1875
      %v2072 = vpop.f32.mrb[0].mxu0
      %v2073 = vadd.f32 %v1909, %v2072
      %v2074 = vpop.f32.mrb[0].mxu0
      %2075 = vmatprep.mubr.f32.mxu0 0.0
      %2076 = vmatmul.mubr.f32.gmra.mrb[0].mxu0 %v1876
      %v2077 = vpop.f32.mrb[0].mxu0
      %v2078 = vadd.f32 %v1909, %v2077
      %v2079 = vpop.f32.mrb[0].mxu0
      %2080 = vmatprep.mubr.f32.mxu0 0.0
      %2081 = vmatmul.mubr.f32.gmra.mrb[0].mxu0 %v1877
      %v2082 = vpop.f32.mrb[0].mxu0
      %v2083 = vadd.f32 %v1909, %v2082
      %v2084 = vpop.f32.mrb[0].mxu0
      %2085 = vmatprep.mubr.f32.mxu0 0.0
      %2086 = vmatmul.mubr.f32.gmra.mrb[0].mxu0 %v1878
      %v2087 = vpop.f32.mrb[0].mxu0
      %v2088 = vadd.f32 %v1909, %v2087
      %v2089 = vpop.f32.mrb[0].mxu0
      %2090 = vmatprep.mubr.f32.mxu0 0.0
      %2091 = vmatmul.mubr.f32.gmra.mrb[0].mxu0 %v1879
      %v2092 = vpop.f32.mrb[0].mxu0
      %v2093 = vadd.f32 %v1909, %v2092
      %v2094 = vpop.f32.mrb[0].mxu0
      %2095 = vmatprep.mubr.f32.mxu0 0.0
      %2096 = vmatmul.mubr.f32.gmra.mrb[0].mxu0 %v1880
      %v2097 = vpop.f32.mrb[0].mxu0
      %v2098 = vadd.f32 %v1909, %v2097
      %v2099 = vpop.f32.mrb[0].mxu0
      %2100 = vmatprep.mubr.f32.mxu0 0.0
      %2101 = vmatmul.mubr.f32.gmra.mrb[0].mxu0 %v1881
      %v2102 = vpop.f32.mrb[0].mxu0
      %v2103 = vadd.f32 %v1909, %v2102
      %v2104 = vpop.f32.mrb[0].mxu0
      %2105 = vmatprep.mubr.f32.mxu0 0.0
      %2106 = vmatmul.mubr.f32.gmra.mrb[0].mxu0 %v1882
      %v2107 = vpop.f32.mrb[0].mxu0
      %v2108 = vadd.f32 %v1909, %v2107
      %v2109 = vpop.f32.mrb[0].mxu0
      %2110 = vmatprep.mubr.f32.mxu0 0.0
      %2111 = vmatmul.mubr.f32.gmra.mrb[0].mxu0 %v1883
      %v2112 = vpop.f32.mrb[0].mxu0
      %v2113 = vadd.f32 %v1909, %v2112
      %v2114 = vpop.f32.mrb[0].mxu0
      %2115 = vmatprep.mubr.f32.mxu0 0.0
      %2116 = vmatmul.mubr.f32.gmra.mrb[0].mxu0 %v1884
      %v2117 = vpop.f32.mrb[0].mxu0
      %v2118 = vadd.f32 %v1909, %v2117
      %v2119 = vpop.f32.mrb[0].mxu0
      %2120 = vmatprep.mubr.f32.mxu0 0.0
      %2121 = vmatmul.mubr.f32.gmra.mrb[0].mxu0 %v1885
      %v2122 = vpop.f32.mrb[0].mxu0
      %v2123 = vadd.f32 %v1909, %v2122
      %v2124 = vpop.f32.mrb[0].mxu0
      %2125 = vmatprep.mubr.f32.mxu0 0.0
      %2126 = vmatmul.mubr.f32.gmra.mrb[0].mxu0 %v1886
      %v2127 = vpop.f32.mrb[0].mxu0
      %v2128 = vadd.f32 %v1909, %v2127
      %v2129 = vpop.f32.mrb[0].mxu0
      %2130 = vmatprep.mubr.f32.mxu0 0.0
      %2131 = vmatmul.mubr.f32.gmra.mrb[0].mxu0 %v1887
      %v2132 = vpop.f32.mrb[0].mxu0
      %v2133 = vadd.f32 %v1909, %v2132
      %v2134 = vpop.f32.mrb[0].mxu0
      %2135 = vdwg.mxu0
      %v2136 = vmax.f32 %v1978, 0.0
      %v2137 = vmax.f32 %v1983, 0.0
      %v2138 = vmax.f32 %v1988, 0.0
      %v2139 = vmax.f32 %v1993, 0.0
      %v2140 = vmax.f32 %v1998, 0.0
      %v2141 = vmax.f32 %v2003, 0.0
      %v2142 = vmax.f32 %v2008, 0.0
      %v2143 = vmax.f32 %v2013, 0.0
      %v2144 = vmax.f32 %v2018, 0.0
      %v2145 = vmax.f32 %v2023, 0.0
      %v2146 = vmax.f32 %v2028, 0.0
      %v2147 = vmax.f32 %v2033, 0.0
      %v2148 = vmax.f32 %v2038, 0.0
      %v2149 = vmax.f32 %v2043, 0.0
      %v2150 = vmax.f32 %v2048, 0.0
      %v2151 = vmax.f32 %v2053, 0.0
      %v2152 = vmax.f32 %v2058, 0.0
      %v2153 = vmax.f32 %v2063, 0.0
      %v2154 = vmax.f32 %v2068, 0.0
      %v2155 = vmax.f32 %v2073, 0.0
      %v2156 = vmax.f32 %v2078, 0.0
      %v2157 = vmax.f32 %v2083, 0.0
      %v2158 = vmax.f32 %v2088, 0.0
      %v2159 = vmax.f32 %v2093, 0.0
      %v2160 = vmax.f32 %v2098, 0.0
      %v2161 = vmax.f32 %v2103, 0.0
      %v2162 = vmax.f32 %v2108, 0.0
      %v2163 = vmax.f32 %v2113, 0.0
      %v2164 = vmax.f32 %v2118, 0.0
      %v2165 = vmax.f32 %v2123, 0.0
      %v2166 = vmax.f32 %v2128, 0.0
      %v2167 = vmax.f32 %v2133, 0.0
      %v2168 = vld [vmem:[%s10] sm:$0xff]
      %v2169 = vld [vmem:[%s10 + $0x8] sm:$0xff]
      %v2170 = vld [vmem:[%s10 + $0x10] sm:$0xff]
      %v2171 = vld [vmem:[%s10 + $0x18] sm:$0xff]
      %v2172 = vld [vmem:[%s10 + $0x20] sm:$0xff]
      %v2173 = vld [vmem:[%s10 + $0x28] sm:$0xff]
      %v2174 = vld [vmem:[%s10 + $0x30] sm:$0xff]
      %v2175 = vld [vmem:[%s10 + $0x38] sm:$0xff]
      %v2176 = vld [vmem:[%s10 + $0x40] sm:$0xff]
      %v2177 = vld [vmem:[%s10 + $0x48] sm:$0xff]
      %v2178 = vld [vmem:[%s10 + $0x50] sm:$0xff]
      %v2179 = vld [vmem:[%s10 + $0x58] sm:$0xff]
      %v2180 = vld [vmem:[%s10 + $0x60] sm:$0xff]
      %v2181 = vld [vmem:[%s10 + $0x68] sm:$0xff]
      %v2182 = vld [vmem:[%s10 + $0x70] sm:$0xff]
      %v2183 = vld [vmem:[%s10 + $0x78] sm:$0xff]
      %v2184 = vld [vmem:[%s11] sm:$0xff]
      %v2185 = vld [vmem:[%s11 + $0x8] sm:$0xff]
      %v2186 = vld [vmem:[%s11 + $0x10] sm:$0xff]
      %v2187 = vld [vmem:[%s11 + $0x18] sm:$0xff]
      %v2188 = vld [vmem:[%s11 + $0x20] sm:$0xff]
      %v2189 = vld [vmem:[%s11 + $0x28] sm:$0xff]
      %v2190 = vld [vmem:[%s11 + $0x30] sm:$0xff]
      %v2191 = vld [vmem:[%s11 + $0x38] sm:$0xff]
      %v2192 = vld [vmem:[%s11 + $0x40] sm:$0xff]
      %v2193 = vld [vmem:[%s11 + $0x48] sm:$0xff]
      %v2194 = vld [vmem:[%s11 + $0x50] sm:$0xff]
      %v2195 = vld [vmem:[%s11 + $0x58] sm:$0xff]
      %v2196 = vld [vmem:[%s11 + $0x60] sm:$0xff]
      %v2197 = vld [vmem:[%s11 + $0x68] sm:$0xff]
      %v2198 = vld [vmem:[%s11 + $0x70] sm:$0xff]
      %v2199 = vld [vmem:[%s11 + $0x78] sm:$0xff]
      %v2200 = vld [vmem:[%s11 + $0x80] sm:$0xff]
      %v2201 = vld [vmem:[%s11 + $0x88] sm:$0xff]
      %v2202 = vld [vmem:[%s11 + $0x90] sm:$0xff]
      %v2203 = vld [vmem:[%s11 + $0x98] sm:$0xff]
      %v2204 = vld [vmem:[%s11 + $0xa0] sm:$0xff]
      %v2205 = vld [vmem:[%s11 + $0xa8] sm:$0xff]
      %v2206 = vld [vmem:[%s11 + $0xb0] sm:$0xff]
      %v2207 = vld [vmem:[%s11 + $0xb8] sm:$0xff]
      %2208 = vmatprep.subr.mxu0 0.0
      %2209 = vmatpush1.msra.mxu0 %v2184
      %2210 = vmatprep.subr.mxu0 0.0
      %2211 = vmatpush1.msra.mxu0 %v2185
      %2212 = vmatprep.subr.mxu0 0.0
      %2213 = vmatpush1.msra.mxu0 %v2186
      %2214 = vmatprep.subr.mxu0 0.0
      %2215 = vmatpush1.msra.mxu0 %v2187
      %2216 = vmatprep.subr.mxu0 0.0
      %2217 = vmatpush1.msra.mxu0 %v2188
      %2218 = vmatprep.subr.mxu0 0.0
      %2219 = vmatpush1.msra.mxu0 %v2189
      %2220 = vmatprep.subr.mxu0 0.0
      %2221 = vmatpush1.msra.mxu0 %v2190
      %2222 = vmatprep.subr.mxu0 0.0
      %2223 = vmatpush1.msra.mxu0 %v2191
      %2224 = vmatprep.subr.mxu0 0.0
      %2225 = vmatpush1.msra.mxu0 %v2192
      %2226 = vmatprep.subr.mxu0 0.0
      %2227 = vmatpush1.msra.mxu0 %v2193
      %2228 = vmatprep.subr.mxu0 0.0
      %2229 = vmatpush1.msra.mxu0 %v2194
      %2230 = vmatprep.subr.mxu0 0.0
      %2231 = vmatpush1.msra.mxu0 %v2195
      %2232 = vmatprep.subr.mxu0 0.0
      %2233 = vmatpush1.msra.mxu0 %v2196
      %2234 = vmatprep.subr.mxu0 0.0
      %2235 = vmatpush1.msra.mxu0 %v2197
      %2236 = vmatprep.subr.mxu0 0.0
      %2237 = vmatpush1.msra.mxu0 %v2198
      %2238 = vmatprep.subr.mxu0 0.0
      %2239 = vmatpush1.msra.mxu0 %v2199
      %2240 = vmatprep.subr.mxu0 0.0
      %2241 = vmatpush1.msra.mxu0 %v2200
      %2242 = vmatprep.subr.mxu0 0.0
      %2243 = vmatpush1.msra.mxu0 %v2201
      %2244 = vmatprep.subr.mxu0 0.0
      %2245 = vmatpush1.msra.mxu0 %v2202
      %2246 = vmatprep.subr.mxu0 0.0
      %2247 = vmatpush1.msra.mxu0 %v2203
      %2248 = vmatprep.subr.mxu0 0.0
      %2249 = vmatpush1.msra.mxu0 %v2204
      %2250 = vmatprep.subr.mxu0 0.0
      %2251 = vmatpush1.msra.mxu0 %v2205
      %2252 = vmatprep.subr.mxu0 0.0
      %2253 = vmatpush1.msra.mxu0 %v2206
      %2254 = vmatprep.subr.mxu0 0.0
      %2255 = vmatpush1.msra.mxu0 %v2207
      %2256 = vmatprep.subr.mxu0 0.0
      %2257 = vmatpush1.msra.mxu0 0.0
      %2258 = vmatprep.subr.mxu0 0.0
      %2259 = vmatpush1.msra.mxu0 0.0
      %2260 = vmatprep.subr.mxu0 0.0
      %2261 = vmatpush1.msra.mxu0 0.0
      %2262 = vmatprep.subr.mxu0 0.0
      %2263 = vmatpush1.msra.mxu0 0.0
      %2264 = vmatprep.subr.mxu0 0.0
      %2265 = vmatpush1.msra.mxu0 0.0
      %2266 = vmatprep.subr.mxu0 0.0
      %2267 = vmatpush1.msra.mxu0 0.0
      %2268 = vmatprep.subr.mxu0 0.0
      %2269 = vmatpush1.msra.mxu0 0.0
      %2270 = vmatprep.subr.mxu0 0.0
      %2271 = vmatpush1.msra.mxu0 0.0
      %2272 = vmatprep.mubr.f32.mxu0 %v976
      %2273 = vmatmul.mubr.f32.gmra.mrb[0].mxu0 %v847
      %v2274 = vpop.f32.mrb[0].mxu0
      %v2275 = vadd.f32 0.0, %v2274
      %v2276 = vpop.f32.mrb[0].mxu0
      %2277 = vmatprep.mubr.f32.mxu0 %v979
      %2278 = vmatmul.mubr.f32.gmra.mrb[0].mxu0 %v849
      %v2279 = vpop.f32.mrb[0].mxu0
      %v2280 = vadd.f32 0.0, %v2279
      %v2281 = vpop.f32.mrb[0].mxu0
      %2282 = vmatprep.mubr.f32.mxu0 %v982
      %2283 = vmatmul.mubr.f32.gmra.mrb[0].mxu0 %v851
      %v2284 = vpop.f32.mrb[0].mxu0
      %v2285 = vadd.f32 0.0, %v2284
      %v2286 = vpop.f32.mrb[0].mxu0
      %2287 = vmatprep.mubr.f32.mxu0 %v985
      %2288 = vmatmul.mubr.f32.gmra.mrb[0].mxu0 %v853
      %v2289 = vpop.f32.mrb[0].mxu0
      %v2290 = vadd.f32 0.0, %v2289
      %v2291 = vpop.f32.mrb[0].mxu0
      %2292 = vmatprep.mubr.f32.mxu0 %v988
      %2293 = vmatmul.mubr.f32.gmra.mrb[0].mxu0 %v855
      %v2294 = vpop.f32.mrb[0].mxu0
      %v2295 = vadd.f32 0.0, %v2294
      %v2296 = vpop.f32.mrb[0].mxu0
      %2297 = vmatprep.mubr.f32.mxu0 %v991
      %2298 = vmatmul.mubr.f32.gmra.mrb[0].mxu0 %v857
      %v2299 = vpop.f32.mrb[0].mxu0
      %v2300 = vadd.f32 0.0, %v2299
      %v2301 = vpop.f32.mrb[0].mxu0
      %2302 = vmatprep.mubr.f32.mxu0 %v994
      %2303 = vmatmul.mubr.f32.gmra.mrb[0].mxu0 %v859
      %v2304 = vpop.f32.mrb[0].mxu0
      %v2305 = vadd.f32 0.0, %v2304
      %v2306 = vpop.f32.mrb[0].mxu0
      %2307 = vmatprep.mubr.f32.mxu0 %v997
      %2308 = vmatmul.mubr.f32.gmra.mrb[0].mxu0 %v861
      %v2309 = vpop.f32.mrb[0].mxu0
      %v2310 = vadd.f32 0.0, %v2309
      %v2311 = vpop.f32.mrb[0].mxu0
      %2312 = vmatprep.mubr.f32.mxu0 %v1000
      %2313 = vmatmul.mubr.f32.gmra.mrb[0].mxu0 %v863
      %v2314 = vpop.f32.mrb[0].mxu0
      %v2315 = vadd.f32 0.0, %v2314
      %v2316 = vpop.f32.mrb[0].mxu0
      %2317 = vmatprep.mubr.f32.mxu0 %v1003
      %2318 = vmatmul.mubr.f32.gmra.mrb[0].mxu0 %v865
      %v2319 = vpop.f32.mrb[0].mxu0
      %v2320 = vadd.f32 0.0, %v2319
      %v2321 = vpop.f32.mrb[0].mxu0
      %2322 = vmatprep.mubr.f32.mxu0 %v1006
      %2323 = vmatmul.mubr.f32.gmra.mrb[0].mxu0 %v867
      %v2324 = vpop.f32.mrb[0].mxu0
      %v2325 = vadd.f32 0.0, %v2324
      %v2326 = vpop.f32.mrb[0].mxu0
      %2327 = vmatprep.mubr.f32.mxu0 %v1009
      %2328 = vmatmul.mubr.f32.gmra.mrb[0].mxu0 %v869
      %v2329 = vpop.f32.mrb[0].mxu0
      %v2330 = vadd.f32 0.0, %v2329
      %v2331 = vpop.f32.mrb[0].mxu0
      %2332 = vmatprep.mubr.f32.mxu0 %v1012
      %2333 = vmatmul.mubr.f32.gmra.mrb[0].mxu0 %v871
      %v2334 = vpop.f32.mrb[0].mxu0
      %v2335 = vadd.f32 0.0, %v2334
      %v2336 = vpop.f32.mrb[0].mxu0
      %2337 = vmatprep.mubr.f32.mxu0 %v1015
      %2338 = vmatmul.mubr.f32.gmra.mrb[0].mxu0 %v873
      %v2339 = vpop.f32.mrb[0].mxu0
      %v2340 = vadd.f32 0.0, %v2339
      %v2341 = vpop.f32.mrb[0].mxu0
      %2342 = vmatprep.mubr.f32.mxu0 %v1018
      %2343 = vmatmul.mubr.f32.gmra.mrb[0].mxu0 %v875
      %v2344 = vpop.f32.mrb[0].mxu0
      %v2345 = vadd.f32 0.0, %v2344
      %v2346 = vpop.f32.mrb[0].mxu0
      %2347 = vmatprep.mubr.f32.mxu0 %v1021
      %2348 = vmatmul.mubr.f32.gmra.mrb[0].mxu0 %v877
      %v2349 = vpop.f32.mrb[0].mxu0
      %v2350 = vadd.f32 0.0, %v2349
      %v2351 = vpop.f32.mrb[0].mxu0
      %2352 = vmatprep.mubr.f32.mxu0 %v1024
      %2353 = vmatmul.mubr.f32.gmra.mrb[0].mxu0 %v879
      %v2354 = vpop.f32.mrb[0].mxu0
      %v2355 = vadd.f32 0.0, %v2354
      %v2356 = vpop.f32.mrb[0].mxu0
      %2357 = vmatprep.mubr.f32.mxu0 %v1027
      %2358 = vmatmul.mubr.f32.gmra.mrb[0].mxu0 %v881
      %v2359 = vpop.f32.mrb[0].mxu0
      %v2360 = vadd.f32 0.0, %v2359
      %v2361 = vpop.f32.mrb[0].mxu0
      %2362 = vmatprep.mubr.f32.mxu0 %v1030
      %2363 = vmatmul.mubr.f32.gmra.mrb[0].mxu0 %v883
      %v2364 = vpop.f32.mrb[0].mxu0
      %v2365 = vadd.f32 0.0, %v2364
      %v2366 = vpop.f32.mrb[0].mxu0
      %2367 = vmatprep.mubr.f32.mxu0 %v1033
      %2368 = vmatmul.mubr.f32.gmra.mrb[0].mxu0 %v885
      %v2369 = vpop.f32.mrb[0].mxu0
      %v2370 = vadd.f32 0.0, %v2369
      %v2371 = vpop.f32.mrb[0].mxu0
      %2372 = vmatprep.mubr.f32.mxu0 %v1036
      %2373 = vmatmul.mubr.f32.gmra.mrb[0].mxu0 %v887
      %v2374 = vpop.f32.mrb[0].mxu0
      %v2375 = vadd.f32 0.0, %v2374
      %v2376 = vpop.f32.mrb[0].mxu0
      %2377 = vmatprep.mubr.f32.mxu0 %v1039
      %2378 = vmatmul.mubr.f32.gmra.mrb[0].mxu0 %v889
      %v2379 = vpop.f32.mrb[0].mxu0
      %v2380 = vadd.f32 0.0, %v2379
      %v2381 = vpop.f32.mrb[0].mxu0
      %2382 = vmatprep.mubr.f32.mxu0 %v1042
      %2383 = vmatmul.mubr.f32.gmra.mrb[0].mxu0 %v891
      %v2384 = vpop.f32.mrb[0].mxu0
      %v2385 = vadd.f32 0.0, %v2384
      %v2386 = vpop.f32.mrb[0].mxu0
      %2387 = vmatprep.mubr.f32.mxu0 %v1045
      %2388 = vmatmul.mubr.f32.gmra.mrb[0].mxu0 %v893
      %v2389 = vpop.f32.mrb[0].mxu0
      %v2390 = vadd.f32 0.0, %v2389
      %v2391 = vpop.f32.mrb[0].mxu0
      %2392 = vmatprep.mubr.f32.mxu0 %v1048
      %2393 = vmatmul.mubr.f32.gmra.mrb[0].mxu0 %v895
      %v2394 = vpop.f32.mrb[0].mxu0
      %v2395 = vadd.f32 0.0, %v2394
      %v2396 = vpop.f32.mrb[0].mxu0
      %2397 = vmatprep.mubr.f32.mxu0 %v1051
      %2398 = vmatmul.mubr.f32.gmra.mrb[0].mxu0 %v897
      %v2399 = vpop.f32.mrb[0].mxu0
      %v2400 = vadd.f32 0.0, %v2399
      %v2401 = vpop.f32.mrb[0].mxu0
      %2402 = vmatprep.mubr.f32.mxu0 %v1054
      %2403 = vmatmul.mubr.f32.gmra.mrb[0].mxu0 %v899
      %v2404 = vpop.f32.mrb[0].mxu0
      %v2405 = vadd.f32 0.0, %v2404
      %v2406 = vpop.f32.mrb[0].mxu0
      %2407 = vmatprep.mubr.f32.mxu0 %v1057
      %2408 = vmatmul.mubr.f32.gmra.mrb[0].mxu0 %v901
      %v2409 = vpop.f32.mrb[0].mxu0
      %v2410 = vadd.f32 0.0, %v2409
      %v2411 = vpop.f32.mrb[0].mxu0
      %2412 = vmatprep.mubr.f32.mxu0 %v1060
      %2413 = vmatmul.mubr.f32.gmra.mrb[0].mxu0 %v903
      %v2414 = vpop.f32.mrb[0].mxu0
      %v2415 = vadd.f32 0.0, %v2414
      %v2416 = vpop.f32.mrb[0].mxu0
      %2417 = vmatprep.mubr.f32.mxu0 %v1063
      %2418 = vmatmul.mubr.f32.gmra.mrb[0].mxu0 %v905
      %v2419 = vpop.f32.mrb[0].mxu0
      %v2420 = vadd.f32 0.0, %v2419
      %v2421 = vpop.f32.mrb[0].mxu0
      %2422 = vmatprep.mubr.f32.mxu0 %v1066
      %2423 = vmatmul.mubr.f32.gmra.mrb[0].mxu0 %v907
      %v2424 = vpop.f32.mrb[0].mxu0
      %v2425 = vadd.f32 0.0, %v2424
      %v2426 = vpop.f32.mrb[0].mxu0
      %2427 = vmatprep.mubr.f32.mxu0 %v1069
      %2428 = vmatmul.mubr.f32.gmra.mrb[0].mxu0 %v909
      %v2429 = vpop.f32.mrb[0].mxu0
      %v2430 = vadd.f32 0.0, %v2429
      %v2431 = vpop.f32.mrb[0].mxu0
      %2432 = vdwg.mxu0
      %2433 = vmatprep.subr.mxu0 0.0
      %2434 = vmatpush1.msra.mxu0 %v2168
      %2435 = vmatprep.subr.mxu0 0.0
      %2436 = vmatpush1.msra.mxu0 %v2169
      %2437 = vmatprep.subr.mxu0 0.0
      %2438 = vmatpush1.msra.mxu0 %v2170
      %2439 = vmatprep.subr.mxu0 0.0
      %2440 = vmatpush1.msra.mxu0 %v2171
      %2441 = vmatprep.subr.mxu0 0.0
      %2442 = vmatpush1.msra.mxu0 %v2172
      %2443 = vmatprep.subr.mxu0 0.0
      %2444 = vmatpush1.msra.mxu0 %v2173
      %2445 = vmatprep.subr.mxu0 0.0
      %2446 = vmatpush1.msra.mxu0 %v2174
      %2447 = vmatprep.subr.mxu0 0.0
      %2448 = vmatpush1.msra.mxu0 %v2175
      %2449 = vmatprep.subr.mxu0 0.0
      %2450 = vmatpush1.msra.mxu0 %v2176
      %2451 = vmatprep.subr.mxu0 0.0
      %2452 = vmatpush1.msra.mxu0 %v2177
      %2453 = vmatprep.subr.mxu0 0.0
      %2454 = vmatpush1.msra.mxu0 %v2178
      %2455 = vmatprep.subr.mxu0 0.0
      %2456 = vmatpush1.msra.mxu0 %v2179
      %2457 = vmatprep.subr.mxu0 0.0
      %2458 = vmatpush1.msra.mxu0 %v2180
      %2459 = vmatprep.subr.mxu0 0.0
      %2460 = vmatpush1.msra.mxu0 %v2181
      %2461 = vmatprep.subr.mxu0 0.0
      %2462 = vmatpush1.msra.mxu0 %v2182
      %2463 = vmatprep.subr.mxu0 0.0
      %2464 = vmatpush1.msra.mxu0 %v2183
      %2465 = vmatprep.subr.mxu0 0.0
      %2466 = vmatpush1.msra.mxu0 0.0
      %2467 = vmatprep.subr.mxu0 0.0
      %2468 = vmatpush1.msra.mxu0 0.0
      %2469 = vmatprep.subr.mxu0 0.0
      %2470 = vmatpush1.msra.mxu0 0.0
      %2471 = vmatprep.subr.mxu0 0.0
      %2472 = vmatpush1.msra.mxu0 0.0
      %2473 = vmatprep.subr.mxu0 0.0
      %2474 = vmatpush1.msra.mxu0 0.0
      %2475 = vmatprep.subr.mxu0 0.0
      %2476 = vmatpush1.msra.mxu0 0.0
      %2477 = vmatprep.subr.mxu0 0.0
      %2478 = vmatpush1.msra.mxu0 0.0
      %2479 = vmatprep.subr.mxu0 0.0
      %2480 = vmatpush1.msra.mxu0 0.0
      %2481 = vmatprep.subr.mxu0 0.0
      %2482 = vmatpush1.msra.mxu0 0.0
      %2483 = vmatprep.subr.mxu0 0.0
      %2484 = vmatpush1.msra.mxu0 0.0
      %2485 = vmatprep.subr.mxu0 0.0
      %2486 = vmatpush1.msra.mxu0 0.0
      %2487 = vmatprep.subr.mxu0 0.0
      %2488 = vmatpush1.msra.mxu0 0.0
      %2489 = vmatprep.subr.mxu0 0.0
      %2490 = vmatpush1.msra.mxu0 0.0
      %2491 = vmatprep.subr.mxu0 0.0
      %2492 = vmatpush1.msra.mxu0 0.0
      %2493 = vmatprep.subr.mxu0 0.0
      %2494 = vmatpush1.msra.mxu0 0.0
      %2495 = vmatprep.subr.mxu0 0.0
      %2496 = vmatpush1.msra.mxu0 0.0
      %2497 = vmatprep.mubr.f32.mxu0 0.0
      %2498 = vmatmul.mubr.f32.gmra.mrb[0].mxu0 %v2136
      %v2499 = vpop.f32.mrb[0].mxu0
      %v2500 = vadd.f32 %v2275, %v2499
      %v2501 = vpop.f32.mrb[0].mxu0
      %2502 = vmatprep.mubr.f32.mxu0 0.0
      %2503 = vmatmul.mubr.f32.gmra.mrb[0].mxu0 %v2137
      %v2504 = vpop.f32.mrb[0].mxu0
      %v2505 = vadd.f32 %v2280, %v2504
      %v2506 = vpop.f32.mrb[0].mxu0
      %2507 = vmatprep.mubr.f32.mxu0 0.0
      %2508 = vmatmul.mubr.f32.gmra.mrb[0].mxu0 %v2138
      %v2509 = vpop.f32.mrb[0].mxu0
      %v2510 = vadd.f32 %v2285, %v2509
      %v2511 = vpop.f32.mrb[0].mxu0
      %2512 = vmatprep.mubr.f32.mxu0 0.0
      %2513 = vmatmul.mubr.f32.gmra.mrb[0].mxu0 %v2139
      %v2514 = vpop.f32.mrb[0].mxu0
      %v2515 = vadd.f32 %v2290, %v2514
      %v2516 = vpop.f32.mrb[0].mxu0
      %2517 = vmatprep.mubr.f32.mxu0 0.0
      %2518 = vmatmul.mubr.f32.gmra.mrb[0].mxu0 %v2140
      %v2519 = vpop.f32.mrb[0].mxu0
      %v2520 = vadd.f32 %v2295, %v2519
      %v2521 = vpop.f32.mrb[0].mxu0
      %2522 = vmatprep.mubr.f32.mxu0 0.0
      %2523 = vmatmul.mubr.f32.gmra.mrb[0].mxu0 %v2141
      %v2524 = vpop.f32.mrb[0].mxu0
      %v2525 = vadd.f32 %v2300, %v2524
      %v2526 = vpop.f32.mrb[0].mxu0
      %2527 = vmatprep.mubr.f32.mxu0 0.0
      %2528 = vmatmul.mubr.f32.gmra.mrb[0].mxu0 %v2142
      %v2529 = vpop.f32.mrb[0].mxu0
      %v2530 = vadd.f32 %v2305, %v2529
      %v2531 = vpop.f32.mrb[0].mxu0
      %2532 = vmatprep.mubr.f32.mxu0 0.0
      %2533 = vmatmul.mubr.f32.gmra.mrb[0].mxu0 %v2143
      %v2534 = vpop.f32.mrb[0].mxu0
      %v2535 = vadd.f32 %v2310, %v2534
      %v2536 = vpop.f32.mrb[0].mxu0
      %2537 = vmatprep.mubr.f32.mxu0 0.0
      %2538 = vmatmul.mubr.f32.gmra.mrb[0].mxu0 %v2144
      %v2539 = vpop.f32.mrb[0].mxu0
      %v2540 = vadd.f32 %v2315, %v2539
      %v2541 = vpop.f32.mrb[0].mxu0
      %2542 = vmatprep.mubr.f32.mxu0 0.0
      %2543 = vmatmul.mubr.f32.gmra.mrb[0].mxu0 %v2145
      %v2544 = vpop.f32.mrb[0].mxu0
      %v2545 = vadd.f32 %v2320, %v2544
      %v2546 = vpop.f32.mrb[0].mxu0
      %2547 = vmatprep.mubr.f32.mxu0 0.0
      %2548 = vmatmul.mubr.f32.gmra.mrb[0].mxu0 %v2146
      %v2549 = vpop.f32.mrb[0].mxu0
      %v2550 = vadd.f32 %v2325, %v2549
      %v2551 = vpop.f32.mrb[0].mxu0
      %2552 = vmatprep.mubr.f32.mxu0 0.0
      %2553 = vmatmul.mubr.f32.gmra.mrb[0].mxu0 %v2147
      %v2554 = vpop.f32.mrb[0].mxu0
      %v2555 = vadd.f32 %v2330, %v2554
      %v2556 = vpop.f32.mrb[0].mxu0
      %2557 = vmatprep.mubr.f32.mxu0 0.0
      %2558 = vmatmul.mubr.f32.gmra.mrb[0].mxu0 %v2148
      %v2559 = vpop.f32.mrb[0].mxu0
      %v2560 = vadd.f32 %v2335, %v2559
      %v2561 = vpop.f32.mrb[0].mxu0
      %2562 = vmatprep.mubr.f32.mxu0 0.0
      %2563 = vmatmul.mubr.f32.gmra.mrb[0].mxu0 %v2149
      %v2564 = vpop.f32.mrb[0].mxu0
      %v2565 = vadd.f32 %v2340, %v2564
      %v2566 = vpop.f32.mrb[0].mxu0
      %2567 = vmatprep.mubr.f32.mxu0 0.0
      %2568 = vmatmul.mubr.f32.gmra.mrb[0].mxu0 %v2150
      %v2569 = vpop.f32.mrb[0].mxu0
      %v2570 = vadd.f32 %v2345, %v2569
      %v2571 = vpop.f32.mrb[0].mxu0
      %2572 = vmatprep.mubr.f32.mxu0 0.0
      %2573 = vmatmul.mubr.f32.gmra.mrb[0].mxu0 %v2151
      %v2574 = vpop.f32.mrb[0].mxu0
      %v2575 = vadd.f32 %v2350, %v2574
      %v2576 = vpop.f32.mrb[0].mxu0
      %2577 = vmatprep.mubr.f32.mxu0 0.0
      %2578 = vmatmul.mubr.f32.gmra.mrb[0].mxu0 %v2152
      %v2579 = vpop.f32.mrb[0].mxu0
      %v2580 = vadd.f32 %v2355, %v2579
      %v2581 = vpop.f32.mrb[0].mxu0
      %2582 = vmatprep.mubr.f32.mxu0 0.0
      %2583 = vmatmul.mubr.f32.gmra.mrb[0].mxu0 %v2153
      %v2584 = vpop.f32.mrb[0].mxu0
      %v2585 = vadd.f32 %v2360, %v2584
      %v2586 = vpop.f32.mrb[0].mxu0
      %2587 = vmatprep.mubr.f32.mxu0 0.0
      %2588 = vmatmul.mubr.f32.gmra.mrb[0].mxu0 %v2154
      %v2589 = vpop.f32.mrb[0].mxu0
      %v2590 = vadd.f32 %v2365, %v2589
      %v2591 = vpop.f32.mrb[0].mxu0
      %2592 = vmatprep.mubr.f32.mxu0 0.0
      %2593 = vmatmul.mubr.f32.gmra.mrb[0].mxu0 %v2155
      %v2594 = vpop.f32.mrb[0].mxu0
      %v2595 = vadd.f32 %v2370, %v2594
      %v2596 = vpop.f32.mrb[0].mxu0
      %2597 = vmatprep.mubr.f32.mxu0 0.0
      %2598 = vmatmul.mubr.f32.gmra.mrb[0].mxu0 %v2156
      %v2599 = vpop.f32.mrb[0].mxu0
      %v2600 = vadd.f32 %v2375, %v2599
      %v2601 = vpop.f32.mrb[0].mxu0
      %2602 = vmatprep.mubr.f32.mxu0 0.0
      %2603 = vmatmul.mubr.f32.gmra.mrb[0].mxu0 %v2157
      %v2604 = vpop.f32.mrb[0].mxu0
      %v2605 = vadd.f32 %v2380, %v2604
      %v2606 = vpop.f32.mrb[0].mxu0
      %2607 = vmatprep.mubr.f32.mxu0 0.0
      %2608 = vmatmul.mubr.f32.gmra.mrb[0].mxu0 %v2158
      %v2609 = vpop.f32.mrb[0].mxu0
      %v2610 = vadd.f32 %v2385, %v2609
      %v2611 = vpop.f32.mrb[0].mxu0
      %2612 = vmatprep.mubr.f32.mxu0 0.0
      %2613 = vmatmul.mubr.f32.gmra.mrb[0].mxu0 %v2159
      %v2614 = vpop.f32.mrb[0].mxu0
      %v2615 = vadd.f32 %v2390, %v2614
      %v2616 = vpop.f32.mrb[0].mxu0
      %2617 = vmatprep.mubr.f32.mxu0 0.0
      %2618 = vmatmul.mubr.f32.gmra.mrb[0].mxu0 %v2160
      %v2619 = vpop.f32.mrb[0].mxu0
      %v2620 = vadd.f32 %v2395, %v2619
      %v2621 = vpop.f32.mrb[0].mxu0
      %2622 = vmatprep.mubr.f32.mxu0 0.0
      %2623 = vmatmul.mubr.f32.gmra.mrb[0].mxu0 %v2161
      %v2624 = vpop.f32.mrb[0].mxu0
      %v2625 = vadd.f32 %v2400, %v2624
      %v2626 = vpop.f32.mrb[0].mxu0
      %2627 = vmatprep.mubr.f32.mxu0 0.0
      %2628 = vmatmul.mubr.f32.gmra.mrb[0].mxu0 %v2162
      %v2629 = vpop.f32.mrb[0].mxu0
      %v2630 = vadd.f32 %v2405, %v2629
      %v2631 = vpop.f32.mrb[0].mxu0
      %2632 = vmatprep.mubr.f32.mxu0 0.0
      %2633 = vmatmul.mubr.f32.gmra.mrb[0].mxu0 %v2163
      %v2634 = vpop.f32.mrb[0].mxu0
      %v2635 = vadd.f32 %v2410, %v2634
      %v2636 = vpop.f32.mrb[0].mxu0
      %2637 = vmatprep.mubr.f32.mxu0 0.0
      %2638 = vmatmul.mubr.f32.gmra.mrb[0].mxu0 %v2164
      %v2639 = vpop.f32.mrb[0].mxu0
      %v2640 = vadd.f32 %v2415, %v2639
      %v2641 = vpop.f32.mrb[0].mxu0
      %2642 = vmatprep.mubr.f32.mxu0 0.0
      %2643 = vmatmul.mubr.f32.gmra.mrb[0].mxu0 %v2165
      %v2644 = vpop.f32.mrb[0].mxu0
      %v2645 = vadd.f32 %v2420, %v2644
      %v2646 = vpop.f32.mrb[0].mxu0
      %2647 = vmatprep.mubr.f32.mxu0 0.0
      %2648 = vmatmul.mubr.f32.gmra.mrb[0].mxu0 %v2166
      %v2649 = vpop.f32.mrb[0].mxu0
      %v2650 = vadd.f32 %v2425, %v2649
      %v2651 = vpop.f32.mrb[0].mxu0
      %2652 = vmatprep.mubr.f32.mxu0 0.0
      %2653 = vmatmul.mubr.f32.gmra.mrb[0].mxu0 %v2167
      %v2654 = vpop.f32.mrb[0].mxu0
      %v2655 = vadd.f32 %v2430, %v2654
      %v2656 = vpop.f32.mrb[0].mxu0
      %2657 = vdwg.mxu0
      %v2658 = vld [vmem:[%s12] sm:$0x1]
      %v2660 = vlaneseq
      %v2661 = vshrl.u32 %v2660, 7
      %v2662 = vsub.s32 0, %v2661
      %v2663 = vrot.slane %v2658, %v2662
      %v2665 = vadd.f32 %v2500, %v2663
      %v2666 = vadd.f32 %v2505, %v2663
      %v2667 = vadd.f32 %v2510, %v2663
      %v2668 = vadd.f32 %v2515, %v2663
      %v2669 = vadd.f32 %v2520, %v2663
      %v2670 = vadd.f32 %v2525, %v2663
      %v2671 = vadd.f32 %v2530, %v2663
      %v2672 = vadd.f32 %v2535, %v2663
      %v2673 = vadd.f32 %v2540, %v2663
      %v2674 = vadd.f32 %v2545, %v2663
      %v2675 = vadd.f32 %v2550, %v2663
      %v2676 = vadd.f32 %v2555, %v2663
      %v2677 = vadd.f32 %v2560, %v2663
      %v2678 = vadd.f32 %v2565, %v2663
      %v2679 = vadd.f32 %v2570, %v2663
      %v2680 = vadd.f32 %v2575, %v2663
      %v2681 = vadd.f32 %v2580, %v2663
      %v2682 = vadd.f32 %v2585, %v2663
      %v2683 = vadd.f32 %v2590, %v2663
      %v2684 = vadd.f32 %v2595, %v2663
      %v2685 = vadd.f32 %v2600, %v2663
      %v2686 = vadd.f32 %v2605, %v2663
      %v2687 = vadd.f32 %v2610, %v2663
      %v2688 = vadd.f32 %v2615, %v2663
      %v2689 = vadd.f32 %v2620, %v2663
      %v2690 = vadd.f32 %v2625, %v2663
      %v2691 = vadd.f32 %v2630, %v2663
      %v2692 = vadd.f32 %v2635, %v2663
      %v2693 = vadd.f32 %v2640, %v2663
      %v2694 = vadd.f32 %v2645, %v2663
      %v2695 = vadd.f32 %v2650, %v2663
      %v2696 = vadd.f32 %v2655, %v2663
      %v2697 = vmax.f32 %v2665, 0.0
      %v2698 = vmax.f32 %v2666, 0.0
      %v2699 = vmax.f32 %v2667, 0.0
      %v2700 = vmax.f32 %v2668, 0.0
      %v2701 = vmax.f32 %v2669, 0.0
      %v2702 = vmax.f32 %v2670, 0.0
      %v2703 = vmax.f32 %v2671, 0.0
      %v2704 = vmax.f32 %v2672, 0.0
      %v2705 = vmax.f32 %v2673, 0.0
      %v2706 = vmax.f32 %v2674, 0.0
      %v2707 = vmax.f32 %v2675, 0.0
      %v2708 = vmax.f32 %v2676, 0.0
      %v2709 = vmax.f32 %v2677, 0.0
      %v2710 = vmax.f32 %v2678, 0.0
      %v2711 = vmax.f32 %v2679, 0.0
      %v2712 = vmax.f32 %v2680, 0.0
      %v2713 = vmax.f32 %v2681, 0.0
      %v2714 = vmax.f32 %v2682, 0.0
      %v2715 = vmax.f32 %v2683, 0.0
      %v2716 = vmax.f32 %v2684, 0.0
      %v2717 = vmax.f32 %v2685, 0.0
      %v2718 = vmax.f32 %v2686, 0.0
      %v2719 = vmax.f32 %v2687, 0.0
      %v2720 = vmax.f32 %v2688, 0.0
      %v2721 = vmax.f32 %v2689, 0.0
      %v2722 = vmax.f32 %v2690, 0.0
      %v2723 = vmax.f32 %v2691, 0.0
      %v2724 = vmax.f32 %v2692, 0.0
      %v2725 = vmax.f32 %v2693, 0.0
      %v2726 = vmax.f32 %v2694, 0.0
      %v2727 = vmax.f32 %v2695, 0.0
      %v2728 = vmax.f32 %v2696, 0.0
      %v2729 = vld [vmem:[%s13] sm:$0xff]
      %v2730 = vld [vmem:[%s13 + $0x8] sm:$0xff]
      %v2731 = vld [vmem:[%s13 + $0x10] sm:$0xff]
      %v2732 = vld [vmem:[%s13 + $0x18] sm:$0xff]
      %v2733 = vld [vmem:[%s13 + $0x20] sm:$0xff]
      %v2734 = vld [vmem:[%s13 + $0x28] sm:$0xff]
      %v2735 = vld [vmem:[%s13 + $0x30] sm:$0xff]
      %v2736 = vld [vmem:[%s13 + $0x38] sm:$0xff]
      %v2737 = vld [vmem:[%s13 + $0x40] sm:$0xff]
      %v2738 = vld [vmem:[%s13 + $0x48] sm:$0xff]
      %v2739 = vld [vmem:[%s13 + $0x50] sm:$0xff]
      %v2740 = vld [vmem:[%s13 + $0x58] sm:$0xff]
      %v2741 = vld [vmem:[%s13 + $0x60] sm:$0xff]
      %v2742 = vld [vmem:[%s13 + $0x68] sm:$0xff]
      %v2743 = vld [vmem:[%s13 + $0x70] sm:$0xff]
      %v2744 = vld [vmem:[%s13 + $0x78] sm:$0xff]
      %v2745 = vld [vmem:[%s14] sm:$0x1]
      %v2747 = vlaneseq
      %v2748 = vshrl.u32 %v2747, 7
      %v2749 = vsub.s32 0, %v2748
      %v2750 = vrot.slane %v2745, %v2749
      %2752 = vmatprep.subr.mxu0 0.0
      %2753 = vmatpush1.msra.mxu0 %v2729
      %2754 = vmatprep.subr.mxu0 0.0
      %2755 = vmatpush1.msra.mxu0 %v2730
      %2756 = vmatprep.subr.mxu0 0.0
      %2757 = vmatpush1.msra.mxu0 %v2731
      %2758 = vmatprep.subr.mxu0 0.0
      %2759 = vmatpush1.msra.mxu0 %v2732
      %2760 = vmatprep.subr.mxu0 0.0
      %2761 = vmatpush1.msra.mxu0 %v2733
      %2762 = vmatprep.subr.mxu0 0.0
      %2763 = vmatpush1.msra.mxu0 %v2734
      %2764 = vmatprep.subr.mxu0 0.0
      %2765 = vmatpush1.msra.mxu0 %v2735
      %2766 = vmatprep.subr.mxu0 0.0
      %2767 = vmatpush1.msra.mxu0 %v2736
      %2768 = vmatprep.subr.mxu0 0.0
      %2769 = vmatpush1.msra.mxu0 %v2737
      %2770 = vmatprep.subr.mxu0 0.0
      %2771 = vmatpush1.msra.mxu0 %v2738
      %2772 = vmatprep.subr.mxu0 0.0
      %2773 = vmatpush1.msra.mxu0 %v2739
      %2774 = vmatprep.subr.mxu0 0.0
      %2775 = vmatpush1.msra.mxu0 %v2740
      %2776 = vmatprep.subr.mxu0 0.0
      %2777 = vmatpush1.msra.mxu0 %v2741
      %2778 = vmatprep.subr.mxu0 0.0
      %2779 = vmatpush1.msra.mxu0 %v2742
      %2780 = vmatprep.subr.mxu0 0.0
      %2781 = vmatpush1.msra.mxu0 %v2743
      %2782 = vmatprep.subr.mxu0 0.0
      %2783 = vmatpush1.msra.mxu0 %v2744
      %2784 = vmatprep.subr.mxu0 0.0
      %2785 = vmatpush1.msra.mxu0 0.0
      %2786 = vmatprep.subr.mxu0 0.0
      %2787 = vmatpush1.msra.mxu0 0.0
      %2788 = vmatprep.subr.mxu0 0.0
      %2789 = vmatpush1.msra.mxu0 0.0
      %2790 = vmatprep.subr.mxu0 0.0
      %2791 = vmatpush1.msra.mxu0 0.0
      %2792 = vmatprep.subr.mxu0 0.0
      %2793 = vmatpush1.msra.mxu0 0.0
      %2794 = vmatprep.subr.mxu0 0.0
      %2795 = vmatpush1.msra.mxu0 0.0
      %2796 = vmatprep.subr.mxu0 0.0
      %2797 = vmatpush1.msra.mxu0 0.0
      %2798 = vmatprep.subr.mxu0 0.0
      %2799 = vmatpush1.msra.mxu0 0.0
      %2800 = vmatprep.subr.mxu0 0.0
      %2801 = vmatpush1.msra.mxu0 0.0
      %2802 = vmatprep.subr.mxu0 0.0
      %2803 = vmatpush1.msra.mxu0 0.0
      %2804 = vmatprep.subr.mxu0 0.0
      %2805 = vmatpush1.msra.mxu0 0.0
      %2806 = vmatprep.subr.mxu0 0.0
      %2807 = vmatpush1.msra.mxu0 0.0
      %2808 = vmatprep.subr.mxu0 0.0
      %2809 = vmatpush1.msra.mxu0 0.0
      %2810 = vmatprep.subr.mxu0 0.0
      %2811 = vmatpush1.msra.mxu0 0.0
      %2812 = vmatprep.subr.mxu0 0.0
      %2813 = vmatpush1.msra.mxu0 0.0
      %2814 = vmatprep.subr.mxu0 0.0
      %2815 = vmatpush1.msra.mxu0 0.0
      %2816 = vmatprep.mubr.f32.mxu0 0.0
      %2817 = vmatmul.mubr.f32.gmra.mrb[0].mxu0 %v2697
      %v2818 = vpop.f32.mrb[0].mxu0
      %v2819 = vadd.f32 %v2750, %v2818
      %v2820 = vpop.f32.mrb[0].mxu0
      %2821 = vmatprep.mubr.f32.mxu0 0.0
      %2822 = vmatmul.mubr.f32.gmra.mrb[0].mxu0 %v2698
      %v2823 = vpop.f32.mrb[0].mxu0
      %v2824 = vadd.f32 %v2750, %v2823
      %v2825 = vpop.f32.mrb[0].mxu0
      %2826 = vmatprep.mubr.f32.mxu0 0.0
      %2827 = vmatmul.mubr.f32.gmra.mrb[0].mxu0 %v2699
      %v2828 = vpop.f32.mrb[0].mxu0
      %v2829 = vadd.f32 %v2750, %v2828
      %v2830 = vpop.f32.mrb[0].mxu0
      %2831 = vmatprep.mubr.f32.mxu0 0.0
      %2832 = vmatmul.mubr.f32.gmra.mrb[0].mxu0 %v2700
      %v2833 = vpop.f32.mrb[0].mxu0
      %v2834 = vadd.f32 %v2750, %v2833
      %v2835 = vpop.f32.mrb[0].mxu0
      %2836 = vmatprep.mubr.f32.mxu0 0.0
      %2837 = vmatmul.mubr.f32.gmra.mrb[0].mxu0 %v2701
      %v2838 = vpop.f32.mrb[0].mxu0
      %v2839 = vadd.f32 %v2750, %v2838
      %v2840 = vpop.f32.mrb[0].mxu0
      %2841 = vmatprep.mubr.f32.mxu0 0.0
      %2842 = vmatmul.mubr.f32.gmra.mrb[0].mxu0 %v2702
      %v2843 = vpop.f32.mrb[0].mxu0
      %v2844 = vadd.f32 %v2750, %v2843
      %v2845 = vpop.f32.mrb[0].mxu0
      %2846 = vmatprep.mubr.f32.mxu0 0.0
      %2847 = vmatmul.mubr.f32.gmra.mrb[0].mxu0 %v2703
      %v2848 = vpop.f32.mrb[0].mxu0
      %v2849 = vadd.f32 %v2750, %v2848
      %v2850 = vpop.f32.mrb[0].mxu0
      %2851 = vmatprep.mubr.f32.mxu0 0.0
      %2852 = vmatmul.mubr.f32.gmra.mrb[0].mxu0 %v2704
      %v2853 = vpop.f32.mrb[0].mxu0
      %v2854 = vadd.f32 %v2750, %v2853
      %v2855 = vpop.f32.mrb[0].mxu0
      %2856 = vmatprep.mubr.f32.mxu0 0.0
      %2857 = vmatmul.mubr.f32.gmra.mrb[0].mxu0 %v2705
      %v2858 = vpop.f32.mrb[0].mxu0
      %v2859 = vadd.f32 %v2750, %v2858
      %v2860 = vpop.f32.mrb[0].mxu0
      %2861 = vmatprep.mubr.f32.mxu0 0.0
      %2862 = vmatmul.mubr.f32.gmra.mrb[0].mxu0 %v2706
      %v2863 = vpop.f32.mrb[0].mxu0
      %v2864 = vadd.f32 %v2750, %v2863
      %v2865 = vpop.f32.mrb[0].mxu0
      %2866 = vmatprep.mubr.f32.mxu0 0.0
      %2867 = vmatmul.mubr.f32.gmra.mrb[0].mxu0 %v2707
      %v2868 = vpop.f32.mrb[0].mxu0
      %v2869 = vadd.f32 %v2750, %v2868
      %v2870 = vpop.f32.mrb[0].mxu0
      %2871 = vmatprep.mubr.f32.mxu0 0.0
      %2872 = vmatmul.mubr.f32.gmra.mrb[0].mxu0 %v2708
      %v2873 = vpop.f32.mrb[0].mxu0
      %v2874 = vadd.f32 %v2750, %v2873
      %v2875 = vpop.f32.mrb[0].mxu0
      %2876 = vmatprep.mubr.f32.mxu0 0.0
      %2877 = vmatmul.mubr.f32.gmra.mrb[0].mxu0 %v2709
      %v2878 = vpop.f32.mrb[0].mxu0
      %v2879 = vadd.f32 %v2750, %v2878
      %v2880 = vpop.f32.mrb[0].mxu0
      %2881 = vmatprep.mubr.f32.mxu0 0.0
      %2882 = vmatmul.mubr.f32.gmra.mrb[0].mxu0 %v2710
      %v2883 = vpop.f32.mrb[0].mxu0
      %v2884 = vadd.f32 %v2750, %v2883
      %v2885 = vpop.f32.mrb[0].mxu0
      %2886 = vmatprep.mubr.f32.mxu0 0.0
      %2887 = vmatmul.mubr.f32.gmra.mrb[0].mxu0 %v2711
      %v2888 = vpop.f32.mrb[0].mxu0
      %v2889 = vadd.f32 %v2750, %v2888
      %v2890 = vpop.f32.mrb[0].mxu0
      %2891 = vmatprep.mubr.f32.mxu0 0.0
      %2892 = vmatmul.mubr.f32.gmra.mrb[0].mxu0 %v2712
      %v2893 = vpop.f32.mrb[0].mxu0
      %v2894 = vadd.f32 %v2750, %v2893
      %v2895 = vpop.f32.mrb[0].mxu0
      %2896 = vmatprep.mubr.f32.mxu0 0.0
      %2897 = vmatmul.mubr.f32.gmra.mrb[0].mxu0 %v2713
      %v2898 = vpop.f32.mrb[0].mxu0
      %v2899 = vadd.f32 %v2750, %v2898
      %v2900 = vpop.f32.mrb[0].mxu0
      %2901 = vmatprep.mubr.f32.mxu0 0.0
      %2902 = vmatmul.mubr.f32.gmra.mrb[0].mxu0 %v2714
      %v2903 = vpop.f32.mrb[0].mxu0
      %v2904 = vadd.f32 %v2750, %v2903
      %v2905 = vpop.f32.mrb[0].mxu0
      %2906 = vmatprep.mubr.f32.mxu0 0.0
      %2907 = vmatmul.mubr.f32.gmra.mrb[0].mxu0 %v2715
      %v2908 = vpop.f32.mrb[0].mxu0
      %v2909 = vadd.f32 %v2750, %v2908
      %v2910 = vpop.f32.mrb[0].mxu0
      %2911 = vmatprep.mubr.f32.mxu0 0.0
      %2912 = vmatmul.mubr.f32.gmra.mrb[0].mxu0 %v2716
      %v2913 = vpop.f32.mrb[0].mxu0
      %v2914 = vadd.f32 %v2750, %v2913
      %v2915 = vpop.f32.mrb[0].mxu0
      %2916 = vmatprep.mubr.f32.mxu0 0.0
      %2917 = vmatmul.mubr.f32.gmra.mrb[0].mxu0 %v2717
      %v2918 = vpop.f32.mrb[0].mxu0
      %v2919 = vadd.f32 %v2750, %v2918
      %v2920 = vpop.f32.mrb[0].mxu0
      %2921 = vmatprep.mubr.f32.mxu0 0.0
      %2922 = vmatmul.mubr.f32.gmra.mrb[0].mxu0 %v2718
      %v2923 = vpop.f32.mrb[0].mxu0
      %v2924 = vadd.f32 %v2750, %v2923
      %v2925 = vpop.f32.mrb[0].mxu0
      %2926 = vmatprep.mubr.f32.mxu0 0.0
      %2927 = vmatmul.mubr.f32.gmra.mrb[0].mxu0 %v2719
      %v2928 = vpop.f32.mrb[0].mxu0
      %v2929 = vadd.f32 %v2750, %v2928
      %v2930 = vpop.f32.mrb[0].mxu0
      %2931 = vmatprep.mubr.f32.mxu0 0.0
      %2932 = vmatmul.mubr.f32.gmra.mrb[0].mxu0 %v2720
      %v2933 = vpop.f32.mrb[0].mxu0
      %v2934 = vadd.f32 %v2750, %v2933
      %v2935 = vpop.f32.mrb[0].mxu0
      %2936 = vmatprep.mubr.f32.mxu0 0.0
      %2937 = vmatmul.mubr.f32.gmra.mrb[0].mxu0 %v2721
      %v2938 = vpop.f32.mrb[0].mxu0
      %v2939 = vadd.f32 %v2750, %v2938
      %v2940 = vpop.f32.mrb[0].mxu0
      %2941 = vmatprep.mubr.f32.mxu0 0.0
      %2942 = vmatmul.mubr.f32.gmra.mrb[0].mxu0 %v2722
      %v2943 = vpop.f32.mrb[0].mxu0
      %v2944 = vadd.f32 %v2750, %v2943
      %v2945 = vpop.f32.mrb[0].mxu0
      %2946 = vmatprep.mubr.f32.mxu0 0.0
      %2947 = vmatmul.mubr.f32.gmra.mrb[0].mxu0 %v2723
      %v2948 = vpop.f32.mrb[0].mxu0
      %v2949 = vadd.f32 %v2750, %v2948
      %v2950 = vpop.f32.mrb[0].mxu0
      %2951 = vmatprep.mubr.f32.mxu0 0.0
      %2952 = vmatmul.mubr.f32.gmra.mrb[0].mxu0 %v2724
      %v2953 = vpop.f32.mrb[0].mxu0
      %v2954 = vadd.f32 %v2750, %v2953
      %v2955 = vpop.f32.mrb[0].mxu0
      %2956 = vmatprep.mubr.f32.mxu0 0.0
      %2957 = vmatmul.mubr.f32.gmra.mrb[0].mxu0 %v2725
      %v2958 = vpop.f32.mrb[0].mxu0
      %v2959 = vadd.f32 %v2750, %v2958
      %v2960 = vpop.f32.mrb[0].mxu0
      %2961 = vmatprep.mubr.f32.mxu0 0.0
      %2962 = vmatmul.mubr.f32.gmra.mrb[0].mxu0 %v2726
      %v2963 = vpop.f32.mrb[0].mxu0
      %v2964 = vadd.f32 %v2750, %v2963
      %v2965 = vpop.f32.mrb[0].mxu0
      %2966 = vmatprep.mubr.f32.mxu0 0.0
      %2967 = vmatmul.mubr.f32.gmra.mrb[0].mxu0 %v2727
      %v2968 = vpop.f32.mrb[0].mxu0
      %v2969 = vadd.f32 %v2750, %v2968
      %v2970 = vpop.f32.mrb[0].mxu0
      %2971 = vmatprep.mubr.f32.mxu0 0.0
      %2972 = vmatmul.mubr.f32.gmra.mrb[0].mxu0 %v2728
      %v2973 = vpop.f32.mrb[0].mxu0
      %v2974 = vadd.f32 %v2750, %v2973
      %v2975 = vpop.f32.mrb[0].mxu0
      %2976 = vdwg.mxu0
      %v2977 = vmax.f32 %v2819, 0.0
      %v2978 = vmax.f32 %v2824, 0.0
      %v2979 = vmax.f32 %v2829, 0.0
      %v2980 = vmax.f32 %v2834, 0.0
      %v2981 = vmax.f32 %v2839, 0.0
      %v2982 = vmax.f32 %v2844, 0.0
      %v2983 = vmax.f32 %v2849, 0.0
      %v2984 = vmax.f32 %v2854, 0.0
      %v2985 = vmax.f32 %v2859, 0.0
      %v2986 = vmax.f32 %v2864, 0.0
      %v2987 = vmax.f32 %v2869, 0.0
      %v2988 = vmax.f32 %v2874, 0.0
      %v2989 = vmax.f32 %v2879, 0.0
      %v2990 = vmax.f32 %v2884, 0.0
      %v2991 = vmax.f32 %v2889, 0.0
      %v2992 = vmax.f32 %v2894, 0.0
      %v2993 = vmax.f32 %v2899, 0.0
      %v2994 = vmax.f32 %v2904, 0.0
      %v2995 = vmax.f32 %v2909, 0.0
      %v2996 = vmax.f32 %v2914, 0.0
      %v2997 = vmax.f32 %v2919, 0.0
      %v2998 = vmax.f32 %v2924, 0.0
      %v2999 = vmax.f32 %v2929, 0.0
      %v3000 = vmax.f32 %v2934, 0.0
      %v3001 = vmax.f32 %v2939, 0.0
      %v3002 = vmax.f32 %v2944, 0.0
      %v3003 = vmax.f32 %v2949, 0.0
      %v3004 = vmax.f32 %v2954, 0.0
      %v3005 = vmax.f32 %v2959, 0.0
      %v3006 = vmax.f32 %v2964, 0.0
      %v3007 = vmax.f32 %v2969, 0.0
      %v3008 = vmax.f32 %v2974, 0.0
      %v3009 = vld [vmem:[%s15] sm:$0xff]
      %v3010 = vld [vmem:[%s15 + $0x8] sm:$0xff]
      %v3011 = vld [vmem:[%s15 + $0x10] sm:$0xff]
      %v3012 = vld [vmem:[%s15 + $0x18] sm:$0xff]
      %v3013 = vld [vmem:[%s15 + $0x20] sm:$0xff]
      %v3014 = vld [vmem:[%s15 + $0x28] sm:$0xff]
      %v3015 = vld [vmem:[%s15 + $0x30] sm:$0xff]
      %v3016 = vld [vmem:[%s15 + $0x38] sm:$0xff]
      %v3017 = vld [vmem:[%s15 + $0x40] sm:$0xff]
      %v3018 = vld [vmem:[%s15 + $0x48] sm:$0xff]
      %v3019 = vld [vmem:[%s15 + $0x50] sm:$0xff]
      %v3020 = vld [vmem:[%s15 + $0x58] sm:$0xff]
      %v3021 = vld [vmem:[%s15 + $0x60] sm:$0xff]
      %v3022 = vld [vmem:[%s15 + $0x68] sm:$0xff]
      %v3023 = vld [vmem:[%s15 + $0x70] sm:$0xff]
      %v3024 = vld [vmem:[%s15 + $0x78] sm:$0xff]
      %v3025 = vld [vmem:[%s16] sm:$0x1]
      %v3027 = vlaneseq
      %v3028 = vshrl.u32 %v3027, 7
      %v3029 = vsub.s32 0, %v3028
      %v3030 = vrot.slane %v3025, %v3029
      %3032 = vmatprep.subr.mxu0 0.0
      %3033 = vmatpush1.msra.mxu0 %v3009
      %3034 = vmatprep.subr.mxu0 0.0
      %3035 = vmatpush1.msra.mxu0 %v3010
      %3036 = vmatprep.subr.mxu0 0.0
      %3037 = vmatpush1.msra.mxu0 %v3011
      %3038 = vmatprep.subr.mxu0 0.0
      %3039 = vmatpush1.msra.mxu0 %v3012
      %3040 = vmatprep.subr.mxu0 0.0
      %3041 = vmatpush1.msra.mxu0 %v3013
      %3042 = vmatprep.subr.mxu0 0.0
      %3043 = vmatpush1.msra.mxu0 %v3014
      %3044 = vmatprep.subr.mxu0 0.0
      %3045 = vmatpush1.msra.mxu0 %v3015
      %3046 = vmatprep.subr.mxu0 0.0
      %3047 = vmatpush1.msra.mxu0 %v3016
      %3048 = vmatprep.subr.mxu0 0.0
      %3049 = vmatpush1.msra.mxu0 %v3017
      %3050 = vmatprep.subr.mxu0 0.0
      %3051 = vmatpush1.msra.mxu0 %v3018
      %3052 = vmatprep.subr.mxu0 0.0
      %3053 = vmatpush1.msra.mxu0 %v3019
      %3054 = vmatprep.subr.mxu0 0.0
      %3055 = vmatpush1.msra.mxu0 %v3020
      %3056 = vmatprep.subr.mxu0 0.0
      %3057 = vmatpush1.msra.mxu0 %v3021
      %3058 = vmatprep.subr.mxu0 0.0
      %3059 = vmatpush1.msra.mxu0 %v3022
      %3060 = vmatprep.subr.mxu0 0.0
      %3061 = vmatpush1.msra.mxu0 %v3023
      %3062 = vmatprep.subr.mxu0 0.0
      %3063 = vmatpush1.msra.mxu0 %v3024
      %3064 = vmatprep.subr.mxu0 0.0
      %3065 = vmatpush1.msra.mxu0 0.0
      %3066 = vmatprep.subr.mxu0 0.0
      %3067 = vmatpush1.msra.mxu0 0.0
      %3068 = vmatprep.subr.mxu0 0.0
      %3069 = vmatpush1.msra.mxu0 0.0
      %3070 = vmatprep.subr.mxu0 0.0
      %3071 = vmatpush1.msra.mxu0 0.0
      %3072 = vmatprep.subr.mxu0 0.0
      %3073 = vmatpush1.msra.mxu0 0.0
      %3074 = vmatprep.subr.mxu0 0.0
      %3075 = vmatpush1.msra.mxu0 0.0
      %3076 = vmatprep.subr.mxu0 0.0
      %3077 = vmatpush1.msra.mxu0 0.0
      %3078 = vmatprep.subr.mxu0 0.0
      %3079 = vmatpush1.msra.mxu0 0.0
      %3080 = vmatprep.subr.mxu0 0.0
      %3081 = vmatpush1.msra.mxu0 0.0
      %3082 = vmatprep.subr.mxu0 0.0
      %3083 = vmatpush1.msra.mxu0 0.0
      %3084 = vmatprep.subr.mxu0 0.0
      %3085 = vmatpush1.msra.mxu0 0.0
      %3086 = vmatprep.subr.mxu0 0.0
      %3087 = vmatpush1.msra.mxu0 0.0
      %3088 = vmatprep.subr.mxu0 0.0
      %3089 = vmatpush1.msra.mxu0 0.0
      %3090 = vmatprep.subr.mxu0 0.0
      %3091 = vmatpush1.msra.mxu0 0.0
      %3092 = vmatprep.subr.mxu0 0.0
      %3093 = vmatpush1.msra.mxu0 0.0
      %3094 = vmatprep.subr.mxu0 0.0
      %3095 = vmatpush1.msra.mxu0 0.0
      %3096 = vmatprep.mubr.f32.mxu0 0.0
      %3097 = vmatmul.mubr.f32.gmra.mrb[0].mxu0 %v2977
      %v3098 = vpop.f32.mrb[0].mxu0
      %v3099 = vadd.f32 %v3030, %v3098
      %v3100 = vpop.f32.mrb[0].mxu0
      %3101 = vmatprep.mubr.f32.mxu0 0.0
      %3102 = vmatmul.mubr.f32.gmra.mrb[0].mxu0 %v2978
      %v3103 = vpop.f32.mrb[0].mxu0
      %v3104 = vadd.f32 %v3030, %v3103
      %v3105 = vpop.f32.mrb[0].mxu0
      %3106 = vmatprep.mubr.f32.mxu0 0.0
      %3107 = vmatmul.mubr.f32.gmra.mrb[0].mxu0 %v2979
      %v3108 = vpop.f32.mrb[0].mxu0
      %v3109 = vadd.f32 %v3030, %v3108
      %v3110 = vpop.f32.mrb[0].mxu0
      %3111 = vmatprep.mubr.f32.mxu0 0.0
      %3112 = vmatmul.mubr.f32.gmra.mrb[0].mxu0 %v2980
      %v3113 = vpop.f32.mrb[0].mxu0
      %v3114 = vadd.f32 %v3030, %v3113
      %v3115 = vpop.f32.mrb[0].mxu0
      %3116 = vmatprep.mubr.f32.mxu0 0.0
      %3117 = vmatmul.mubr.f32.gmra.mrb[0].mxu0 %v2981
      %v3118 = vpop.f32.mrb[0].mxu0
      %v3119 = vadd.f32 %v3030, %v3118
      %v3120 = vpop.f32.mrb[0].mxu0
      %3121 = vmatprep.mubr.f32.mxu0 0.0
      %3122 = vmatmul.mubr.f32.gmra.mrb[0].mxu0 %v2982
      %v3123 = vpop.f32.mrb[0].mxu0
      %v3124 = vadd.f32 %v3030, %v3123
      %v3125 = vpop.f32.mrb[0].mxu0
      %3126 = vmatprep.mubr.f32.mxu0 0.0
      %3127 = vmatmul.mubr.f32.gmra.mrb[0].mxu0 %v2983
      %v3128 = vpop.f32.mrb[0].mxu0
      %v3129 = vadd.f32 %v3030, %v3128
      %v3130 = vpop.f32.mrb[0].mxu0
      %3131 = vmatprep.mubr.f32.mxu0 0.0
      %3132 = vmatmul.mubr.f32.gmra.mrb[0].mxu0 %v2984
      %v3133 = vpop.f32.mrb[0].mxu0
      %v3134 = vadd.f32 %v3030, %v3133
      %v3135 = vpop.f32.mrb[0].mxu0
      %3136 = vmatprep.mubr.f32.mxu0 0.0
      %3137 = vmatmul.mubr.f32.gmra.mrb[0].mxu0 %v2985
      %v3138 = vpop.f32.mrb[0].mxu0
      %v3139 = vadd.f32 %v3030, %v3138
      %v3140 = vpop.f32.mrb[0].mxu0
      %3141 = vmatprep.mubr.f32.mxu0 0.0
      %3142 = vmatmul.mubr.f32.gmra.mrb[0].mxu0 %v2986
      %v3143 = vpop.f32.mrb[0].mxu0
      %v3144 = vadd.f32 %v3030, %v3143
      %v3145 = vpop.f32.mrb[0].mxu0
      %3146 = vmatprep.mubr.f32.mxu0 0.0
      %3147 = vmatmul.mubr.f32.gmra.mrb[0].mxu0 %v2987
      %v3148 = vpop.f32.mrb[0].mxu0
      %v3149 = vadd.f32 %v3030, %v3148
      %v3150 = vpop.f32.mrb[0].mxu0
      %3151 = vmatprep.mubr.f32.mxu0 0.0
      %3152 = vmatmul.mubr.f32.gmra.mrb[0].mxu0 %v2988
      %v3153 = vpop.f32.mrb[0].mxu0
      %v3154 = vadd.f32 %v3030, %v3153
      %v3155 = vpop.f32.mrb[0].mxu0
      %3156 = vmatprep.mubr.f32.mxu0 0.0
      %3157 = vmatmul.mubr.f32.gmra.mrb[0].mxu0 %v2989
      %v3158 = vpop.f32.mrb[0].mxu0
      %v3159 = vadd.f32 %v3030, %v3158
      %v3160 = vpop.f32.mrb[0].mxu0
      %3161 = vmatprep.mubr.f32.mxu0 0.0
      %3162 = vmatmul.mubr.f32.gmra.mrb[0].mxu0 %v2990
      %v3163 = vpop.f32.mrb[0].mxu0
      %v3164 = vadd.f32 %v3030, %v3163
      %v3165 = vpop.f32.mrb[0].mxu0
      %3166 = vmatprep.mubr.f32.mxu0 0.0
      %3167 = vmatmul.mubr.f32.gmra.mrb[0].mxu0 %v2991
      %v3168 = vpop.f32.mrb[0].mxu0
      %v3169 = vadd.f32 %v3030, %v3168
      %v3170 = vpop.f32.mrb[0].mxu0
      %3171 = vmatprep.mubr.f32.mxu0 0.0
      %3172 = vmatmul.mubr.f32.gmra.mrb[0].mxu0 %v2992
      %v3173 = vpop.f32.mrb[0].mxu0
      %v3174 = vadd.f32 %v3030, %v3173
      %v3175 = vpop.f32.mrb[0].mxu0
      %3176 = vmatprep.mubr.f32.mxu0 0.0
      %3177 = vmatmul.mubr.f32.gmra.mrb[0].mxu0 %v2993
      %v3178 = vpop.f32.mrb[0].mxu0
      %v3179 = vadd.f32 %v3030, %v3178
      %v3180 = vpop.f32.mrb[0].mxu0
      %3181 = vmatprep.mubr.f32.mxu0 0.0
      %3182 = vmatmul.mubr.f32.gmra.mrb[0].mxu0 %v2994
      %v3183 = vpop.f32.mrb[0].mxu0
      %v3184 = vadd.f32 %v3030, %v3183
      %v3185 = vpop.f32.mrb[0].mxu0
      %3186 = vmatprep.mubr.f32.mxu0 0.0
      %3187 = vmatmul.mubr.f32.gmra.mrb[0].mxu0 %v2995
      %v3188 = vpop.f32.mrb[0].mxu0
      %v3189 = vadd.f32 %v3030, %v3188
      %v3190 = vpop.f32.mrb[0].mxu0
      %3191 = vmatprep.mubr.f32.mxu0 0.0
      %3192 = vmatmul.mubr.f32.gmra.mrb[0].mxu0 %v2996
      %v3193 = vpop.f32.mrb[0].mxu0
      %v3194 = vadd.f32 %v3030, %v3193
      %v3195 = vpop.f32.mrb[0].mxu0
      %3196 = vmatprep.mubr.f32.mxu0 0.0
      %3197 = vmatmul.mubr.f32.gmra.mrb[0].mxu0 %v2997
      %v3198 = vpop.f32.mrb[0].mxu0
      %v3199 = vadd.f32 %v3030, %v3198
      %v3200 = vpop.f32.mrb[0].mxu0
      %3201 = vmatprep.mubr.f32.mxu0 0.0
      %3202 = vmatmul.mubr.f32.gmra.mrb[0].mxu0 %v2998
      %v3203 = vpop.f32.mrb[0].mxu0
      %v3204 = vadd.f32 %v3030, %v3203
      %v3205 = vpop.f32.mrb[0].mxu0
      %3206 = vmatprep.mubr.f32.mxu0 0.0
      %3207 = vmatmul.mubr.f32.gmra.mrb[0].mxu0 %v2999
      %v3208 = vpop.f32.mrb[0].mxu0
      %v3209 = vadd.f32 %v3030, %v3208
      %v3210 = vpop.f32.mrb[0].mxu0
      %3211 = vmatprep.mubr.f32.mxu0 0.0
      %3212 = vmatmul.mubr.f32.gmra.mrb[0].mxu0 %v3000
      %v3213 = vpop.f32.mrb[0].mxu0
      %v3214 = vadd.f32 %v3030, %v3213
      %v3215 = vpop.f32.mrb[0].mxu0
      %3216 = vmatprep.mubr.f32.mxu0 0.0
      %3217 = vmatmul.mubr.f32.gmra.mrb[0].mxu0 %v3001
      %v3218 = vpop.f32.mrb[0].mxu0
      %v3219 = vadd.f32 %v3030, %v3218
      %v3220 = vpop.f32.mrb[0].mxu0
      %3221 = vmatprep.mubr.f32.mxu0 0.0
      %3222 = vmatmul.mubr.f32.gmra.mrb[0].mxu0 %v3002
      %v3223 = vpop.f32.mrb[0].mxu0
      %v3224 = vadd.f32 %v3030, %v3223
      %v3225 = vpop.f32.mrb[0].mxu0
      %3226 = vmatprep.mubr.f32.mxu0 0.0
      %3227 = vmatmul.mubr.f32.gmra.mrb[0].mxu0 %v3003
      %v3228 = vpop.f32.mrb[0].mxu0
      %v3229 = vadd.f32 %v3030, %v3228
      %v3230 = vpop.f32.mrb[0].mxu0
      %3231 = vmatprep.mubr.f32.mxu0 0.0
      %3232 = vmatmul.mubr.f32.gmra.mrb[0].mxu0 %v3004
      %v3233 = vpop.f32.mrb[0].mxu0
      %v3234 = vadd.f32 %v3030, %v3233
      %v3235 = vpop.f32.mrb[0].mxu0
      %3236 = vmatprep.mubr.f32.mxu0 0.0
      %3237 = vmatmul.mubr.f32.gmra.mrb[0].mxu0 %v3005
      %v3238 = vpop.f32.mrb[0].mxu0
      %v3239 = vadd.f32 %v3030, %v3238
      %v3240 = vpop.f32.mrb[0].mxu0
      %3241 = vmatprep.mubr.f32.mxu0 0.0
      %3242 = vmatmul.mubr.f32.gmra.mrb[0].mxu0 %v3006
      %v3243 = vpop.f32.mrb[0].mxu0
      %v3244 = vadd.f32 %v3030, %v3243
      %v3245 = vpop.f32.mrb[0].mxu0
      %3246 = vmatprep.mubr.f32.mxu0 0.0
      %3247 = vmatmul.mubr.f32.gmra.mrb[0].mxu0 %v3007
      %v3248 = vpop.f32.mrb[0].mxu0
      %v3249 = vadd.f32 %v3030, %v3248
      %v3250 = vpop.f32.mrb[0].mxu0
      %3251 = vmatprep.mubr.f32.mxu0 0.0
      %3252 = vmatmul.mubr.f32.gmra.mrb[0].mxu0 %v3008
      %v3253 = vpop.f32.mrb[0].mxu0
      %v3254 = vadd.f32 %v3030, %v3253
      %v3255 = vpop.f32.mrb[0].mxu0
      %3256 = vdwg.mxu0
      %v3257 = vmax.f32 %v3099, 0.0
      %v3258 = vmax.f32 %v3104, 0.0
      %v3259 = vmax.f32 %v3109, 0.0
      %v3260 = vmax.f32 %v3114, 0.0
      %v3261 = vmax.f32 %v3119, 0.0
      %v3262 = vmax.f32 %v3124, 0.0
      %v3263 = vmax.f32 %v3129, 0.0
      %v3264 = vmax.f32 %v3134, 0.0
      %v3265 = vmax.f32 %v3139, 0.0
      %v3266 = vmax.f32 %v3144, 0.0
      %v3267 = vmax.f32 %v3149, 0.0
      %v3268 = vmax.f32 %v3154, 0.0
      %v3269 = vmax.f32 %v3159, 0.0
      %v3270 = vmax.f32 %v3164, 0.0
      %v3271 = vmax.f32 %v3169, 0.0
      %v3272 = vmax.f32 %v3174, 0.0
      %v3273 = vmax.f32 %v3179, 0.0
      %v3274 = vmax.f32 %v3184, 0.0
      %v3275 = vmax.f32 %v3189, 0.0
      %v3276 = vmax.f32 %v3194, 0.0
      %v3277 = vmax.f32 %v3199, 0.0
      %v3278 = vmax.f32 %v3204, 0.0
      %v3279 = vmax.f32 %v3209, 0.0
      %v3280 = vmax.f32 %v3214, 0.0
      %v3281 = vmax.f32 %v3219, 0.0
      %v3282 = vmax.f32 %v3224, 0.0
      %v3283 = vmax.f32 %v3229, 0.0
      %v3284 = vmax.f32 %v3234, 0.0
      %v3285 = vmax.f32 %v3239, 0.0
      %v3286 = vmax.f32 %v3244, 0.0
      %v3287 = vmax.f32 %v3249, 0.0
      %v3288 = vmax.f32 %v3254, 0.0
      %v3289 = vld [vmem:[%s17] sm:$0xff]
      %v3290 = vld [vmem:[%s17 + $0x8] sm:$0xff]
      %v3291 = vld [vmem:[%s17 + $0x10] sm:$0xff]
      %v3292 = vld [vmem:[%s17 + $0x18] sm:$0xff]
      %v3293 = vld [vmem:[%s17 + $0x20] sm:$0xff]
      %v3294 = vld [vmem:[%s17 + $0x28] sm:$0xff]
      %v3295 = vld [vmem:[%s17 + $0x30] sm:$0xff]
      %v3296 = vld [vmem:[%s17 + $0x38] sm:$0xff]
      %v3297 = vld [vmem:[%s17 + $0x40] sm:$0xff]
      %v3298 = vld [vmem:[%s17 + $0x48] sm:$0xff]
      %v3299 = vld [vmem:[%s17 + $0x50] sm:$0xff]
      %v3300 = vld [vmem:[%s17 + $0x58] sm:$0xff]
      %v3301 = vld [vmem:[%s17 + $0x60] sm:$0xff]
      %v3302 = vld [vmem:[%s17 + $0x68] sm:$0xff]
      %v3303 = vld [vmem:[%s17 + $0x70] sm:$0xff]
      %v3304 = vld [vmem:[%s17 + $0x78] sm:$0xff]
      %v3305 = vld [vmem:[%s18] sm:$0x1]
      %v3307 = vlaneseq
      %v3308 = vshrl.u32 %v3307, 7
      %v3309 = vsub.s32 0, %v3308
      %v3310 = vrot.slane %v3305, %v3309
      %3312 = vmatprep.subr.mxu0 0.0
      %3313 = vmatpush1.msra.mxu0 %v3289
      %3314 = vmatprep.subr.mxu0 0.0
      %3315 = vmatpush1.msra.mxu0 %v3290
      %3316 = vmatprep.subr.mxu0 0.0
      %3317 = vmatpush1.msra.mxu0 %v3291
      %3318 = vmatprep.subr.mxu0 0.0
      %3319 = vmatpush1.msra.mxu0 %v3292
      %3320 = vmatprep.subr.mxu0 0.0
      %3321 = vmatpush1.msra.mxu0 %v3293
      %3322 = vmatprep.subr.mxu0 0.0
      %3323 = vmatpush1.msra.mxu0 %v3294
      %3324 = vmatprep.subr.mxu0 0.0
      %3325 = vmatpush1.msra.mxu0 %v3295
      %3326 = vmatprep.subr.mxu0 0.0
      %3327 = vmatpush1.msra.mxu0 %v3296
      %3328 = vmatprep.subr.mxu0 0.0
      %3329 = vmatpush1.msra.mxu0 %v3297
      %3330 = vmatprep.subr.mxu0 0.0
      %3331 = vmatpush1.msra.mxu0 %v3298
      %3332 = vmatprep.subr.mxu0 0.0
      %3333 = vmatpush1.msra.mxu0 %v3299
      %3334 = vmatprep.subr.mxu0 0.0
      %3335 = vmatpush1.msra.mxu0 %v3300
      %3336 = vmatprep.subr.mxu0 0.0
      %3337 = vmatpush1.msra.mxu0 %v3301
      %3338 = vmatprep.subr.mxu0 0.0
      %3339 = vmatpush1.msra.mxu0 %v3302
      %3340 = vmatprep.subr.mxu0 0.0
      %3341 = vmatpush1.msra.mxu0 %v3303
      %3342 = vmatprep.subr.mxu0 0.0
      %3343 = vmatpush1.msra.mxu0 %v3304
      %3344 = vmatprep.subr.mxu0 0.0
      %3345 = vmatpush1.msra.mxu0 0.0
      %3346 = vmatprep.subr.mxu0 0.0
      %3347 = vmatpush1.msra.mxu0 0.0
      %3348 = vmatprep.subr.mxu0 0.0
      %3349 = vmatpush1.msra.mxu0 0.0
      %3350 = vmatprep.subr.mxu0 0.0
      %3351 = vmatpush1.msra.mxu0 0.0
      %3352 = vmatprep.subr.mxu0 0.0
      %3353 = vmatpush1.msra.mxu0 0.0
      %3354 = vmatprep.subr.mxu0 0.0
      %3355 = vmatpush1.msra.mxu0 0.0
      %3356 = vmatprep.subr.mxu0 0.0
      %3357 = vmatpush1.msra.mxu0 0.0
      %3358 = vmatprep.subr.mxu0 0.0
      %3359 = vmatpush1.msra.mxu0 0.0
      %3360 = vmatprep.subr.mxu0 0.0
      %3361 = vmatpush1.msra.mxu0 0.0
      %3362 = vmatprep.subr.mxu0 0.0
      %3363 = vmatpush1.msra.mxu0 0.0
      %3364 = vmatprep.subr.mxu0 0.0
      %3365 = vmatpush1.msra.mxu0 0.0
      %3366 = vmatprep.subr.mxu0 0.0
      %3367 = vmatpush1.msra.mxu0 0.0
      %3368 = vmatprep.subr.mxu0 0.0
      %3369 = vmatpush1.msra.mxu0 0.0
      %3370 = vmatprep.subr.mxu0 0.0
      %3371 = vmatpush1.msra.mxu0 0.0
      %3372 = vmatprep.subr.mxu0 0.0
      %3373 = vmatpush1.msra.mxu0 0.0
      %3374 = vmatprep.subr.mxu0 0.0
      %3375 = vmatpush1.msra.mxu0 0.0
      %3376 = vmatprep.mubr.f32.mxu0 0.0
      %3377 = vmatmul.mubr.f32.gmra.mrb[0].mxu0 %v3257
      %v3378 = vpop.f32.mrb[0].mxu0
      %v3379 = vadd.f32 %v3310, %v3378
      %v3380 = vpop.f32.mrb[0].mxu0
      %3381 = vmatprep.mubr.f32.mxu0 0.0
      %3382 = vmatmul.mubr.f32.gmra.mrb[0].mxu0 %v3258
      %v3383 = vpop.f32.mrb[0].mxu0
      %v3384 = vadd.f32 %v3310, %v3383
      %v3385 = vpop.f32.mrb[0].mxu0
      %3386 = vmatprep.mubr.f32.mxu0 0.0
      %3387 = vmatmul.mubr.f32.gmra.mrb[0].mxu0 %v3259
      %v3388 = vpop.f32.mrb[0].mxu0
      %v3389 = vadd.f32 %v3310, %v3388
      %v3390 = vpop.f32.mrb[0].mxu0
      %3391 = vmatprep.mubr.f32.mxu0 0.0
      %3392 = vmatmul.mubr.f32.gmra.mrb[0].mxu0 %v3260
      %v3393 = vpop.f32.mrb[0].mxu0
      %v3394 = vadd.f32 %v3310, %v3393
      %v3395 = vpop.f32.mrb[0].mxu0
      %3396 = vmatprep.mubr.f32.mxu0 0.0
      %3397 = vmatmul.mubr.f32.gmra.mrb[0].mxu0 %v3261
      %v3398 = vpop.f32.mrb[0].mxu0
      %v3399 = vadd.f32 %v3310, %v3398
      %v3400 = vpop.f32.mrb[0].mxu0
      %3401 = vmatprep.mubr.f32.mxu0 0.0
      %3402 = vmatmul.mubr.f32.gmra.mrb[0].mxu0 %v3262
      %v3403 = vpop.f32.mrb[0].mxu0
      %v3404 = vadd.f32 %v3310, %v3403
      %v3405 = vpop.f32.mrb[0].mxu0
      %3406 = vmatprep.mubr.f32.mxu0 0.0
      %3407 = vmatmul.mubr.f32.gmra.mrb[0].mxu0 %v3263
      %v3408 = vpop.f32.mrb[0].mxu0
      %v3409 = vadd.f32 %v3310, %v3408
      %v3410 = vpop.f32.mrb[0].mxu0
      %3411 = vmatprep.mubr.f32.mxu0 0.0
      %3412 = vmatmul.mubr.f32.gmra.mrb[0].mxu0 %v3264
      %v3413 = vpop.f32.mrb[0].mxu0
      %v3414 = vadd.f32 %v3310, %v3413
      %v3415 = vpop.f32.mrb[0].mxu0
      %3416 = vmatprep.mubr.f32.mxu0 0.0
      %3417 = vmatmul.mubr.f32.gmra.mrb[0].mxu0 %v3265
      %v3418 = vpop.f32.mrb[0].mxu0
      %v3419 = vadd.f32 %v3310, %v3418
      %v3420 = vpop.f32.mrb[0].mxu0
      %3421 = vmatprep.mubr.f32.mxu0 0.0
      %3422 = vmatmul.mubr.f32.gmra.mrb[0].mxu0 %v3266
      %v3423 = vpop.f32.mrb[0].mxu0
      %v3424 = vadd.f32 %v3310, %v3423
      %v3425 = vpop.f32.mrb[0].mxu0
      %3426 = vmatprep.mubr.f32.mxu0 0.0
      %3427 = vmatmul.mubr.f32.gmra.mrb[0].mxu0 %v3267
      %v3428 = vpop.f32.mrb[0].mxu0
      %v3429 = vadd.f32 %v3310, %v3428
      %v3430 = vpop.f32.mrb[0].mxu0
      %3431 = vmatprep.mubr.f32.mxu0 0.0
      %3432 = vmatmul.mubr.f32.gmra.mrb[0].mxu0 %v3268
      %v3433 = vpop.f32.mrb[0].mxu0
      %v3434 = vadd.f32 %v3310, %v3433
      %v3435 = vpop.f32.mrb[0].mxu0
      %3436 = vmatprep.mubr.f32.mxu0 0.0
      %3437 = vmatmul.mubr.f32.gmra.mrb[0].mxu0 %v3269
      %v3438 = vpop.f32.mrb[0].mxu0
      %v3439 = vadd.f32 %v3310, %v3438
      %v3440 = vpop.f32.mrb[0].mxu0
      %3441 = vmatprep.mubr.f32.mxu0 0.0
      %3442 = vmatmul.mubr.f32.gmra.mrb[0].mxu0 %v3270
      %v3443 = vpop.f32.mrb[0].mxu0
      %v3444 = vadd.f32 %v3310, %v3443
      %v3445 = vpop.f32.mrb[0].mxu0
      %3446 = vmatprep.mubr.f32.mxu0 0.0
      %3447 = vmatmul.mubr.f32.gmra.mrb[0].mxu0 %v3271
      %v3448 = vpop.f32.mrb[0].mxu0
      %v3449 = vadd.f32 %v3310, %v3448
      %v3450 = vpop.f32.mrb[0].mxu0
      %3451 = vmatprep.mubr.f32.mxu0 0.0
      %3452 = vmatmul.mubr.f32.gmra.mrb[0].mxu0 %v3272
      %v3453 = vpop.f32.mrb[0].mxu0
      %v3454 = vadd.f32 %v3310, %v3453
      %v3455 = vpop.f32.mrb[0].mxu0
      %3456 = vmatprep.mubr.f32.mxu0 0.0
      %3457 = vmatmul.mubr.f32.gmra.mrb[0].mxu0 %v3273
      %v3458 = vpop.f32.mrb[0].mxu0
      %v3459 = vadd.f32 %v3310, %v3458
      %v3460 = vpop.f32.mrb[0].mxu0
      %3461 = vmatprep.mubr.f32.mxu0 0.0
      %3462 = vmatmul.mubr.f32.gmra.mrb[0].mxu0 %v3274
      %v3463 = vpop.f32.mrb[0].mxu0
      %v3464 = vadd.f32 %v3310, %v3463
      %v3465 = vpop.f32.mrb[0].mxu0
      %3466 = vmatprep.mubr.f32.mxu0 0.0
      %3467 = vmatmul.mubr.f32.gmra.mrb[0].mxu0 %v3275
      %v3468 = vpop.f32.mrb[0].mxu0
      %v3469 = vadd.f32 %v3310, %v3468
      %v3470 = vpop.f32.mrb[0].mxu0
      %3471 = vmatprep.mubr.f32.mxu0 0.0
      %3472 = vmatmul.mubr.f32.gmra.mrb[0].mxu0 %v3276
      %v3473 = vpop.f32.mrb[0].mxu0
      %v3474 = vadd.f32 %v3310, %v3473
      %v3475 = vpop.f32.mrb[0].mxu0
      %3476 = vmatprep.mubr.f32.mxu0 0.0
      %3477 = vmatmul.mubr.f32.gmra.mrb[0].mxu0 %v3277
      %v3478 = vpop.f32.mrb[0].mxu0
      %v3479 = vadd.f32 %v3310, %v3478
      %v3480 = vpop.f32.mrb[0].mxu0
      %3481 = vmatprep.mubr.f32.mxu0 0.0
      %3482 = vmatmul.mubr.f32.gmra.mrb[0].mxu0 %v3278
      %v3483 = vpop.f32.mrb[0].mxu0
      %v3484 = vadd.f32 %v3310, %v3483
      %v3485 = vpop.f32.mrb[0].mxu0
      %3486 = vmatprep.mubr.f32.mxu0 0.0
      %3487 = vmatmul.mubr.f32.gmra.mrb[0].mxu0 %v3279
      %v3488 = vpop.f32.mrb[0].mxu0
      %v3489 = vadd.f32 %v3310, %v3488
      %v3490 = vpop.f32.mrb[0].mxu0
      %3491 = vmatprep.mubr.f32.mxu0 0.0
      %3492 = vmatmul.mubr.f32.gmra.mrb[0].mxu0 %v3280
      %v3493 = vpop.f32.mrb[0].mxu0
      %v3494 = vadd.f32 %v3310, %v3493
      %v3495 = vpop.f32.mrb[0].mxu0
      %3496 = vmatprep.mubr.f32.mxu0 0.0
      %3497 = vmatmul.mubr.f32.gmra.mrb[0].mxu0 %v3281
      %v3498 = vpop.f32.mrb[0].mxu0
      %v3499 = vadd.f32 %v3310, %v3498
      %v3500 = vpop.f32.mrb[0].mxu0
      %3501 = vmatprep.mubr.f32.mxu0 0.0
      %3502 = vmatmul.mubr.f32.gmra.mrb[0].mxu0 %v3282
      %v3503 = vpop.f32.mrb[0].mxu0
      %v3504 = vadd.f32 %v3310, %v3503
      %v3505 = vpop.f32.mrb[0].mxu0
      %3506 = vmatprep.mubr.f32.mxu0 0.0
      %3507 = vmatmul.mubr.f32.gmra.mrb[0].mxu0 %v3283
      %v3508 = vpop.f32.mrb[0].mxu0
      %v3509 = vadd.f32 %v3310, %v3508
      %v3510 = vpop.f32.mrb[0].mxu0
      %3511 = vmatprep.mubr.f32.mxu0 0.0
      %3512 = vmatmul.mubr.f32.gmra.mrb[0].mxu0 %v3284
      %v3513 = vpop.f32.mrb[0].mxu0
      %v3514 = vadd.f32 %v3310, %v3513
      %v3515 = vpop.f32.mrb[0].mxu0
      %3516 = vmatprep.mubr.f32.mxu0 0.0
      %3517 = vmatmul.mubr.f32.gmra.mrb[0].mxu0 %v3285
      %v3518 = vpop.f32.mrb[0].mxu0
      %v3519 = vadd.f32 %v3310, %v3518
      %v3520 = vpop.f32.mrb[0].mxu0
      %3521 = vmatprep.mubr.f32.mxu0 0.0
      %3522 = vmatmul.mubr.f32.gmra.mrb[0].mxu0 %v3286
      %v3523 = vpop.f32.mrb[0].mxu0
      %v3524 = vadd.f32 %v3310, %v3523
      %v3525 = vpop.f32.mrb[0].mxu0
      %3526 = vmatprep.mubr.f32.mxu0 0.0
      %3527 = vmatmul.mubr.f32.gmra.mrb[0].mxu0 %v3287
      %v3528 = vpop.f32.mrb[0].mxu0
      %v3529 = vadd.f32 %v3310, %v3528
      %v3530 = vpop.f32.mrb[0].mxu0
      %3531 = vmatprep.mubr.f32.mxu0 0.0
      %3532 = vmatmul.mubr.f32.gmra.mrb[0].mxu0 %v3288
      %v3533 = vpop.f32.mrb[0].mxu0
      %v3534 = vadd.f32 %v3310, %v3533
      %v3535 = vpop.f32.mrb[0].mxu0
      %3536 = vdwg.mxu0
      %v3537 = vld [vmem:[%s19] sm:$0xff]
      %v3538 = vld [vmem:[%s19 + $0x8] sm:$0xff]
      %v3539 = vld [vmem:[%s19 + $0x10] sm:$0xff]
      %v3540 = vld [vmem:[%s19 + $0x18] sm:$0xff]
      %v3541 = vld [vmem:[%s19 + $0x20] sm:$0xff]
      %v3542 = vld [vmem:[%s19 + $0x28] sm:$0xff]
      %v3543 = vld [vmem:[%s19 + $0x30] sm:$0xff]
      %v3544 = vld [vmem:[%s19 + $0x38] sm:$0xff]
      %v3545 = vld [vmem:[%s19 + $0x40] sm:$0xff]
      %v3546 = vld [vmem:[%s19 + $0x48] sm:$0xff]
      %v3547 = vld [vmem:[%s19 + $0x50] sm:$0xff]
      %v3548 = vld [vmem:[%s19 + $0x58] sm:$0xff]
      %v3549 = vld [vmem:[%s19 + $0x60] sm:$0xff]
      %v3550 = vld [vmem:[%s19 + $0x68] sm:$0xff]
      %v3551 = vld [vmem:[%s19 + $0x70] sm:$0xff]
      %v3552 = vld [vmem:[%s19 + $0x78] sm:$0xff]
      %v3553 = vld [vmem:[%s20] sm:$0x1]
      %v3555 = vlaneseq
      %v3556 = vshrl.u32 %v3555, 7
      %v3557 = vsub.s32 0, %v3556
      %v3558 = vrot.slane %v3553, %v3557
      %3560 = vmatprep.subr.mxu0 0.0
      %3561 = vmatpush1.msra.mxu0 %v3537
      %3562 = vmatprep.subr.mxu0 0.0
      %3563 = vmatpush1.msra.mxu0 %v3538
      %3564 = vmatprep.subr.mxu0 0.0
      %3565 = vmatpush1.msra.mxu0 %v3539
      %3566 = vmatprep.subr.mxu0 0.0
      %3567 = vmatpush1.msra.mxu0 %v3540
      %3568 = vmatprep.subr.mxu0 0.0
      %3569 = vmatpush1.msra.mxu0 %v3541
      %3570 = vmatprep.subr.mxu0 0.0
      %3571 = vmatpush1.msra.mxu0 %v3542
      %3572 = vmatprep.subr.mxu0 0.0
      %3573 = vmatpush1.msra.mxu0 %v3543
      %3574 = vmatprep.subr.mxu0 0.0
      %3575 = vmatpush1.msra.mxu0 %v3544
      %3576 = vmatprep.subr.mxu0 0.0
      %3577 = vmatpush1.msra.mxu0 %v3545
      %3578 = vmatprep.subr.mxu0 0.0
      %3579 = vmatpush1.msra.mxu0 %v3546
      %3580 = vmatprep.subr.mxu0 0.0
      %3581 = vmatpush1.msra.mxu0 %v3547
      %3582 = vmatprep.subr.mxu0 0.0
      %3583 = vmatpush1.msra.mxu0 %v3548
      %3584 = vmatprep.subr.mxu0 0.0
      %3585 = vmatpush1.msra.mxu0 %v3549
      %3586 = vmatprep.subr.mxu0 0.0
      %3587 = vmatpush1.msra.mxu0 %v3550
      %3588 = vmatprep.subr.mxu0 0.0
      %3589 = vmatpush1.msra.mxu0 %v3551
      %3590 = vmatprep.subr.mxu0 0.0
      %3591 = vmatpush1.msra.mxu0 %v3552
      %3592 = vmatprep.subr.mxu0 0.0
      %3593 = vmatpush1.msra.mxu0 0.0
      %3594 = vmatprep.subr.mxu0 0.0
      %3595 = vmatpush1.msra.mxu0 0.0
      %3596 = vmatprep.subr.mxu0 0.0
      %3597 = vmatpush1.msra.mxu0 0.0
      %3598 = vmatprep.subr.mxu0 0.0
      %3599 = vmatpush1.msra.mxu0 0.0
      %3600 = vmatprep.subr.mxu0 0.0
      %3601 = vmatpush1.msra.mxu0 0.0
      %3602 = vmatprep.subr.mxu0 0.0
      %3603 = vmatpush1.msra.mxu0 0.0
      %3604 = vmatprep.subr.mxu0 0.0
      %3605 = vmatpush1.msra.mxu0 0.0
      %3606 = vmatprep.subr.mxu0 0.0
      %3607 = vmatpush1.msra.mxu0 0.0
      %3608 = vmatprep.subr.mxu0 0.0
      %3609 = vmatpush1.msra.mxu0 0.0
      %3610 = vmatprep.subr.mxu0 0.0
      %3611 = vmatpush1.msra.mxu0 0.0
      %3612 = vmatprep.subr.mxu0 0.0
      %3613 = vmatpush1.msra.mxu0 0.0
      %3614 = vmatprep.subr.mxu0 0.0
      %3615 = vmatpush1.msra.mxu0 0.0
      %3616 = vmatprep.subr.mxu0 0.0
      %3617 = vmatpush1.msra.mxu0 0.0
      %3618 = vmatprep.subr.mxu0 0.0
      %3619 = vmatpush1.msra.mxu0 0.0
      %3620 = vmatprep.subr.mxu0 0.0
      %3621 = vmatpush1.msra.mxu0 0.0
      %3622 = vmatprep.subr.mxu0 0.0
      %3623 = vmatpush1.msra.mxu0 0.0
      %3624 = vmatprep.mubr.f32.mxu0 0.0
      %3625 = vmatmul.mubr.f32.gmra.mrb[0].mxu0 %v3379
      %v3626 = vpop.f32.mrb[0].mxu0
      %v3627 = vadd.f32 %v3558, %v3626
      %v3628 = vpop.f32.mrb[0].mxu0
      %3629 = vmatprep.mubr.f32.mxu0 0.0
      %3630 = vmatmul.mubr.f32.gmra.mrb[0].mxu0 %v3384
      %v3631 = vpop.f32.mrb[0].mxu0
      %v3632 = vadd.f32 %v3558, %v3631
      %v3633 = vpop.f32.mrb[0].mxu0
      %3634 = vmatprep.mubr.f32.mxu0 0.0
      %3635 = vmatmul.mubr.f32.gmra.mrb[0].mxu0 %v3389
      %v3636 = vpop.f32.mrb[0].mxu0
      %v3637 = vadd.f32 %v3558, %v3636
      %v3638 = vpop.f32.mrb[0].mxu0
      %3639 = vmatprep.mubr.f32.mxu0 0.0
      %3640 = vmatmul.mubr.f32.gmra.mrb[0].mxu0 %v3394
      %v3641 = vpop.f32.mrb[0].mxu0
      %v3642 = vadd.f32 %v3558, %v3641
      %v3643 = vpop.f32.mrb[0].mxu0
      %3644 = vmatprep.mubr.f32.mxu0 0.0
      %3645 = vmatmul.mubr.f32.gmra.mrb[0].mxu0 %v3399
      %v3646 = vpop.f32.mrb[0].mxu0
      %v3647 = vadd.f32 %v3558, %v3646
      %v3648 = vpop.f32.mrb[0].mxu0
      %3649 = vmatprep.mubr.f32.mxu0 0.0
      %3650 = vmatmul.mubr.f32.gmra.mrb[0].mxu0 %v3404
      %v3651 = vpop.f32.mrb[0].mxu0
      %v3652 = vadd.f32 %v3558, %v3651
      %v3653 = vpop.f32.mrb[0].mxu0
      %3654 = vmatprep.mubr.f32.mxu0 0.0
      %3655 = vmatmul.mubr.f32.gmra.mrb[0].mxu0 %v3409
      %v3656 = vpop.f32.mrb[0].mxu0
      %v3657 = vadd.f32 %v3558, %v3656
      %v3658 = vpop.f32.mrb[0].mxu0
      %3659 = vmatprep.mubr.f32.mxu0 0.0
      %3660 = vmatmul.mubr.f32.gmra.mrb[0].mxu0 %v3414
      %v3661 = vpop.f32.mrb[0].mxu0
      %v3662 = vadd.f32 %v3558, %v3661
      %v3663 = vpop.f32.mrb[0].mxu0
      %3664 = vmatprep.mubr.f32.mxu0 0.0
      %3665 = vmatmul.mubr.f32.gmra.mrb[0].mxu0 %v3419
      %v3666 = vpop.f32.mrb[0].mxu0
      %v3667 = vadd.f32 %v3558, %v3666
      %v3668 = vpop.f32.mrb[0].mxu0
      %3669 = vmatprep.mubr.f32.mxu0 0.0
      %3670 = vmatmul.mubr.f32.gmra.mrb[0].mxu0 %v3424
      %v3671 = vpop.f32.mrb[0].mxu0
      %v3672 = vadd.f32 %v3558, %v3671
      %v3673 = vpop.f32.mrb[0].mxu0
      %3674 = vmatprep.mubr.f32.mxu0 0.0
      %3675 = vmatmul.mubr.f32.gmra.mrb[0].mxu0 %v3429
      %v3676 = vpop.f32.mrb[0].mxu0
      %v3677 = vadd.f32 %v3558, %v3676
      %v3678 = vpop.f32.mrb[0].mxu0
      %3679 = vmatprep.mubr.f32.mxu0 0.0
      %3680 = vmatmul.mubr.f32.gmra.mrb[0].mxu0 %v3434
      %v3681 = vpop.f32.mrb[0].mxu0
      %v3682 = vadd.f32 %v3558, %v3681
      %v3683 = vpop.f32.mrb[0].mxu0
      %3684 = vmatprep.mubr.f32.mxu0 0.0
      %3685 = vmatmul.mubr.f32.gmra.mrb[0].mxu0 %v3439
      %v3686 = vpop.f32.mrb[0].mxu0
      %v3687 = vadd.f32 %v3558, %v3686
      %v3688 = vpop.f32.mrb[0].mxu0
      %3689 = vmatprep.mubr.f32.mxu0 0.0
      %3690 = vmatmul.mubr.f32.gmra.mrb[0].mxu0 %v3444
      %v3691 = vpop.f32.mrb[0].mxu0
      %v3692 = vadd.f32 %v3558, %v3691
      %v3693 = vpop.f32.mrb[0].mxu0
      %3694 = vmatprep.mubr.f32.mxu0 0.0
      %3695 = vmatmul.mubr.f32.gmra.mrb[0].mxu0 %v3449
      %v3696 = vpop.f32.mrb[0].mxu0
      %v3697 = vadd.f32 %v3558, %v3696
      %v3698 = vpop.f32.mrb[0].mxu0
      %3699 = vmatprep.mubr.f32.mxu0 0.0
      %3700 = vmatmul.mubr.f32.gmra.mrb[0].mxu0 %v3454
      %v3701 = vpop.f32.mrb[0].mxu0
      %v3702 = vadd.f32 %v3558, %v3701
      %v3703 = vpop.f32.mrb[0].mxu0
      %3704 = vmatprep.mubr.f32.mxu0 0.0
      %3705 = vmatmul.mubr.f32.gmra.mrb[0].mxu0 %v3459
      %v3706 = vpop.f32.mrb[0].mxu0
      %v3707 = vadd.f32 %v3558, %v3706
      %v3708 = vpop.f32.mrb[0].mxu0
      %3709 = vmatprep.mubr.f32.mxu0 0.0
      %3710 = vmatmul.mubr.f32.gmra.mrb[0].mxu0 %v3464
      %v3711 = vpop.f32.mrb[0].mxu0
      %v3712 = vadd.f32 %v3558, %v3711
      %v3713 = vpop.f32.mrb[0].mxu0
      %3714 = vmatprep.mubr.f32.mxu0 0.0
      %3715 = vmatmul.mubr.f32.gmra.mrb[0].mxu0 %v3469
      %v3716 = vpop.f32.mrb[0].mxu0
      %v3717 = vadd.f32 %v3558, %v3716
      %v3718 = vpop.f32.mrb[0].mxu0
      %3719 = vmatprep.mubr.f32.mxu0 0.0
      %3720 = vmatmul.mubr.f32.gmra.mrb[0].mxu0 %v3474
      %v3721 = vpop.f32.mrb[0].mxu0
      %v3722 = vadd.f32 %v3558, %v3721
      %v3723 = vpop.f32.mrb[0].mxu0
      %3724 = vmatprep.mubr.f32.mxu0 0.0
      %3725 = vmatmul.mubr.f32.gmra.mrb[0].mxu0 %v3479
      %v3726 = vpop.f32.mrb[0].mxu0
      %v3727 = vadd.f32 %v3558, %v3726
      %v3728 = vpop.f32.mrb[0].mxu0
      %3729 = vmatprep.mubr.f32.mxu0 0.0
      %3730 = vmatmul.mubr.f32.gmra.mrb[0].mxu0 %v3484
      %v3731 = vpop.f32.mrb[0].mxu0
      %v3732 = vadd.f32 %v3558, %v3731
      %v3733 = vpop.f32.mrb[0].mxu0
      %3734 = vmatprep.mubr.f32.mxu0 0.0
      %3735 = vmatmul.mubr.f32.gmra.mrb[0].mxu0 %v3489
      %v3736 = vpop.f32.mrb[0].mxu0
      %v3737 = vadd.f32 %v3558, %v3736
      %v3738 = vpop.f32.mrb[0].mxu0
      %3739 = vmatprep.mubr.f32.mxu0 0.0
      %3740 = vmatmul.mubr.f32.gmra.mrb[0].mxu0 %v3494
      %v3741 = vpop.f32.mrb[0].mxu0
      %v3742 = vadd.f32 %v3558, %v3741
      %v3743 = vpop.f32.mrb[0].mxu0
      %3744 = vmatprep.mubr.f32.mxu0 0.0
      %3745 = vmatmul.mubr.f32.gmra.mrb[0].mxu0 %v3499
      %v3746 = vpop.f32.mrb[0].mxu0
      %v3747 = vadd.f32 %v3558, %v3746
      %v3748 = vpop.f32.mrb[0].mxu0
      %3749 = vmatprep.mubr.f32.mxu0 0.0
      %3750 = vmatmul.mubr.f32.gmra.mrb[0].mxu0 %v3504
      %v3751 = vpop.f32.mrb[0].mxu0
      %v3752 = vadd.f32 %v3558, %v3751
      %v3753 = vpop.f32.mrb[0].mxu0
      %3754 = vmatprep.mubr.f32.mxu0 0.0
      %3755 = vmatmul.mubr.f32.gmra.mrb[0].mxu0 %v3509
      %v3756 = vpop.f32.mrb[0].mxu0
      %v3757 = vadd.f32 %v3558, %v3756
      %v3758 = vpop.f32.mrb[0].mxu0
      %3759 = vmatprep.mubr.f32.mxu0 0.0
      %3760 = vmatmul.mubr.f32.gmra.mrb[0].mxu0 %v3514
      %v3761 = vpop.f32.mrb[0].mxu0
      %v3762 = vadd.f32 %v3558, %v3761
      %v3763 = vpop.f32.mrb[0].mxu0
      %3764 = vmatprep.mubr.f32.mxu0 0.0
      %3765 = vmatmul.mubr.f32.gmra.mrb[0].mxu0 %v3519
      %v3766 = vpop.f32.mrb[0].mxu0
      %v3767 = vadd.f32 %v3558, %v3766
      %v3768 = vpop.f32.mrb[0].mxu0
      %3769 = vmatprep.mubr.f32.mxu0 0.0
      %3770 = vmatmul.mubr.f32.gmra.mrb[0].mxu0 %v3524
      %v3771 = vpop.f32.mrb[0].mxu0
      %v3772 = vadd.f32 %v3558, %v3771
      %v3773 = vpop.f32.mrb[0].mxu0
      %3774 = vmatprep.mubr.f32.mxu0 0.0
      %3775 = vmatmul.mubr.f32.gmra.mrb[0].mxu0 %v3529
      %v3776 = vpop.f32.mrb[0].mxu0
      %v3777 = vadd.f32 %v3558, %v3776
      %v3778 = vpop.f32.mrb[0].mxu0
      %3779 = vmatprep.mubr.f32.mxu0 0.0
      %3780 = vmatmul.mubr.f32.gmra.mrb[0].mxu0 %v3534
      %v3781 = vpop.f32.mrb[0].mxu0
      %v3782 = vadd.f32 %v3558, %v3781
      %v3783 = vpop.f32.mrb[0].mxu0
      %3784 = vdwg.mxu0
      %v3785 = vld [vmem:[%s21] sm:$0xff]
      %v3786 = vld [vmem:[%s21 + $0x8] sm:$0xff]
      %v3787 = vld [vmem:[%s21 + $0x10] sm:$0xff]
      %v3788 = vld [vmem:[%s21 + $0x18] sm:$0xff]
      %v3789 = vld [vmem:[%s21 + $0x20] sm:$0xff]
      %v3790 = vld [vmem:[%s21 + $0x28] sm:$0xff]
      %v3791 = vld [vmem:[%s21 + $0x30] sm:$0xff]
      %v3792 = vld [vmem:[%s21 + $0x38] sm:$0xff]
      %v3793 = vld [vmem:[%s21 + $0x40] sm:$0xff]
      %v3794 = vld [vmem:[%s21 + $0x48] sm:$0xff]
      %v3795 = vld [vmem:[%s21 + $0x50] sm:$0xff]
      %v3796 = vld [vmem:[%s21 + $0x58] sm:$0xff]
      %v3797 = vld [vmem:[%s21 + $0x60] sm:$0xff]
      %v3798 = vld [vmem:[%s21 + $0x68] sm:$0xff]
      %v3799 = vld [vmem:[%s21 + $0x70] sm:$0xff]
      %v3800 = vld [vmem:[%s21 + $0x78] sm:$0xff]
      %v3801 = vld [vmem:[%s22] sm:$0xff]
      %v3802 = vld [vmem:[%s22 + $0x8] sm:$0xff]
      %v3803 = vld [vmem:[%s22 + $0x10] sm:$0xff]
      %v3804 = vld [vmem:[%s22 + $0x18] sm:$0xff]
      %v3805 = vld [vmem:[%s22 + $0x20] sm:$0xff]
      %v3806 = vld [vmem:[%s22 + $0x28] sm:$0xff]
      %v3807 = vld [vmem:[%s22 + $0x30] sm:$0xff]
      %v3808 = vld [vmem:[%s22 + $0x38] sm:$0xff]
      %v3809 = vld [vmem:[%s22 + $0x40] sm:$0xff]
      %v3810 = vld [vmem:[%s22 + $0x48] sm:$0xff]
      %v3811 = vld [vmem:[%s22 + $0x50] sm:$0xff]
      %v3812 = vld [vmem:[%s22 + $0x58] sm:$0xff]
      %vm3813 = vcmask 785408
      %v3815 = vsel %vm3813, %v911, 0
      %v3818 = vsel %vm3813, %v912, 0
      %v3821 = vsel %vm3813, %v913, 0
      %v3824 = vsel %vm3813, %v914, 0
      %v3827 = vsel %vm3813, %v915, 0
      %v3830 = vsel %vm3813, %v916, 0
      %v3833 = vsel %vm3813, %v917, 0
      %v3836 = vsel %vm3813, %v918, 0
      %v3839 = vsel %vm3813, %v919, 0
      %v3842 = vsel %vm3813, %v920, 0
      %v3845 = vsel %vm3813, %v921, 0
      %v3848 = vsel %vm3813, %v922, 0
      %v3851 = vsel %vm3813, %v923, 0
      %v3854 = vsel %vm3813, %v924, 0
      %v3857 = vsel %vm3813, %v925, 0
      %v3860 = vsel %vm3813, %v926, 0
      %v3863 = vsel %vm3813, %v927, 0
      %v3866 = vsel %vm3813, %v928, 0
      %v3869 = vsel %vm3813, %v929, 0
      %v3872 = vsel %vm3813, %v930, 0
      %v3875 = vsel %vm3813, %v931, 0
      %v3878 = vsel %vm3813, %v932, 0
      %v3881 = vsel %vm3813, %v933, 0
      %v3884 = vsel %vm3813, %v934, 0
      %v3887 = vsel %vm3813, %v935, 0
      %v3890 = vsel %vm3813, %v936, 0
      %v3893 = vsel %vm3813, %v937, 0
      %v3896 = vsel %vm3813, %v938, 0
      %v3899 = vsel %vm3813, %v939, 0
      %v3902 = vsel %vm3813, %v940, 0
      %v3905 = vsel %vm3813, %v941, 0
      %v3908 = vsel %vm3813, %v942, 0
      %3910 = vmatprep.subr.mxu0 0.0
      %3911 = vmatpush1.msra.mxu0 %v3801
      %3912 = vmatprep.subr.mxu0 0.0
      %3913 = vmatpush1.msra.mxu0 %v3802
      %3914 = vmatprep.subr.mxu0 0.0
      %3915 = vmatpush1.msra.mxu0 %v3803
      %3916 = vmatprep.subr.mxu0 0.0
      %3917 = vmatpush1.msra.mxu0 %v3804
      %3918 = vmatprep.subr.mxu0 0.0
      %3919 = vmatpush1.msra.mxu0 %v3805
      %3920 = vmatprep.subr.mxu0 0.0
      %3921 = vmatpush1.msra.mxu0 %v3806
      %3922 = vmatprep.subr.mxu0 0.0
      %3923 = vmatpush1.msra.mxu0 %v3807
      %3924 = vmatprep.subr.mxu0 0.0
      %3925 = vmatpush1.msra.mxu0 %v3808
      %3926 = vmatprep.subr.mxu0 0.0
      %3927 = vmatpush1.msra.mxu0 %v3809
      %3928 = vmatprep.subr.mxu0 0.0
      %3929 = vmatpush1.msra.mxu0 %v3810
      %3930 = vmatprep.subr.mxu0 0.0
      %3931 = vmatpush1.msra.mxu0 %v3811
      %3932 = vmatprep.subr.mxu0 0.0
      %3933 = vmatpush1.msra.mxu0 %v3812
      %3934 = vmatprep.subr.mxu0 0.0
      %3935 = vmatpush1.msra.mxu0 0.0
      %3936 = vmatprep.subr.mxu0 0.0
      %3937 = vmatpush1.msra.mxu0 0.0
      %3938 = vmatprep.subr.mxu0 0.0
      %3939 = vmatpush1.msra.mxu0 0.0
      %3940 = vmatprep.subr.mxu0 0.0
      %3941 = vmatpush1.msra.mxu0 0.0
      %3942 = vmatprep.subr.mxu0 0.0
      %3943 = vmatpush1.msra.mxu0 0.0
      %3944 = vmatprep.subr.mxu0 0.0
      %3945 = vmatpush1.msra.mxu0 0.0
      %3946 = vmatprep.subr.mxu0 0.0
      %3947 = vmatpush1.msra.mxu0 0.0
      %3948 = vmatprep.subr.mxu0 0.0
      %3949 = vmatpush1.msra.mxu0 0.0
      %3950 = vmatprep.subr.mxu0 0.0
      %3951 = vmatpush1.msra.mxu0 0.0
      %3952 = vmatprep.subr.mxu0 0.0
      %3953 = vmatpush1.msra.mxu0 0.0
      %3954 = vmatprep.subr.mxu0 0.0
      %3955 = vmatpush1.msra.mxu0 0.0
      %3956 = vmatprep.subr.mxu0 0.0
      %3957 = vmatpush1.msra.mxu0 0.0
      %3958 = vmatprep.subr.mxu0 0.0
      %3959 = vmatpush1.msra.mxu0 0.0
      %3960 = vmatprep.subr.mxu0 0.0
      %3961 = vmatpush1.msra.mxu0 0.0
      %3962 = vmatprep.subr.mxu0 0.0
      %3963 = vmatpush1.msra.mxu0 0.0
      %3964 = vmatprep.subr.mxu0 0.0
      %3965 = vmatpush1.msra.mxu0 0.0
      %3966 = vmatprep.subr.mxu0 0.0
      %3967 = vmatpush1.msra.mxu0 0.0
      %3968 = vmatprep.subr.mxu0 0.0
      %3969 = vmatpush1.msra.mxu0 0.0
      %3970 = vmatprep.subr.mxu0 0.0
      %3971 = vmatpush1.msra.mxu0 0.0
      %3972 = vmatprep.subr.mxu0 0.0
      %3973 = vmatpush1.msra.mxu0 0.0
      %3974 = vmatprep.mubr.f32.mxu0 0.0
      %3975 = vmatmul.mubr.f32.gmra.mrb[0].mxu0 %v3815
      %v3976 = vpop.f32.mrb[0].mxu0
      %v3977 = vadd.f32 0.0, %v3976
      %v3978 = vpop.f32.mrb[0].mxu0
      %3979 = vmatprep.mubr.f32.mxu0 0.0
      %3980 = vmatmul.mubr.f32.gmra.mrb[0].mxu0 %v3818
      %v3981 = vpop.f32.mrb[0].mxu0
      %v3982 = vadd.f32 0.0, %v3981
      %v3983 = vpop.f32.mrb[0].mxu0
      %3984 = vmatprep.mubr.f32.mxu0 0.0
      %3985 = vmatmul.mubr.f32.gmra.mrb[0].mxu0 %v3821
      %v3986 = vpop.f32.mrb[0].mxu0
      %v3987 = vadd.f32 0.0, %v3986
      %v3988 = vpop.f32.mrb[0].mxu0
      %3989 = vmatprep.mubr.f32.mxu0 0.0
      %3990 = vmatmul.mubr.f32.gmra.mrb[0].mxu0 %v3824
      %v3991 = vpop.f32.mrb[0].mxu0
      %v3992 = vadd.f32 0.0, %v3991
      %v3993 = vpop.f32.mrb[0].mxu0
      %3994 = vmatprep.mubr.f32.mxu0 0.0
      %3995 = vmatmul.mubr.f32.gmra.mrb[0].mxu0 %v3827
      %v3996 = vpop.f32.mrb[0].mxu0
      %v3997 = vadd.f32 0.0, %v3996
      %v3998 = vpop.f32.mrb[0].mxu0
      %3999 = vmatprep.mubr.f32.mxu0 0.0
      %4000 = vmatmul.mubr.f32.gmra.mrb[0].mxu0 %v3830
      %v4001 = vpop.f32.mrb[0].mxu0
      %v4002 = vadd.f32 0.0, %v4001
      %v4003 = vpop.f32.mrb[0].mxu0
      %4004 = vmatprep.mubr.f32.mxu0 0.0
      %4005 = vmatmul.mubr.f32.gmra.mrb[0].mxu0 %v3833
      %v4006 = vpop.f32.mrb[0].mxu0
      %v4007 = vadd.f32 0.0, %v4006
      %v4008 = vpop.f32.mrb[0].mxu0
      %4009 = vmatprep.mubr.f32.mxu0 0.0
      %4010 = vmatmul.mubr.f32.gmra.mrb[0].mxu0 %v3836
      %v4011 = vpop.f32.mrb[0].mxu0
      %v4012 = vadd.f32 0.0, %v4011
      %v4013 = vpop.f32.mrb[0].mxu0
      %4014 = vmatprep.mubr.f32.mxu0 0.0
      %4015 = vmatmul.mubr.f32.gmra.mrb[0].mxu0 %v3839
      %v4016 = vpop.f32.mrb[0].mxu0
      %v4017 = vadd.f32 0.0, %v4016
      %v4018 = vpop.f32.mrb[0].mxu0
      %4019 = vmatprep.mubr.f32.mxu0 0.0
      %4020 = vmatmul.mubr.f32.gmra.mrb[0].mxu0 %v3842
      %v4021 = vpop.f32.mrb[0].mxu0
      %v4022 = vadd.f32 0.0, %v4021
      %v4023 = vpop.f32.mrb[0].mxu0
      %4024 = vmatprep.mubr.f32.mxu0 0.0
      %4025 = vmatmul.mubr.f32.gmra.mrb[0].mxu0 %v3845
      %v4026 = vpop.f32.mrb[0].mxu0
      %v4027 = vadd.f32 0.0, %v4026
      %v4028 = vpop.f32.mrb[0].mxu0
      %4029 = vmatprep.mubr.f32.mxu0 0.0
      %4030 = vmatmul.mubr.f32.gmra.mrb[0].mxu0 %v3848
      %v4031 = vpop.f32.mrb[0].mxu0
      %v4032 = vadd.f32 0.0, %v4031
      %v4033 = vpop.f32.mrb[0].mxu0
      %4034 = vmatprep.mubr.f32.mxu0 0.0
      %4035 = vmatmul.mubr.f32.gmra.mrb[0].mxu0 %v3851
      %v4036 = vpop.f32.mrb[0].mxu0
      %v4037 = vadd.f32 0.0, %v4036
      %v4038 = vpop.f32.mrb[0].mxu0
      %4039 = vmatprep.mubr.f32.mxu0 0.0
      %4040 = vmatmul.mubr.f32.gmra.mrb[0].mxu0 %v3854
      %v4041 = vpop.f32.mrb[0].mxu0
      %v4042 = vadd.f32 0.0, %v4041
      %v4043 = vpop.f32.mrb[0].mxu0
      %4044 = vmatprep.mubr.f32.mxu0 0.0
      %4045 = vmatmul.mubr.f32.gmra.mrb[0].mxu0 %v3857
      %v4046 = vpop.f32.mrb[0].mxu0
      %v4047 = vadd.f32 0.0, %v4046
      %v4048 = vpop.f32.mrb[0].mxu0
      %4049 = vmatprep.mubr.f32.mxu0 0.0
      %4050 = vmatmul.mubr.f32.gmra.mrb[0].mxu0 %v3860
      %v4051 = vpop.f32.mrb[0].mxu0
      %v4052 = vadd.f32 0.0, %v4051
      %v4053 = vpop.f32.mrb[0].mxu0
      %4054 = vmatprep.mubr.f32.mxu0 0.0
      %4055 = vmatmul.mubr.f32.gmra.mrb[0].mxu0 %v3863
      %v4056 = vpop.f32.mrb[0].mxu0
      %v4057 = vadd.f32 0.0, %v4056
      %v4058 = vpop.f32.mrb[0].mxu0
      %4059 = vmatprep.mubr.f32.mxu0 0.0
      %4060 = vmatmul.mubr.f32.gmra.mrb[0].mxu0 %v3866
      %v4061 = vpop.f32.mrb[0].mxu0
      %v4062 = vadd.f32 0.0, %v4061
      %v4063 = vpop.f32.mrb[0].mxu0
      %4064 = vmatprep.mubr.f32.mxu0 0.0
      %4065 = vmatmul.mubr.f32.gmra.mrb[0].mxu0 %v3869
      %v4066 = vpop.f32.mrb[0].mxu0
      %v4067 = vadd.f32 0.0, %v4066
      %v4068 = vpop.f32.mrb[0].mxu0
      %4069 = vmatprep.mubr.f32.mxu0 0.0
      %4070 = vmatmul.mubr.f32.gmra.mrb[0].mxu0 %v3872
      %v4071 = vpop.f32.mrb[0].mxu0
      %v4072 = vadd.f32 0.0, %v4071
      %v4073 = vpop.f32.mrb[0].mxu0
      %4074 = vmatprep.mubr.f32.mxu0 0.0
      %4075 = vmatmul.mubr.f32.gmra.mrb[0].mxu0 %v3875
      %v4076 = vpop.f32.mrb[0].mxu0
      %v4077 = vadd.f32 0.0, %v4076
      %v4078 = vpop.f32.mrb[0].mxu0
      %4079 = vmatprep.mubr.f32.mxu0 0.0
      %4080 = vmatmul.mubr.f32.gmra.mrb[0].mxu0 %v3878
      %v4081 = vpop.f32.mrb[0].mxu0
      %v4082 = vadd.f32 0.0, %v4081
      %v4083 = vpop.f32.mrb[0].mxu0
      %4084 = vmatprep.mubr.f32.mxu0 0.0
      %4085 = vmatmul.mubr.f32.gmra.mrb[0].mxu0 %v3881
      %v4086 = vpop.f32.mrb[0].mxu0
      %v4087 = vadd.f32 0.0, %v4086
      %v4088 = vpop.f32.mrb[0].mxu0
      %4089 = vmatprep.mubr.f32.mxu0 0.0
      %4090 = vmatmul.mubr.f32.gmra.mrb[0].mxu0 %v3884
      %v4091 = vpop.f32.mrb[0].mxu0
      %v4092 = vadd.f32 0.0, %v4091
      %v4093 = vpop.f32.mrb[0].mxu0
      %4094 = vmatprep.mubr.f32.mxu0 0.0
      %4095 = vmatmul.mubr.f32.gmra.mrb[0].mxu0 %v3887
      %v4096 = vpop.f32.mrb[0].mxu0
      %v4097 = vadd.f32 0.0, %v4096
      %v4098 = vpop.f32.mrb[0].mxu0
      %4099 = vmatprep.mubr.f32.mxu0 0.0
      %4100 = vmatmul.mubr.f32.gmra.mrb[0].mxu0 %v3890
      %v4101 = vpop.f32.mrb[0].mxu0
      %v4102 = vadd.f32 0.0, %v4101
      %v4103 = vpop.f32.mrb[0].mxu0
      %4104 = vmatprep.mubr.f32.mxu0 0.0
      %4105 = vmatmul.mubr.f32.gmra.mrb[0].mxu0 %v3893
      %v4106 = vpop.f32.mrb[0].mxu0
      %v4107 = vadd.f32 0.0, %v4106
      %v4108 = vpop.f32.mrb[0].mxu0
      %4109 = vmatprep.mubr.f32.mxu0 0.0
      %4110 = vmatmul.mubr.f32.gmra.mrb[0].mxu0 %v3896
      %v4111 = vpop.f32.mrb[0].mxu0
      %v4112 = vadd.f32 0.0, %v4111
      %v4113 = vpop.f32.mrb[0].mxu0
      %4114 = vmatprep.mubr.f32.mxu0 0.0
      %4115 = vmatmul.mubr.f32.gmra.mrb[0].mxu0 %v3899
      %v4116 = vpop.f32.mrb[0].mxu0
      %v4117 = vadd.f32 0.0, %v4116
      %v4118 = vpop.f32.mrb[0].mxu0
      %4119 = vmatprep.mubr.f32.mxu0 0.0
      %4120 = vmatmul.mubr.f32.gmra.mrb[0].mxu0 %v3902
      %v4121 = vpop.f32.mrb[0].mxu0
      %v4122 = vadd.f32 0.0, %v4121
      %v4123 = vpop.f32.mrb[0].mxu0
      %4124 = vmatprep.mubr.f32.mxu0 0.0
      %4125 = vmatmul.mubr.f32.gmra.mrb[0].mxu0 %v3905
      %v4126 = vpop.f32.mrb[0].mxu0
      %v4127 = vadd.f32 0.0, %v4126
      %v4128 = vpop.f32.mrb[0].mxu0
      %4129 = vmatprep.mubr.f32.mxu0 0.0
      %4130 = vmatmul.mubr.f32.gmra.mrb[0].mxu0 %v3908
      %v4131 = vpop.f32.mrb[0].mxu0
      %v4132 = vadd.f32 0.0, %v4131
      %v4133 = vpop.f32.mrb[0].mxu0
      %4134 = vdwg.mxu0
      %4135 = vmatprep.subr.mxu0 0.0
      %4136 = vmatpush1.msra.mxu0 %v3785
      %4137 = vmatprep.subr.mxu0 0.0
      %4138 = vmatpush1.msra.mxu0 %v3786
      %4139 = vmatprep.subr.mxu0 0.0
      %4140 = vmatpush1.msra.mxu0 %v3787
      %4141 = vmatprep.subr.mxu0 0.0
      %4142 = vmatpush1.msra.mxu0 %v3788
      %4143 = vmatprep.subr.mxu0 0.0
      %4144 = vmatpush1.msra.mxu0 %v3789
      %4145 = vmatprep.subr.mxu0 0.0
      %4146 = vmatpush1.msra.mxu0 %v3790
      %4147 = vmatprep.subr.mxu0 0.0
      %4148 = vmatpush1.msra.mxu0 %v3791
      %4149 = vmatprep.subr.mxu0 0.0
      %4150 = vmatpush1.msra.mxu0 %v3792
      %4151 = vmatprep.subr.mxu0 0.0
      %4152 = vmatpush1.msra.mxu0 %v3793
      %4153 = vmatprep.subr.mxu0 0.0
      %4154 = vmatpush1.msra.mxu0 %v3794
      %4155 = vmatprep.subr.mxu0 0.0
      %4156 = vmatpush1.msra.mxu0 %v3795
      %4157 = vmatprep.subr.mxu0 0.0
      %4158 = vmatpush1.msra.mxu0 %v3796
      %4159 = vmatprep.subr.mxu0 0.0
      %4160 = vmatpush1.msra.mxu0 %v3797
      %4161 = vmatprep.subr.mxu0 0.0
      %4162 = vmatpush1.msra.mxu0 %v3798
      %4163 = vmatprep.subr.mxu0 0.0
      %4164 = vmatpush1.msra.mxu0 %v3799
      %4165 = vmatprep.subr.mxu0 0.0
      %4166 = vmatpush1.msra.mxu0 %v3800
      %4167 = vmatprep.subr.mxu0 0.0
      %4168 = vmatpush1.msra.mxu0 0.0
      %4169 = vmatprep.subr.mxu0 0.0
      %4170 = vmatpush1.msra.mxu0 0.0
      %4171 = vmatprep.subr.mxu0 0.0
      %4172 = vmatpush1.msra.mxu0 0.0
      %4173 = vmatprep.subr.mxu0 0.0
      %4174 = vmatpush1.msra.mxu0 0.0
      %4175 = vmatprep.subr.mxu0 0.0
      %4176 = vmatpush1.msra.mxu0 0.0
      %4177 = vmatprep.subr.mxu0 0.0
      %4178 = vmatpush1.msra.mxu0 0.0
      %4179 = vmatprep.subr.mxu0 0.0
      %4180 = vmatpush1.msra.mxu0 0.0
      %4181 = vmatprep.subr.mxu0 0.0
      %4182 = vmatpush1.msra.mxu0 0.0
      %4183 = vmatprep.subr.mxu0 0.0
      %4184 = vmatpush1.msra.mxu0 0.0
      %4185 = vmatprep.subr.mxu0 0.0
      %4186 = vmatpush1.msra.mxu0 0.0
      %4187 = vmatprep.subr.mxu0 0.0
      %4188 = vmatpush1.msra.mxu0 0.0
      %4189 = vmatprep.subr.mxu0 0.0
      %4190 = vmatpush1.msra.mxu0 0.0
      %4191 = vmatprep.subr.mxu0 0.0
      %4192 = vmatpush1.msra.mxu0 0.0
      %4193 = vmatprep.subr.mxu0 0.0
      %4194 = vmatpush1.msra.mxu0 0.0
      %4195 = vmatprep.subr.mxu0 0.0
      %4196 = vmatpush1.msra.mxu0 0.0
      %4197 = vmatprep.subr.mxu0 0.0
      %4198 = vmatpush1.msra.mxu0 0.0
      %4199 = vmatprep.mubr.f32.mxu0 0.0
      %4200 = vmatmul.mubr.f32.gmra.mrb[0].mxu0 %v3627
      %v4201 = vpop.f32.mrb[0].mxu0
      %v4202 = vadd.f32 %v3977, %v4201
      %v4203 = vpop.f32.mrb[0].mxu0
      %4204 = vmatprep.mubr.f32.mxu0 0.0
      %4205 = vmatmul.mubr.f32.gmra.mrb[0].mxu0 %v3632
      %v4206 = vpop.f32.mrb[0].mxu0
      %v4207 = vadd.f32 %v3982, %v4206
      %v4208 = vpop.f32.mrb[0].mxu0
      %4209 = vmatprep.mubr.f32.mxu0 0.0
      %4210 = vmatmul.mubr.f32.gmra.mrb[0].mxu0 %v3637
      %v4211 = vpop.f32.mrb[0].mxu0
      %v4212 = vadd.f32 %v3987, %v4211
      %v4213 = vpop.f32.mrb[0].mxu0
      %4214 = vmatprep.mubr.f32.mxu0 0.0
      %4215 = vmatmul.mubr.f32.gmra.mrb[0].mxu0 %v3642
      %v4216 = vpop.f32.mrb[0].mxu0
      %v4217 = vadd.f32 %v3992, %v4216
      %v4218 = vpop.f32.mrb[0].mxu0
      %4219 = vmatprep.mubr.f32.mxu0 0.0
      %4220 = vmatmul.mubr.f32.gmra.mrb[0].mxu0 %v3647
      %v4221 = vpop.f32.mrb[0].mxu0
      %v4222 = vadd.f32 %v3997, %v4221
      %v4223 = vpop.f32.mrb[0].mxu0
      %4224 = vmatprep.mubr.f32.mxu0 0.0
      %4225 = vmatmul.mubr.f32.gmra.mrb[0].mxu0 %v3652
      %v4226 = vpop.f32.mrb[0].mxu0
      %v4227 = vadd.f32 %v4002, %v4226
      %v4228 = vpop.f32.mrb[0].mxu0
      %4229 = vmatprep.mubr.f32.mxu0 0.0
      %4230 = vmatmul.mubr.f32.gmra.mrb[0].mxu0 %v3657
      %v4231 = vpop.f32.mrb[0].mxu0
      %v4232 = vadd.f32 %v4007, %v4231
      %v4233 = vpop.f32.mrb[0].mxu0
      %4234 = vmatprep.mubr.f32.mxu0 0.0
      %4235 = vmatmul.mubr.f32.gmra.mrb[0].mxu0 %v3662
      %v4236 = vpop.f32.mrb[0].mxu0
      %v4237 = vadd.f32 %v4012, %v4236
      %v4238 = vpop.f32.mrb[0].mxu0
      %4239 = vmatprep.mubr.f32.mxu0 0.0
      %4240 = vmatmul.mubr.f32.gmra.mrb[0].mxu0 %v3667
      %v4241 = vpop.f32.mrb[0].mxu0
      %v4242 = vadd.f32 %v4017, %v4241
      %v4243 = vpop.f32.mrb[0].mxu0
      %4244 = vmatprep.mubr.f32.mxu0 0.0
      %4245 = vmatmul.mubr.f32.gmra.mrb[0].mxu0 %v3672
      %v4246 = vpop.f32.mrb[0].mxu0
      %v4247 = vadd.f32 %v4022, %v4246
      %v4248 = vpop.f32.mrb[0].mxu0
      %4249 = vmatprep.mubr.f32.mxu0 0.0
      %4250 = vmatmul.mubr.f32.gmra.mrb[0].mxu0 %v3677
      %v4251 = vpop.f32.mrb[0].mxu0
      %v4252 = vadd.f32 %v4027, %v4251
      %v4253 = vpop.f32.mrb[0].mxu0
      %4254 = vmatprep.mubr.f32.mxu0 0.0
      %4255 = vmatmul.mubr.f32.gmra.mrb[0].mxu0 %v3682
      %v4256 = vpop.f32.mrb[0].mxu0
      %v4257 = vadd.f32 %v4032, %v4256
      %v4258 = vpop.f32.mrb[0].mxu0
      %4259 = vmatprep.mubr.f32.mxu0 0.0
      %4260 = vmatmul.mubr.f32.gmra.mrb[0].mxu0 %v3687
      %v4261 = vpop.f32.mrb[0].mxu0
      %v4262 = vadd.f32 %v4037, %v4261
      %v4263 = vpop.f32.mrb[0].mxu0
      %4264 = vmatprep.mubr.f32.mxu0 0.0
      %4265 = vmatmul.mubr.f32.gmra.mrb[0].mxu0 %v3692
      %v4266 = vpop.f32.mrb[0].mxu0
      %v4267 = vadd.f32 %v4042, %v4266
      %v4268 = vpop.f32.mrb[0].mxu0
      %4269 = vmatprep.mubr.f32.mxu0 0.0
      %4270 = vmatmul.mubr.f32.gmra.mrb[0].mxu0 %v3697
      %v4271 = vpop.f32.mrb[0].mxu0
      %v4272 = vadd.f32 %v4047, %v4271
      %v4273 = vpop.f32.mrb[0].mxu0
      %4274 = vmatprep.mubr.f32.mxu0 0.0
      %4275 = vmatmul.mubr.f32.gmra.mrb[0].mxu0 %v3702
      %v4276 = vpop.f32.mrb[0].mxu0
      %v4277 = vadd.f32 %v4052, %v4276
      %v4278 = vpop.f32.mrb[0].mxu0
      %4279 = vmatprep.mubr.f32.mxu0 0.0
      %4280 = vmatmul.mubr.f32.gmra.mrb[0].mxu0 %v3707
      %v4281 = vpop.f32.mrb[0].mxu0
      %v4282 = vadd.f32 %v4057, %v4281
      %v4283 = vpop.f32.mrb[0].mxu0
      %4284 = vmatprep.mubr.f32.mxu0 0.0
      %4285 = vmatmul.mubr.f32.gmra.mrb[0].mxu0 %v3712
      %v4286 = vpop.f32.mrb[0].mxu0
      %v4287 = vadd.f32 %v4062, %v4286
      %v4288 = vpop.f32.mrb[0].mxu0
      %4289 = vmatprep.mubr.f32.mxu0 0.0
      %4290 = vmatmul.mubr.f32.gmra.mrb[0].mxu0 %v3717
      %v4291 = vpop.f32.mrb[0].mxu0
      %v4292 = vadd.f32 %v4067, %v4291
      %v4293 = vpop.f32.mrb[0].mxu0
      %4294 = vmatprep.mubr.f32.mxu0 0.0
      %4295 = vmatmul.mubr.f32.gmra.mrb[0].mxu0 %v3722
      %v4296 = vpop.f32.mrb[0].mxu0
      %v4297 = vadd.f32 %v4072, %v4296
      %v4298 = vpop.f32.mrb[0].mxu0
      %4299 = vmatprep.mubr.f32.mxu0 0.0
      %4300 = vmatmul.mubr.f32.gmra.mrb[0].mxu0 %v3727
      %v4301 = vpop.f32.mrb[0].mxu0
      %v4302 = vadd.f32 %v4077, %v4301
      %v4303 = vpop.f32.mrb[0].mxu0
      %4304 = vmatprep.mubr.f32.mxu0 0.0
      %4305 = vmatmul.mubr.f32.gmra.mrb[0].mxu0 %v3732
      %v4306 = vpop.f32.mrb[0].mxu0
      %v4307 = vadd.f32 %v4082, %v4306
      %v4308 = vpop.f32.mrb[0].mxu0
      %4309 = vmatprep.mubr.f32.mxu0 0.0
      %4310 = vmatmul.mubr.f32.gmra.mrb[0].mxu0 %v3737
      %v4311 = vpop.f32.mrb[0].mxu0
      %v4312 = vadd.f32 %v4087, %v4311
      %v4313 = vpop.f32.mrb[0].mxu0
      %4314 = vmatprep.mubr.f32.mxu0 0.0
      %4315 = vmatmul.mubr.f32.gmra.mrb[0].mxu0 %v3742
      %v4316 = vpop.f32.mrb[0].mxu0
      %v4317 = vadd.f32 %v4092, %v4316
      %v4318 = vpop.f32.mrb[0].mxu0
      %4319 = vmatprep.mubr.f32.mxu0 0.0
      %4320 = vmatmul.mubr.f32.gmra.mrb[0].mxu0 %v3747
      %v4321 = vpop.f32.mrb[0].mxu0
      %v4322 = vadd.f32 %v4097, %v4321
      %v4323 = vpop.f32.mrb[0].mxu0
      %4324 = vmatprep.mubr.f32.mxu0 0.0
      %4325 = vmatmul.mubr.f32.gmra.mrb[0].mxu0 %v3752
      %v4326 = vpop.f32.mrb[0].mxu0
      %v4327 = vadd.f32 %v4102, %v4326
      %v4328 = vpop.f32.mrb[0].mxu0
      %4329 = vmatprep.mubr.f32.mxu0 0.0
      %4330 = vmatmul.mubr.f32.gmra.mrb[0].mxu0 %v3757
      %v4331 = vpop.f32.mrb[0].mxu0
      %v4332 = vadd.f32 %v4107, %v4331
      %v4333 = vpop.f32.mrb[0].mxu0
      %4334 = vmatprep.mubr.f32.mxu0 0.0
      %4335 = vmatmul.mubr.f32.gmra.mrb[0].mxu0 %v3762
      %v4336 = vpop.f32.mrb[0].mxu0
      %v4337 = vadd.f32 %v4112, %v4336
      %v4338 = vpop.f32.mrb[0].mxu0
      %4339 = vmatprep.mubr.f32.mxu0 0.0
      %4340 = vmatmul.mubr.f32.gmra.mrb[0].mxu0 %v3767
      %v4341 = vpop.f32.mrb[0].mxu0
      %v4342 = vadd.f32 %v4117, %v4341
      %v4343 = vpop.f32.mrb[0].mxu0
      %4344 = vmatprep.mubr.f32.mxu0 0.0
      %4345 = vmatmul.mubr.f32.gmra.mrb[0].mxu0 %v3772
      %v4346 = vpop.f32.mrb[0].mxu0
      %v4347 = vadd.f32 %v4122, %v4346
      %v4348 = vpop.f32.mrb[0].mxu0
      %4349 = vmatprep.mubr.f32.mxu0 0.0
      %4350 = vmatmul.mubr.f32.gmra.mrb[0].mxu0 %v3777
      %v4351 = vpop.f32.mrb[0].mxu0
      %v4352 = vadd.f32 %v4127, %v4351
      %v4353 = vpop.f32.mrb[0].mxu0
      %4354 = vmatprep.mubr.f32.mxu0 0.0
      %4355 = vmatmul.mubr.f32.gmra.mrb[0].mxu0 %v3782
      %v4356 = vpop.f32.mrb[0].mxu0
      %v4357 = vadd.f32 %v4132, %v4356
      %v4358 = vpop.f32.mrb[0].mxu0
      %4359 = vdwg.mxu0
      %v4360 = vld [vmem:[%s23] sm:$0x1]
      %v4362 = vlaneseq
      %v4363 = vshrl.u32 %v4362, 7
      %v4364 = vsub.s32 0, %v4363
      %v4365 = vrot.slane %v4360, %v4364
      %v4367 = vadd.f32 %v4202, %v4365
      %v4368 = vadd.f32 %v4207, %v4365
      %v4369 = vadd.f32 %v4212, %v4365
      %v4370 = vadd.f32 %v4217, %v4365
      %v4371 = vadd.f32 %v4222, %v4365
      %v4372 = vadd.f32 %v4227, %v4365
      %v4373 = vadd.f32 %v4232, %v4365
      %v4374 = vadd.f32 %v4237, %v4365
      %v4375 = vadd.f32 %v4242, %v4365
      %v4376 = vadd.f32 %v4247, %v4365
      %v4377 = vadd.f32 %v4252, %v4365
      %v4378 = vadd.f32 %v4257, %v4365
      %v4379 = vadd.f32 %v4262, %v4365
      %v4380 = vadd.f32 %v4267, %v4365
      %v4381 = vadd.f32 %v4272, %v4365
      %v4382 = vadd.f32 %v4277, %v4365
      %v4383 = vadd.f32 %v4282, %v4365
      %v4384 = vadd.f32 %v4287, %v4365
      %v4385 = vadd.f32 %v4292, %v4365
      %v4386 = vadd.f32 %v4297, %v4365
      %v4387 = vadd.f32 %v4302, %v4365
      %v4388 = vadd.f32 %v4307, %v4365
      %v4389 = vadd.f32 %v4312, %v4365
      %v4390 = vadd.f32 %v4317, %v4365
      %v4391 = vadd.f32 %v4322, %v4365
      %v4392 = vadd.f32 %v4327, %v4365
      %v4393 = vadd.f32 %v4332, %v4365
      %v4394 = vadd.f32 %v4337, %v4365
      %v4395 = vadd.f32 %v4342, %v4365
      %v4396 = vadd.f32 %v4347, %v4365
      %v4397 = vadd.f32 %v4352, %v4365
      %v4398 = vadd.f32 %v4357, %v4365
      %v4399 = vmax.f32 %v4367, 0.0
      %v4400 = vmax.f32 %v4368, 0.0
      %v4401 = vmax.f32 %v4369, 0.0
      %v4402 = vmax.f32 %v4370, 0.0
      %v4403 = vmax.f32 %v4371, 0.0
      %v4404 = vmax.f32 %v4372, 0.0
      %v4405 = vmax.f32 %v4373, 0.0
      %v4406 = vmax.f32 %v4374, 0.0
      %v4407 = vmax.f32 %v4375, 0.0
      %v4408 = vmax.f32 %v4376, 0.0
      %v4409 = vmax.f32 %v4377, 0.0
      %v4410 = vmax.f32 %v4378, 0.0
      %v4411 = vmax.f32 %v4379, 0.0
      %v4412 = vmax.f32 %v4380, 0.0
      %v4413 = vmax.f32 %v4381, 0.0
      %v4414 = vmax.f32 %v4382, 0.0
      %v4415 = vmax.f32 %v4383, 0.0
      %v4416 = vmax.f32 %v4384, 0.0
      %v4417 = vmax.f32 %v4385, 0.0
      %v4418 = vmax.f32 %v4386, 0.0
      %v4419 = vmax.f32 %v4387, 0.0
      %v4420 = vmax.f32 %v4388, 0.0
      %v4421 = vmax.f32 %v4389, 0.0
      %v4422 = vmax.f32 %v4390, 0.0
      %v4423 = vmax.f32 %v4391, 0.0
      %v4424 = vmax.f32 %v4392, 0.0
      %v4425 = vmax.f32 %v4393, 0.0
      %v4426 = vmax.f32 %v4394, 0.0
      %v4427 = vmax.f32 %v4395, 0.0
      %v4428 = vmax.f32 %v4396, 0.0
      %v4429 = vmax.f32 %v4397, 0.0
      %v4430 = vmax.f32 %v4398, 0.0
      %v4431 = vld [vmem:[%s24] sm:$0xff]
      %v4432 = vld [vmem:[%s24 + $0x8] sm:$0xff]
      %v4433 = vld [vmem:[%s24 + $0x10] sm:$0xff]
      %v4434 = vld [vmem:[%s24 + $0x18] sm:$0xff]
      %v4435 = vld [vmem:[%s24 + $0x20] sm:$0xff]
      %v4436 = vld [vmem:[%s24 + $0x28] sm:$0xff]
      %v4437 = vld [vmem:[%s24 + $0x30] sm:$0xff]
      %v4438 = vld [vmem:[%s24 + $0x38] sm:$0xff]
      %v4439 = vld [vmem:[%s25] sm:$0xff]
      %v4440 = vld [vmem:[%s25 + $0x8] sm:$0xff]
      %v4441 = vld [vmem:[%s25 + $0x10] sm:$0xff]
      %v4442 = vld [vmem:[%s25 + $0x18] sm:$0xff]
      %v4443 = vld [vmem:[%s25 + $0x20] sm:$0xff]
      %v4444 = vld [vmem:[%s25 + $0x28] sm:$0xff]
      %v4445 = vld [vmem:[%s25 + $0x30] sm:$0xff]
      %v4446 = vld [vmem:[%s25 + $0x38] sm:$0xff]
      %v4447 = vld [vmem:[%s25 + $0x40] sm:$0xff]
      %v4448 = vld [vmem:[%s25 + $0x48] sm:$0xff]
      %v4449 = vld [vmem:[%s25 + $0x50] sm:$0xff]
      %v4450 = vld [vmem:[%s25 + $0x58] sm:$0xff]
      %v4451 = vld [vmem:[%s25 + $0x60] sm:$0xff]
      %v4452 = vld [vmem:[%s25 + $0x68] sm:$0xff]
      %v4453 = vld [vmem:[%s25 + $0x70] sm:$0xff]
      %v4454 = vld [vmem:[%s25 + $0x78] sm:$0xff]
      %4455 = vmatprep.subr.mxu0 0.0
      %4456 = vmatpush1.msra.mxu0 %v4439
      %4457 = vmatprep.subr.mxu0 0.0
      %4458 = vmatpush1.msra.mxu0 %v4440
      %4459 = vmatprep.subr.mxu0 0.0
      %4460 = vmatpush1.msra.mxu0 %v4441
      %4461 = vmatprep.subr.mxu0 0.0
      %4462 = vmatpush1.msra.mxu0 %v4442
      %4463 = vmatprep.subr.mxu0 0.0
      %4464 = vmatpush1.msra.mxu0 %v4443
      %4465 = vmatprep.subr.mxu0 0.0
      %4466 = vmatpush1.msra.mxu0 %v4444
      %4467 = vmatprep.subr.mxu0 0.0
      %4468 = vmatpush1.msra.mxu0 %v4445
      %4469 = vmatprep.subr.mxu0 0.0
      %4470 = vmatpush1.msra.mxu0 %v4446
      %4471 = vmatprep.subr.mxu0 0.0
      %4472 = vmatpush1.msra.mxu0 %v4447
      %4473 = vmatprep.subr.mxu0 0.0
      %4474 = vmatpush1.msra.mxu0 %v4448
      %4475 = vmatprep.subr.mxu0 0.0
      %4476 = vmatpush1.msra.mxu0 %v4449
      %4477 = vmatprep.subr.mxu0 0.0
      %4478 = vmatpush1.msra.mxu0 %v4450
      %4479 = vmatprep.subr.mxu0 0.0
      %4480 = vmatpush1.msra.mxu0 %v4451
      %4481 = vmatprep.subr.mxu0 0.0
      %4482 = vmatpush1.msra.mxu0 %v4452
      %4483 = vmatprep.subr.mxu0 0.0
      %4484 = vmatpush1.msra.mxu0 %v4453
      %4485 = vmatprep.subr.mxu0 0.0
      %4486 = vmatpush1.msra.mxu0 %v4454
      %4487 = vmatprep.subr.mxu0 0.0
      %4488 = vmatpush1.msra.mxu0 0.0
      %4489 = vmatprep.subr.mxu0 0.0
      %4490 = vmatpush1.msra.mxu0 0.0
      %4491 = vmatprep.subr.mxu0 0.0
      %4492 = vmatpush1.msra.mxu0 0.0
      %4493 = vmatprep.subr.mxu0 0.0
      %4494 = vmatpush1.msra.mxu0 0.0
      %4495 = vmatprep.subr.mxu0 0.0
      %4496 = vmatpush1.msra.mxu0 0.0
      %4497 = vmatprep.subr.mxu0 0.0
      %4498 = vmatpush1.msra.mxu0 0.0
      %4499 = vmatprep.subr.mxu0 0.0
      %4500 = vmatpush1.msra.mxu0 0.0
      %4501 = vmatprep.subr.mxu0 0.0
      %4502 = vmatpush1.msra.mxu0 0.0
      %4503 = vmatprep.subr.mxu0 0.0
      %4504 = vmatpush1.msra.mxu0 0.0
      %4505 = vmatprep.subr.mxu0 0.0
      %4506 = vmatpush1.msra.mxu0 0.0
      %4507 = vmatprep.subr.mxu0 0.0
      %4508 = vmatpush1.msra.mxu0 0.0
      %4509 = vmatprep.subr.mxu0 0.0
      %4510 = vmatpush1.msra.mxu0 0.0
      %4511 = vmatprep.subr.mxu0 0.0
      %4512 = vmatpush1.msra.mxu0 0.0
      %4513 = vmatprep.subr.mxu0 0.0
      %4514 = vmatpush1.msra.mxu0 0.0
      %4515 = vmatprep.subr.mxu0 0.0
      %4516 = vmatpush1.msra.mxu0 0.0
      %4517 = vmatprep.subr.mxu0 0.0
      %4518 = vmatpush1.msra.mxu0 0.0
      %4519 = vmatprep.mubr.f32.mxu0 0.0
      %4520 = vmatmul.mubr.f32.gmra.mrb[0].mxu0 %v3379
      %v4521 = vpop.f32.mrb[0].mxu0
      %v4522 = vadd.f32 0.0, %v4521
      %v4523 = vpop.f32.mrb[0].mxu0
      %4524 = vmatprep.mubr.f32.mxu0 0.0
      %4525 = vmatmul.mubr.f32.gmra.mrb[0].mxu0 %v3384
      %v4526 = vpop.f32.mrb[0].mxu0
      %v4527 = vadd.f32 0.0, %v4526
      %v4528 = vpop.f32.mrb[0].mxu0
      %4529 = vmatprep.mubr.f32.mxu0 0.0
      %4530 = vmatmul.mubr.f32.gmra.mrb[0].mxu0 %v3389
      %v4531 = vpop.f32.mrb[0].mxu0
      %v4532 = vadd.f32 0.0, %v4531
      %v4533 = vpop.f32.mrb[0].mxu0
      %4534 = vmatprep.mubr.f32.mxu0 0.0
      %4535 = vmatmul.mubr.f32.gmra.mrb[0].mxu0 %v3394
      %v4536 = vpop.f32.mrb[0].mxu0
      %v4537 = vadd.f32 0.0, %v4536
      %v4538 = vpop.f32.mrb[0].mxu0
      %4539 = vmatprep.mubr.f32.mxu0 0.0
      %4540 = vmatmul.mubr.f32.gmra.mrb[0].mxu0 %v3399
      %v4541 = vpop.f32.mrb[0].mxu0
      %v4542 = vadd.f32 0.0, %v4541
      %v4543 = vpop.f32.mrb[0].mxu0
      %4544 = vmatprep.mubr.f32.mxu0 0.0
      %4545 = vmatmul.mubr.f32.gmra.mrb[0].mxu0 %v3404
      %v4546 = vpop.f32.mrb[0].mxu0
      %v4547 = vadd.f32 0.0, %v4546
      %v4548 = vpop.f32.mrb[0].mxu0
      %4549 = vmatprep.mubr.f32.mxu0 0.0
      %4550 = vmatmul.mubr.f32.gmra.mrb[0].mxu0 %v3409
      %v4551 = vpop.f32.mrb[0].mxu0
      %v4552 = vadd.f32 0.0, %v4551
      %v4553 = vpop.f32.mrb[0].mxu0
      %4554 = vmatprep.mubr.f32.mxu0 0.0
      %4555 = vmatmul.mubr.f32.gmra.mrb[0].mxu0 %v3414
      %v4556 = vpop.f32.mrb[0].mxu0
      %v4557 = vadd.f32 0.0, %v4556
      %v4558 = vpop.f32.mrb[0].mxu0
      %4559 = vmatprep.mubr.f32.mxu0 0.0
      %4560 = vmatmul.mubr.f32.gmra.mrb[0].mxu0 %v3419
      %v4561 = vpop.f32.mrb[0].mxu0
      %v4562 = vadd.f32 0.0, %v4561
      %v4563 = vpop.f32.mrb[0].mxu0
      %4564 = vmatprep.mubr.f32.mxu0 0.0
      %4565 = vmatmul.mubr.f32.gmra.mrb[0].mxu0 %v3424
      %v4566 = vpop.f32.mrb[0].mxu0
      %v4567 = vadd.f32 0.0, %v4566
      %v4568 = vpop.f32.mrb[0].mxu0
      %4569 = vmatprep.mubr.f32.mxu0 0.0
      %4570 = vmatmul.mubr.f32.gmra.mrb[0].mxu0 %v3429
      %v4571 = vpop.f32.mrb[0].mxu0
      %v4572 = vadd.f32 0.0, %v4571
      %v4573 = vpop.f32.mrb[0].mxu0
      %4574 = vmatprep.mubr.f32.mxu0 0.0
      %4575 = vmatmul.mubr.f32.gmra.mrb[0].mxu0 %v3434
      %v4576 = vpop.f32.mrb[0].mxu0
      %v4577 = vadd.f32 0.0, %v4576
      %v4578 = vpop.f32.mrb[0].mxu0
      %4579 = vmatprep.mubr.f32.mxu0 0.0
      %4580 = vmatmul.mubr.f32.gmra.mrb[0].mxu0 %v3439
      %v4581 = vpop.f32.mrb[0].mxu0
      %v4582 = vadd.f32 0.0, %v4581
      %v4583 = vpop.f32.mrb[0].mxu0
      %4584 = vmatprep.mubr.f32.mxu0 0.0
      %4585 = vmatmul.mubr.f32.gmra.mrb[0].mxu0 %v3444
      %v4586 = vpop.f32.mrb[0].mxu0
      %v4587 = vadd.f32 0.0, %v4586
      %v4588 = vpop.f32.mrb[0].mxu0
      %4589 = vmatprep.mubr.f32.mxu0 0.0
      %4590 = vmatmul.mubr.f32.gmra.mrb[0].mxu0 %v3449
      %v4591 = vpop.f32.mrb[0].mxu0
      %v4592 = vadd.f32 0.0, %v4591
      %v4593 = vpop.f32.mrb[0].mxu0
      %4594 = vmatprep.mubr.f32.mxu0 0.0
      %4595 = vmatmul.mubr.f32.gmra.mrb[0].mxu0 %v3454
      %v4596 = vpop.f32.mrb[0].mxu0
      %v4597 = vadd.f32 0.0, %v4596
      %v4598 = vpop.f32.mrb[0].mxu0
      %4599 = vmatprep.mubr.f32.mxu0 0.0
      %4600 = vmatmul.mubr.f32.gmra.mrb[0].mxu0 %v3459
      %v4601 = vpop.f32.mrb[0].mxu0
      %v4602 = vadd.f32 0.0, %v4601
      %v4603 = vpop.f32.mrb[0].mxu0
      %4604 = vmatprep.mubr.f32.mxu0 0.0
      %4605 = vmatmul.mubr.f32.gmra.mrb[0].mxu0 %v3464
      %v4606 = vpop.f32.mrb[0].mxu0
      %v4607 = vadd.f32 0.0, %v4606
      %v4608 = vpop.f32.mrb[0].mxu0
      %4609 = vmatprep.mubr.f32.mxu0 0.0
      %4610 = vmatmul.mubr.f32.gmra.mrb[0].mxu0 %v3469
      %v4611 = vpop.f32.mrb[0].mxu0
      %v4612 = vadd.f32 0.0, %v4611
      %v4613 = vpop.f32.mrb[0].mxu0
      %4614 = vmatprep.mubr.f32.mxu0 0.0
      %4615 = vmatmul.mubr.f32.gmra.mrb[0].mxu0 %v3474
      %v4616 = vpop.f32.mrb[0].mxu0
      %v4617 = vadd.f32 0.0, %v4616
      %v4618 = vpop.f32.mrb[0].mxu0
      %4619 = vmatprep.mubr.f32.mxu0 0.0
      %4620 = vmatmul.mubr.f32.gmra.mrb[0].mxu0 %v3479
      %v4621 = vpop.f32.mrb[0].mxu0
      %v4622 = vadd.f32 0.0, %v4621
      %v4623 = vpop.f32.mrb[0].mxu0
      %4624 = vmatprep.mubr.f32.mxu0 0.0
      %4625 = vmatmul.mubr.f32.gmra.mrb[0].mxu0 %v3484
      %v4626 = vpop.f32.mrb[0].mxu0
      %v4627 = vadd.f32 0.0, %v4626
      %v4628 = vpop.f32.mrb[0].mxu0
      %4629 = vmatprep.mubr.f32.mxu0 0.0
      %4630 = vmatmul.mubr.f32.gmra.mrb[0].mxu0 %v3489
      %v4631 = vpop.f32.mrb[0].mxu0
      %v4632 = vadd.f32 0.0, %v4631
      %v4633 = vpop.f32.mrb[0].mxu0
      %4634 = vmatprep.mubr.f32.mxu0 0.0
      %4635 = vmatmul.mubr.f32.gmra.mrb[0].mxu0 %v3494
      %v4636 = vpop.f32.mrb[0].mxu0
      %v4637 = vadd.f32 0.0, %v4636
      %v4638 = vpop.f32.mrb[0].mxu0
      %4639 = vmatprep.mubr.f32.mxu0 0.0
      %4640 = vmatmul.mubr.f32.gmra.mrb[0].mxu0 %v3499
      %v4641 = vpop.f32.mrb[0].mxu0
      %v4642 = vadd.f32 0.0, %v4641
      %v4643 = vpop.f32.mrb[0].mxu0
      %4644 = vmatprep.mubr.f32.mxu0 0.0
      %4645 = vmatmul.mubr.f32.gmra.mrb[0].mxu0 %v3504
      %v4646 = vpop.f32.mrb[0].mxu0
      %v4647 = vadd.f32 0.0, %v4646
      %v4648 = vpop.f32.mrb[0].mxu0
      %4649 = vmatprep.mubr.f32.mxu0 0.0
      %4650 = vmatmul.mubr.f32.gmra.mrb[0].mxu0 %v3509
      %v4651 = vpop.f32.mrb[0].mxu0
      %v4652 = vadd.f32 0.0, %v4651
      %v4653 = vpop.f32.mrb[0].mxu0
      %4654 = vmatprep.mubr.f32.mxu0 0.0
      %4655 = vmatmul.mubr.f32.gmra.mrb[0].mxu0 %v3514
      %v4656 = vpop.f32.mrb[0].mxu0
      %v4657 = vadd.f32 0.0, %v4656
      %v4658 = vpop.f32.mrb[0].mxu0
      %4659 = vmatprep.mubr.f32.mxu0 0.0
      %4660 = vmatmul.mubr.f32.gmra.mrb[0].mxu0 %v3519
      %v4661 = vpop.f32.mrb[0].mxu0
      %v4662 = vadd.f32 0.0, %v4661
      %v4663 = vpop.f32.mrb[0].mxu0
      %4664 = vmatprep.mubr.f32.mxu0 0.0
      %4665 = vmatmul.mubr.f32.gmra.mrb[0].mxu0 %v3524
      %v4666 = vpop.f32.mrb[0].mxu0
      %v4667 = vadd.f32 0.0, %v4666
      %v4668 = vpop.f32.mrb[0].mxu0
      %4669 = vmatprep.mubr.f32.mxu0 0.0
      %4670 = vmatmul.mubr.f32.gmra.mrb[0].mxu0 %v3529
      %v4671 = vpop.f32.mrb[0].mxu0
      %v4672 = vadd.f32 0.0, %v4671
      %v4673 = vpop.f32.mrb[0].mxu0
      %4674 = vmatprep.mubr.f32.mxu0 0.0
      %4675 = vmatmul.mubr.f32.gmra.mrb[0].mxu0 %v3534
      %v4676 = vpop.f32.mrb[0].mxu0
      %v4677 = vadd.f32 0.0, %v4676
      %v4678 = vpop.f32.mrb[0].mxu0
      %4679 = vdwg.mxu0
      %v4681 = vsel %vm974, %v4399, 0
      %v4684 = vsel %vm974, %v4400, 0
      %v4687 = vsel %vm974, %v4401, 0
      %v4690 = vsel %vm974, %v4402, 0
      %v4693 = vsel %vm974, %v4403, 0
      %v4696 = vsel %vm974, %v4404, 0
      %v4699 = vsel %vm974, %v4405, 0
      %v4702 = vsel %vm974, %v4406, 0
      %v4705 = vsel %vm974, %v4407, 0
      %v4708 = vsel %vm974, %v4408, 0
      %v4711 = vsel %vm974, %v4409, 0
      %v4714 = vsel %vm974, %v4410, 0
      %v4717 = vsel %vm974, %v4411, 0
      %v4720 = vsel %vm974, %v4412, 0
      %v4723 = vsel %vm974, %v4413, 0
      %v4726 = vsel %vm974, %v4414, 0
      %v4729 = vsel %vm974, %v4415, 0
      %v4732 = vsel %vm974, %v4416, 0
      %v4735 = vsel %vm974, %v4417, 0
      %v4738 = vsel %vm974, %v4418, 0
      %v4741 = vsel %vm974, %v4419, 0
      %v4744 = vsel %vm974, %v4420, 0
      %v4747 = vsel %vm974, %v4421, 0
      %v4750 = vsel %vm974, %v4422, 0
      %v4753 = vsel %vm974, %v4423, 0
      %v4756 = vsel %vm974, %v4424, 0
      %v4759 = vsel %vm974, %v4425, 0
      %v4762 = vsel %vm974, %v4426, 0
      %v4765 = vsel %vm974, %v4427, 0
      %v4768 = vsel %vm974, %v4428, 0
      %v4771 = vsel %vm974, %v4429, 0
      %v4774 = vsel %vm974, %v4430, 0
      %4776 = vmatprep.subr.mxu0 0.0
      %4777 = vmatpush1.msra.mxu0 %v4431
      %4778 = vmatprep.subr.mxu0 0.0
      %4779 = vmatpush1.msra.mxu0 %v4432
      %4780 = vmatprep.subr.mxu0 0.0
      %4781 = vmatpush1.msra.mxu0 %v4433
      %4782 = vmatprep.subr.mxu0 0.0
      %4783 = vmatpush1.msra.mxu0 %v4434
      %4784 = vmatprep.subr.mxu0 0.0
      %4785 = vmatpush1.msra.mxu0 %v4435
      %4786 = vmatprep.subr.mxu0 0.0
      %4787 = vmatpush1.msra.mxu0 %v4436
      %4788 = vmatprep.subr.mxu0 0.0
      %4789 = vmatpush1.msra.mxu0 %v4437
      %4790 = vmatprep.subr.mxu0 0.0
      %4791 = vmatpush1.msra.mxu0 %v4438
      %4792 = vmatprep.subr.mxu0 0.0
      %4793 = vmatpush1.msra.mxu0 0.0
      %4794 = vmatprep.subr.mxu0 0.0
      %4795 = vmatpush1.msra.mxu0 0.0
      %4796 = vmatprep.subr.mxu0 0.0
      %4797 = vmatpush1.msra.mxu0 0.0
      %4798 = vmatprep.subr.mxu0 0.0
      %4799 = vmatpush1.msra.mxu0 0.0
      %4800 = vmatprep.subr.mxu0 0.0
      %4801 = vmatpush1.msra.mxu0 0.0
      %4802 = vmatprep.subr.mxu0 0.0
      %4803 = vmatpush1.msra.mxu0 0.0
      %4804 = vmatprep.subr.mxu0 0.0
      %4805 = vmatpush1.msra.mxu0 0.0
      %4806 = vmatprep.subr.mxu0 0.0
      %4807 = vmatpush1.msra.mxu0 0.0
      %4808 = vmatprep.subr.mxu0 0.0
      %4809 = vmatpush1.msra.mxu0 0.0
      %4810 = vmatprep.subr.mxu0 0.0
      %4811 = vmatpush1.msra.mxu0 0.0
      %4812 = vmatprep.subr.mxu0 0.0
      %4813 = vmatpush1.msra.mxu0 0.0
      %4814 = vmatprep.subr.mxu0 0.0
      %4815 = vmatpush1.msra.mxu0 0.0
      %4816 = vmatprep.subr.mxu0 0.0
      %4817 = vmatpush1.msra.mxu0 0.0
      %4818 = vmatprep.subr.mxu0 0.0
      %4819 = vmatpush1.msra.mxu0 0.0
      %4820 = vmatprep.subr.mxu0 0.0
      %4821 = vmatpush1.msra.mxu0 0.0
      %4822 = vmatprep.subr.mxu0 0.0
      %4823 = vmatpush1.msra.mxu0 0.0
      %4824 = vmatprep.subr.mxu0 0.0
      %4825 = vmatpush1.msra.mxu0 0.0
      %4826 = vmatprep.subr.mxu0 0.0
      %4827 = vmatpush1.msra.mxu0 0.0
      %4828 = vmatprep.subr.mxu0 0.0
      %4829 = vmatpush1.msra.mxu0 0.0
      %4830 = vmatprep.subr.mxu0 0.0
      %4831 = vmatpush1.msra.mxu0 0.0
      %4832 = vmatprep.subr.mxu0 0.0
      %4833 = vmatpush1.msra.mxu0 0.0
      %4834 = vmatprep.subr.mxu0 0.0
      %4835 = vmatpush1.msra.mxu0 0.0
      %4836 = vmatprep.subr.mxu0 0.0
      %4837 = vmatpush1.msra.mxu0 0.0
      %4838 = vmatprep.subr.mxu0 0.0
      %4839 = vmatpush1.msra.mxu0 0.0
      %4840 = vmatprep.mubr.f32.mxu0 0.0
      %4841 = vmatmul.mubr.f32.gmra.mrb[0].mxu0 %v4681
      %v4842 = vpop.f32.mrb[0].mxu0
      %v4843 = vadd.f32 %v4522, %v4842
      %v4844 = vpop.f32.mrb[0].mxu0
      %4845 = vmatprep.mubr.f32.mxu0 0.0
      %4846 = vmatmul.mubr.f32.gmra.mrb[0].mxu0 %v4684
      %v4847 = vpop.f32.mrb[0].mxu0
      %v4848 = vadd.f32 %v4527, %v4847
      %v4849 = vpop.f32.mrb[0].mxu0
      %4850 = vmatprep.mubr.f32.mxu0 0.0
      %4851 = vmatmul.mubr.f32.gmra.mrb[0].mxu0 %v4687
      %v4852 = vpop.f32.mrb[0].mxu0
      %v4853 = vadd.f32 %v4532, %v4852
      %v4854 = vpop.f32.mrb[0].mxu0
      %4855 = vmatprep.mubr.f32.mxu0 0.0
      %4856 = vmatmul.mubr.f32.gmra.mrb[0].mxu0 %v4690
      %v4857 = vpop.f32.mrb[0].mxu0
      %v4858 = vadd.f32 %v4537, %v4857
      %v4859 = vpop.f32.mrb[0].mxu0
      %4860 = vmatprep.mubr.f32.mxu0 0.0
      %4861 = vmatmul.mubr.f32.gmra.mrb[0].mxu0 %v4693
      %v4862 = vpop.f32.mrb[0].mxu0
      %v4863 = vadd.f32 %v4542, %v4862
      %v4864 = vpop.f32.mrb[0].mxu0
      %4865 = vmatprep.mubr.f32.mxu0 0.0
      %4866 = vmatmul.mubr.f32.gmra.mrb[0].mxu0 %v4696
      %v4867 = vpop.f32.mrb[0].mxu0
      %v4868 = vadd.f32 %v4547, %v4867
      %v4869 = vpop.f32.mrb[0].mxu0
      %4870 = vmatprep.mubr.f32.mxu0 0.0
      %4871 = vmatmul.mubr.f32.gmra.mrb[0].mxu0 %v4699
      %v4872 = vpop.f32.mrb[0].mxu0
      %v4873 = vadd.f32 %v4552, %v4872
      %v4874 = vpop.f32.mrb[0].mxu0
      %4875 = vmatprep.mubr.f32.mxu0 0.0
      %4876 = vmatmul.mubr.f32.gmra.mrb[0].mxu0 %v4702
      %v4877 = vpop.f32.mrb[0].mxu0
      %v4878 = vadd.f32 %v4557, %v4877
      %v4879 = vpop.f32.mrb[0].mxu0
      %4880 = vmatprep.mubr.f32.mxu0 0.0
      %4881 = vmatmul.mubr.f32.gmra.mrb[0].mxu0 %v4705
      %v4882 = vpop.f32.mrb[0].mxu0
      %v4883 = vadd.f32 %v4562, %v4882
      %v4884 = vpop.f32.mrb[0].mxu0
      %4885 = vmatprep.mubr.f32.mxu0 0.0
      %4886 = vmatmul.mubr.f32.gmra.mrb[0].mxu0 %v4708
      %v4887 = vpop.f32.mrb[0].mxu0
      %v4888 = vadd.f32 %v4567, %v4887
      %v4889 = vpop.f32.mrb[0].mxu0
      %4890 = vmatprep.mubr.f32.mxu0 0.0
      %4891 = vmatmul.mubr.f32.gmra.mrb[0].mxu0 %v4711
      %v4892 = vpop.f32.mrb[0].mxu0
      %v4893 = vadd.f32 %v4572, %v4892
      %v4894 = vpop.f32.mrb[0].mxu0
      %4895 = vmatprep.mubr.f32.mxu0 0.0
      %4896 = vmatmul.mubr.f32.gmra.mrb[0].mxu0 %v4714
      %v4897 = vpop.f32.mrb[0].mxu0
      %v4898 = vadd.f32 %v4577, %v4897
      %v4899 = vpop.f32.mrb[0].mxu0
      %4900 = vmatprep.mubr.f32.mxu0 0.0
      %4901 = vmatmul.mubr.f32.gmra.mrb[0].mxu0 %v4717
      %v4902 = vpop.f32.mrb[0].mxu0
      %v4903 = vadd.f32 %v4582, %v4902
      %v4904 = vpop.f32.mrb[0].mxu0
      %4905 = vmatprep.mubr.f32.mxu0 0.0
      %4906 = vmatmul.mubr.f32.gmra.mrb[0].mxu0 %v4720
      %v4907 = vpop.f32.mrb[0].mxu0
      %v4908 = vadd.f32 %v4587, %v4907
      %v4909 = vpop.f32.mrb[0].mxu0
      %4910 = vmatprep.mubr.f32.mxu0 0.0
      %4911 = vmatmul.mubr.f32.gmra.mrb[0].mxu0 %v4723
      %v4912 = vpop.f32.mrb[0].mxu0
      %v4913 = vadd.f32 %v4592, %v4912
      %v4914 = vpop.f32.mrb[0].mxu0
      %4915 = vmatprep.mubr.f32.mxu0 0.0
      %4916 = vmatmul.mubr.f32.gmra.mrb[0].mxu0 %v4726
      %v4917 = vpop.f32.mrb[0].mxu0
      %v4918 = vadd.f32 %v4597, %v4917
      %v4919 = vpop.f32.mrb[0].mxu0
      %4920 = vmatprep.mubr.f32.mxu0 0.0
      %4921 = vmatmul.mubr.f32.gmra.mrb[0].mxu0 %v4729
      %v4922 = vpop.f32.mrb[0].mxu0
      %v4923 = vadd.f32 %v4602, %v4922
      %v4924 = vpop.f32.mrb[0].mxu0
      %4925 = vmatprep.mubr.f32.mxu0 0.0
      %4926 = vmatmul.mubr.f32.gmra.mrb[0].mxu0 %v4732
      %v4927 = vpop.f32.mrb[0].mxu0
      %v4928 = vadd.f32 %v4607, %v4927
      %v4929 = vpop.f32.mrb[0].mxu0
      %4930 = vmatprep.mubr.f32.mxu0 0.0
      %4931 = vmatmul.mubr.f32.gmra.mrb[0].mxu0 %v4735
      %v4932 = vpop.f32.mrb[0].mxu0
      %v4933 = vadd.f32 %v4612, %v4932
      %v4934 = vpop.f32.mrb[0].mxu0
      %4935 = vmatprep.mubr.f32.mxu0 0.0
      %4936 = vmatmul.mubr.f32.gmra.mrb[0].mxu0 %v4738
      %v4937 = vpop.f32.mrb[0].mxu0
      %v4938 = vadd.f32 %v4617, %v4937
      %v4939 = vpop.f32.mrb[0].mxu0
      %4940 = vmatprep.mubr.f32.mxu0 0.0
      %4941 = vmatmul.mubr.f32.gmra.mrb[0].mxu0 %v4741
      %v4942 = vpop.f32.mrb[0].mxu0
      %v4943 = vadd.f32 %v4622, %v4942
      %v4944 = vpop.f32.mrb[0].mxu0
      %4945 = vmatprep.mubr.f32.mxu0 0.0
      %4946 = vmatmul.mubr.f32.gmra.mrb[0].mxu0 %v4744
      %v4947 = vpop.f32.mrb[0].mxu0
      %v4948 = vadd.f32 %v4627, %v4947
      %v4949 = vpop.f32.mrb[0].mxu0
      %4950 = vmatprep.mubr.f32.mxu0 0.0
      %4951 = vmatmul.mubr.f32.gmra.mrb[0].mxu0 %v4747
      %v4952 = vpop.f32.mrb[0].mxu0
      %v4953 = vadd.f32 %v4632, %v4952
      %v4954 = vpop.f32.mrb[0].mxu0
      %4955 = vmatprep.mubr.f32.mxu0 0.0
      %4956 = vmatmul.mubr.f32.gmra.mrb[0].mxu0 %v4750
      %v4957 = vpop.f32.mrb[0].mxu0
      %v4958 = vadd.f32 %v4637, %v4957
      %v4959 = vpop.f32.mrb[0].mxu0
      %4960 = vmatprep.mubr.f32.mxu0 0.0
      %4961 = vmatmul.mubr.f32.gmra.mrb[0].mxu0 %v4753
      %v4962 = vpop.f32.mrb[0].mxu0
      %v4963 = vadd.f32 %v4642, %v4962
      %v4964 = vpop.f32.mrb[0].mxu0
      %4965 = vmatprep.mubr.f32.mxu0 0.0
      %4966 = vmatmul.mubr.f32.gmra.mrb[0].mxu0 %v4756
      %v4967 = vpop.f32.mrb[0].mxu0
      %v4968 = vadd.f32 %v4647, %v4967
      %v4969 = vpop.f32.mrb[0].mxu0
      %4970 = vmatprep.mubr.f32.mxu0 0.0
      %4971 = vmatmul.mubr.f32.gmra.mrb[0].mxu0 %v4759
      %v4972 = vpop.f32.mrb[0].mxu0
      %v4973 = vadd.f32 %v4652, %v4972
      %v4974 = vpop.f32.mrb[0].mxu0
      %4975 = vmatprep.mubr.f32.mxu0 0.0
      %4976 = vmatmul.mubr.f32.gmra.mrb[0].mxu0 %v4762
      %v4977 = vpop.f32.mrb[0].mxu0
      %v4978 = vadd.f32 %v4657, %v4977
      %v4979 = vpop.f32.mrb[0].mxu0
      %4980 = vmatprep.mubr.f32.mxu0 0.0
      %4981 = vmatmul.mubr.f32.gmra.mrb[0].mxu0 %v4765
      %v4982 = vpop.f32.mrb[0].mxu0
      %v4983 = vadd.f32 %v4662, %v4982
      %v4984 = vpop.f32.mrb[0].mxu0
      %4985 = vmatprep.mubr.f32.mxu0 0.0
      %4986 = vmatmul.mubr.f32.gmra.mrb[0].mxu0 %v4768
      %v4987 = vpop.f32.mrb[0].mxu0
      %v4988 = vadd.f32 %v4667, %v4987
      %v4989 = vpop.f32.mrb[0].mxu0
      %4990 = vmatprep.mubr.f32.mxu0 0.0
      %4991 = vmatmul.mubr.f32.gmra.mrb[0].mxu0 %v4771
      %v4992 = vpop.f32.mrb[0].mxu0
      %v4993 = vadd.f32 %v4672, %v4992
      %v4994 = vpop.f32.mrb[0].mxu0
      %4995 = vmatprep.mubr.f32.mxu0 0.0
      %4996 = vmatmul.mubr.f32.gmra.mrb[0].mxu0 %v4774
      %v4997 = vpop.f32.mrb[0].mxu0
      %v4998 = vadd.f32 %v4677, %v4997
      %v4999 = vpop.f32.mrb[0].mxu0
      %5000 = vdwg.mxu0
      %v5001 = vld [vmem:[%s26] sm:$0x1]
      %v5003 = vlaneseq
      %v5004 = vshrl.u32 %v5003, 7
      %v5005 = vsub.s32 0, %v5004
      %v5006 = vrot.slane %v5001, %v5005
      %v5008 = vadd.f32 %v4843, %v5006
      %v5009 = vadd.f32 %v4848, %v5006
      %v5010 = vadd.f32 %v4853, %v5006
      %v5011 = vadd.f32 %v4858, %v5006
      %v5012 = vadd.f32 %v4863, %v5006
      %v5013 = vadd.f32 %v4868, %v5006
      %v5014 = vadd.f32 %v4873, %v5006
      %v5015 = vadd.f32 %v4878, %v5006
      %v5016 = vadd.f32 %v4883, %v5006
      %v5017 = vadd.f32 %v4888, %v5006
      %v5018 = vadd.f32 %v4893, %v5006
      %v5019 = vadd.f32 %v4898, %v5006
      %v5020 = vadd.f32 %v4903, %v5006
      %v5021 = vadd.f32 %v4908, %v5006
      %v5022 = vadd.f32 %v4913, %v5006
      %v5023 = vadd.f32 %v4918, %v5006
      %v5024 = vadd.f32 %v4923, %v5006
      %v5025 = vadd.f32 %v4928, %v5006
      %v5026 = vadd.f32 %v4933, %v5006
      %v5027 = vadd.f32 %v4938, %v5006
      %v5028 = vadd.f32 %v4943, %v5006
      %v5029 = vadd.f32 %v4948, %v5006
      %v5030 = vadd.f32 %v4953, %v5006
      %v5031 = vadd.f32 %v4958, %v5006
      %v5032 = vadd.f32 %v4963, %v5006
      %v5033 = vadd.f32 %v4968, %v5006
      %v5034 = vadd.f32 %v4973, %v5006
      %v5035 = vadd.f32 %v4978, %v5006
      %v5036 = vadd.f32 %v4983, %v5006
      %v5037 = vadd.f32 %v4988, %v5006
      %v5038 = vadd.f32 %v4993, %v5006
      %v5039 = vadd.f32 %v4998, %v5006
      %v5040 = vlaneseq
      %v5041 = vand.u32 %v5040, 127
      %vm5042 = vcmp.lt.s32.totalorder %v5041, 0
      %v5043 = vsub.s32 0, %v5041
      %v5044 = vsel %vm5042, %v5043, %v5041
      %v5045 = vshrl.u32 %v5044, 2
      %v5046 = vand.u32 %v5044, 3
      %v5047 = vsub.s32 0, %v5046
      %v5048 = vsel %vm5042, %v5047, %v5046
      %vm5049 = vcmp.ne.s32.totalorder %v5048, 0
      %vm5050 = vcmp.lt.s32.totalorder %v5048, 0
      %vm5051 = vmand %vm5050, %vm5049
      %v5052 = vadd.s32 %v5048, 4
      %v5053 = vsel %vm5051, %v5052, %v5048
      %vm5054 = vcmp.eq.s32.totalorder %v5053, 3
      %v5055 = vmax.f32 %v5008, 0.0
      %v5056 = vmax.f32 %v5009, 0.0
      %v5057 = vmax.f32 %v5010, 0.0
      %v5058 = vmax.f32 %v5011, 0.0
      %v5059 = vmax.f32 %v5012, 0.0
      %v5060 = vmax.f32 %v5013, 0.0
      %v5061 = vmax.f32 %v5014, 0.0
      %v5062 = vmax.f32 %v5015, 0.0
      %v5063 = vmax.f32 %v5016, 0.0
      %v5064 = vmax.f32 %v5017, 0.0
      %v5065 = vmax.f32 %v5018, 0.0
      %v5066 = vmax.f32 %v5019, 0.0
      %v5067 = vmax.f32 %v5020, 0.0
      %v5068 = vmax.f32 %v5021, 0.0
      %v5069 = vmax.f32 %v5022, 0.0
      %v5070 = vmax.f32 %v5023, 0.0
      %v5071 = vmax.f32 %v5024, 0.0
      %v5072 = vmax.f32 %v5025, 0.0
      %v5073 = vmax.f32 %v5026, 0.0
      %v5074 = vmax.f32 %v5027, 0.0
      %v5075 = vmax.f32 %v5028, 0.0
      %v5076 = vmax.f32 %v5029, 0.0
      %v5077 = vmax.f32 %v5030, 0.0
      %v5078 = vmax.f32 %v5031, 0.0
      %v5079 = vmax.f32 %v5032, 0.0
      %v5080 = vmax.f32 %v5033, 0.0
      %v5081 = vmax.f32 %v5034, 0.0
      %v5082 = vmax.f32 %v5035, 0.0
      %v5083 = vmax.f32 %v5036, 0.0
      %v5084 = vmax.f32 %v5037, 0.0
      %v5085 = vmax.f32 %v5038, 0.0
      %v5086 = vmax.f32 %v5039, 0.0
      %v5087 = vxor.u32 %v5008, 2147483648
      %v5088 = vxor.u32 %v5009, 2147483648
      %v5089 = vxor.u32 %v5010, 2147483648
      %v5090 = vxor.u32 %v5011, 2147483648
      %v5091 = vxor.u32 %v5012, 2147483648
      %v5092 = vxor.u32 %v5013, 2147483648
      %v5093 = vxor.u32 %v5014, 2147483648
      %v5094 = vxor.u32 %v5015, 2147483648
      %v5095 = vxor.u32 %v5016, 2147483648
      %v5096 = vxor.u32 %v5017, 2147483648
      %v5097 = vxor.u32 %v5018, 2147483648
      %v5098 = vxor.u32 %v5019, 2147483648
      %v5099 = vxor.u32 %v5020, 2147483648
      %v5100 = vxor.u32 %v5021, 2147483648
      %v5101 = vxor.u32 %v5022, 2147483648
      %v5102 = vxor.u32 %v5023, 2147483648
      %v5103 = vxor.u32 %v5024, 2147483648
      %v5104 = vxor.u32 %v5025, 2147483648
      %v5105 = vxor.u32 %v5026, 2147483648
      %v5106 = vxor.u32 %v5027, 2147483648
      %v5107 = vxor.u32 %v5028, 2147483648
      %v5108 = vxor.u32 %v5029, 2147483648
      %v5109 = vxor.u32 %v5030, 2147483648
      %v5110 = vxor.u32 %v5031, 2147483648
      %v5111 = vxor.u32 %v5032, 2147483648
      %v5112 = vxor.u32 %v5033, 2147483648
      %v5113 = vxor.u32 %v5034, 2147483648
      %v5114 = vxor.u32 %v5035, 2147483648
      %v5115 = vxor.u32 %v5036, 2147483648
      %v5116 = vxor.u32 %v5037, 2147483648
      %v5117 = vxor.u32 %v5038, 2147483648
      %v5118 = vxor.u32 %v5039, 2147483648
      %v5119 = vmul.f32 %v5087, 1.442695
      %v5120 = vpow.pop %v5119
      %v5121 = vmul.f32 %v5088, 1.442695
      %v5122 = vpow.pop %v5121
      %v5123 = vmul.f32 %v5089, 1.442695
      %v5124 = vpow.pop %v5123
      %v5125 = vmul.f32 %v5090, 1.442695
      %v5126 = vpow.pop %v5125
      %v5127 = vmul.f32 %v5091, 1.442695
      %v5128 = vpow.pop %v5127
      %v5129 = vmul.f32 %v5092, 1.442695
      %v5130 = vpow.pop %v5129
      %v5131 = vmul.f32 %v5093, 1.442695
      %v5132 = vpow.pop %v5131
      %v5133 = vmul.f32 %v5094, 1.442695
      %v5134 = vpow.pop %v5133
      %v5135 = vmul.f32 %v5095, 1.442695
      %v5136 = vpow.pop %v5135
      %v5137 = vmul.f32 %v5096, 1.442695
      %v5138 = vpow.pop %v5137
      %v5139 = vmul.f32 %v5097, 1.442695
      %v5140 = vpow.pop %v5139
      %v5141 = vmul.f32 %v5098, 1.442695
      %v5142 = vpow.pop %v5141
      %v5143 = vmul.f32 %v5099, 1.442695
      %v5144 = vpow.pop %v5143
      %v5145 = vmul.f32 %v5100, 1.442695
      %v5146 = vpow.pop %v5145
      %v5147 = vmul.f32 %v5101, 1.442695
      %v5148 = vpow.pop %v5147
      %v5149 = vmul.f32 %v5102, 1.442695
      %v5150 = vpow.pop %v5149
      %v5151 = vmul.f32 %v5103, 1.442695
      %v5152 = vpow.pop %v5151
      %v5153 = vmul.f32 %v5104, 1.442695
      %v5154 = vpow.pop %v5153
      %v5155 = vmul.f32 %v5105, 1.442695
      %v5156 = vpow.pop %v5155
      %v5157 = vmul.f32 %v5106, 1.442695
      %v5158 = vpow.pop %v5157
      %v5159 = vmul.f32 %v5107, 1.442695
      %v5160 = vpow.pop %v5159
      %v5161 = vmul.f32 %v5108, 1.442695
      %v5162 = vpow.pop %v5161
      %v5163 = vmul.f32 %v5109, 1.442695
      %v5164 = vpow.pop %v5163
      %v5165 = vmul.f32 %v5110, 1.442695
      %v5166 = vpow.pop %v5165
      %v5167 = vmul.f32 %v5111, 1.442695
      %v5168 = vpow.pop %v5167
      %v5169 = vmul.f32 %v5112, 1.442695
      %v5170 = vpow.pop %v5169
      %v5171 = vmul.f32 %v5113, 1.442695
      %v5172 = vpow.pop %v5171
      %v5173 = vmul.f32 %v5114, 1.442695
      %v5174 = vpow.pop %v5173
      %v5175 = vmul.f32 %v5115, 1.442695
      %v5176 = vpow.pop %v5175
      %v5177 = vmul.f32 %v5116, 1.442695
      %v5178 = vpow.pop %v5177
      %v5179 = vmul.f32 %v5117, 1.442695
      %v5180 = vpow.pop %v5179
      %v5181 = vmul.f32 %v5118, 1.442695
      %v5182 = vpow.pop %v5181
      %v5183 = vadd.f32 %v5120, 1.0
      %v5184 = vadd.f32 %v5122, 1.0
      %v5185 = vadd.f32 %v5124, 1.0
      %v5186 = vadd.f32 %v5126, 1.0
      %v5187 = vadd.f32 %v5128, 1.0
      %v5188 = vadd.f32 %v5130, 1.0
      %v5189 = vadd.f32 %v5132, 1.0
      %v5190 = vadd.f32 %v5134, 1.0
      %v5191 = vadd.f32 %v5136, 1.0
      %v5192 = vadd.f32 %v5138, 1.0
      %v5193 = vadd.f32 %v5140, 1.0
      %v5194 = vadd.f32 %v5142, 1.0
      %v5195 = vadd.f32 %v5144, 1.0
      %v5196 = vadd.f32 %v5146, 1.0
      %v5197 = vadd.f32 %v5148, 1.0
      %v5198 = vadd.f32 %v5150, 1.0
      %v5199 = vadd.f32 %v5152, 1.0
      %v5200 = vadd.f32 %v5154, 1.0
      %v5201 = vadd.f32 %v5156, 1.0
      %v5202 = vadd.f32 %v5158, 1.0
      %v5203 = vadd.f32 %v5160, 1.0
      %v5204 = vadd.f32 %v5162, 1.0
      %v5205 = vadd.f32 %v5164, 1.0
      %v5206 = vadd.f32 %v5166, 1.0
      %v5207 = vadd.f32 %v5168, 1.0
      %v5208 = vadd.f32 %v5170, 1.0
      %v5209 = vadd.f32 %v5172, 1.0
      %v5210 = vadd.f32 %v5174, 1.0
      %v5211 = vadd.f32 %v5176, 1.0
      %v5212 = vadd.f32 %v5178, 1.0
      %v5213 = vadd.f32 %v5180, 1.0
      %v5214 = vadd.f32 %v5182, 1.0
      %v5215 = vrcp.pop %v5183
      %v5216 = vmul.f32 1.0, %v5215
      %v5217 = vrcp.pop %v5184
      %v5218 = vmul.f32 1.0, %v5217
      %v5219 = vrcp.pop %v5185
      %v5220 = vmul.f32 1.0, %v5219
      %v5221 = vrcp.pop %v5186
      %v5222 = vmul.f32 1.0, %v5221
      %v5223 = vrcp.pop %v5187
      %v5224 = vmul.f32 1.0, %v5223
      %v5225 = vrcp.pop %v5188
      %v5226 = vmul.f32 1.0, %v5225
      %v5227 = vrcp.pop %v5189
      %v5228 = vmul.f32 1.0, %v5227
      %v5229 = vrcp.pop %v5190
      %v5230 = vmul.f32 1.0, %v5229
      %v5231 = vrcp.pop %v5191
      %v5232 = vmul.f32 1.0, %v5231
      %v5233 = vrcp.pop %v5192
      %v5234 = vmul.f32 1.0, %v5233
      %v5235 = vrcp.pop %v5193
      %v5236 = vmul.f32 1.0, %v5235
      %v5237 = vrcp.pop %v5194
      %v5238 = vmul.f32 1.0, %v5237
      %v5239 = vrcp.pop %v5195
      %v5240 = vmul.f32 1.0, %v5239
      %v5241 = vrcp.pop %v5196
      %v5242 = vmul.f32 1.0, %v5241
      %v5243 = vrcp.pop %v5197
      %v5244 = vmul.f32 1.0, %v5243
      %v5245 = vrcp.pop %v5198
      %v5246 = vmul.f32 1.0, %v5245
      %v5247 = vrcp.pop %v5199
      %v5248 = vmul.f32 1.0, %v5247
      %v5249 = vrcp.pop %v5200
      %v5250 = vmul.f32 1.0, %v5249
      %v5251 = vrcp.pop %v5201
      %v5252 = vmul.f32 1.0, %v5251
      %v5253 = vrcp.pop %v5202
      %v5254 = vmul.f32 1.0, %v5253
      %v5255 = vrcp.pop %v5203
      %v5256 = vmul.f32 1.0, %v5255
      %v5257 = vrcp.pop %v5204
      %v5258 = vmul.f32 1.0, %v5257
      %v5259 = vrcp.pop %v5205
      %v5260 = vmul.f32 1.0, %v5259
      %v5261 = vrcp.pop %v5206
      %v5262 = vmul.f32 1.0, %v5261
      %v5263 = vrcp.pop %v5207
      %v5264 = vmul.f32 1.0, %v5263
      %v5265 = vrcp.pop %v5208
      %v5266 = vmul.f32 1.0, %v5265
      %v5267 = vrcp.pop %v5209
      %v5268 = vmul.f32 1.0, %v5267
      %v5269 = vrcp.pop %v5210
      %v5270 = vmul.f32 1.0, %v5269
      %v5271 = vrcp.pop %v5211
      %v5272 = vmul.f32 1.0, %v5271
      %v5273 = vrcp.pop %v5212
      %v5274 = vmul.f32 1.0, %v5273
      %v5275 = vrcp.pop %v5213
      %v5276 = vmul.f32 1.0, %v5275
      %v5277 = vrcp.pop %v5214
      %v5278 = vmul.f32 1.0, %v5277
      %v5279 = vsel %vm5054, %v5055, %v5216
      %v5280 = vsel %vm5054, %v5056, %v5218
      %v5281 = vsel %vm5054, %v5057, %v5220
      %v5282 = vsel %vm5054, %v5058, %v5222
      %v5283 = vsel %vm5054, %v5059, %v5224
      %v5284 = vsel %vm5054, %v5060, %v5226
      %v5285 = vsel %vm5054, %v5061, %v5228
      %v5286 = vsel %vm5054, %v5062, %v5230
      %v5287 = vsel %vm5054, %v5063, %v5232
      %v5288 = vsel %vm5054, %v5064, %v5234
      %v5289 = vsel %vm5054, %v5065, %v5236
      %v5290 = vsel %vm5054, %v5066, %v5238
      %v5291 = vsel %vm5054, %v5067, %v5240
      %v5292 = vsel %vm5054, %v5068, %v5242
      %v5293 = vsel %vm5054, %v5069, %v5244
      %v5294 = vsel %vm5054, %v5070, %v5246
      %v5295 = vsel %vm5054, %v5071, %v5248
      %v5296 = vsel %vm5054, %v5072, %v5250
      %v5297 = vsel %vm5054, %v5073, %v5252
      %v5298 = vsel %vm5054, %v5074, %v5254
      %v5299 = vsel %vm5054, %v5075, %v5256
      %v5300 = vsel %vm5054, %v5076, %v5258
      %v5301 = vsel %vm5054, %v5077, %v5260
      %v5302 = vsel %vm5054, %v5078, %v5262
      %v5303 = vsel %vm5054, %v5079, %v5264
      %v5304 = vsel %vm5054, %v5080, %v5266
      %v5305 = vsel %vm5054, %v5081, %v5268
      %v5306 = vsel %vm5054, %v5082, %v5270
      %v5307 = vsel %vm5054, %v5083, %v5272
      %v5308 = vsel %vm5054, %v5084, %v5274
      %v5309 = vsel %vm5054, %v5085, %v5276
      %v5310 = vsel %vm5054, %v5086, %v5278
      %vm5311 = vcmask 130048
      %5312 = vst.msk [vmem:[%s845] sm:$0xff] %vm5311, %v5279
      %5313 = vst.msk [vmem:[%s845 + $0x8] sm:$0xff] %vm5311, %v5280
      %5314 = vst.msk [vmem:[%s845 + $0x10] sm:$0xff] %vm5311, %v5281
      %5315 = vst.msk [vmem:[%s845 + $0x18] sm:$0xff] %vm5311, %v5282
      %5316 = vst.msk [vmem:[%s845 + $0x20] sm:$0xff] %vm5311, %v5283
      %5317 = vst.msk [vmem:[%s845 + $0x28] sm:$0xff] %vm5311, %v5284
      %5318 = vst.msk [vmem:[%s845 + $0x30] sm:$0xff] %vm5311, %v5285
      %5319 = vst.msk [vmem:[%s845 + $0x38] sm:$0xff] %vm5311, %v5286
      %5320 = vst.msk [vmem:[%s845 + $0x40] sm:$0xff] %vm5311, %v5287
      %5321 = vst.msk [vmem:[%s845 + $0x48] sm:$0xff] %vm5311, %v5288
      %5322 = vst.msk [vmem:[%s845 + $0x50] sm:$0xff] %vm5311, %v5289
      %5323 = vst.msk [vmem:[%s845 + $0x58] sm:$0xff] %vm5311, %v5290
      %5324 = vst.msk [vmem:[%s845 + $0x60] sm:$0xff] %vm5311, %v5291
      %5325 = vst.msk [vmem:[%s845 + $0x68] sm:$0xff] %vm5311, %v5292
      %5326 = vst.msk [vmem:[%s845 + $0x70] sm:$0xff] %vm5311, %v5293
      %5327 = vst.msk [vmem:[%s845 + $0x78] sm:$0xff] %vm5311, %v5294
      %5328 = vst.msk [vmem:[%s845 + $0x80] sm:$0xff] %vm5311, %v5295
      %5329 = vst.msk [vmem:[%s845 + $0x88] sm:$0xff] %vm5311, %v5296
      %5330 = vst.msk [vmem:[%s845 + $0x90] sm:$0xff] %vm5311, %v5297
      %5331 = vst.msk [vmem:[%s845 + $0x98] sm:$0xff] %vm5311, %v5298
      %5332 = vst.msk [vmem:[%s845 + $0xa0] sm:$0xff] %vm5311, %v5299
      %5333 = vst.msk [vmem:[%s845 + $0xa8] sm:$0xff] %vm5311, %v5300
      %5334 = vst.msk [vmem:[%s845 + $0xb0] sm:$0xff] %vm5311, %v5301
      %5335 = vst.msk [vmem:[%s845 + $0xb8] sm:$0xff] %vm5311, %v5302
      %5336 = vst.msk [vmem:[%s845 + $0xc0] sm:$0xff] %vm5311, %v5303
      %5337 = vst.msk [vmem:[%s845 + $0xc8] sm:$0xff] %vm5311, %v5304
      %5338 = vst.msk [vmem:[%s845 + $0xd0] sm:$0xff] %vm5311, %v5305
      %5339 = vst.msk [vmem:[%s845 + $0xd8] sm:$0xff] %vm5311, %v5306
      %5340 = vst.msk [vmem:[%s845 + $0xe0] sm:$0xff] %vm5311, %v5307
      %5341 = vst.msk [vmem:[%s845 + $0xe8] sm:$0xff] %vm5311, %v5308
      %5342 = vst.msk [vmem:[%s845 + $0xf0] sm:$0xff] %vm5311, %v5309
      %5343 = vst.msk [vmem:[%s845 + $0xf8] sm:$0xff] %vm5311, %v5310
      %s5344 = smul.u32 32, %s38
      %p5345 = scmp.lt.s32.totalorder %s5344, 255
      %s5346 = scalar_select %p5345, %s5344, 255
      %s5347 = smul.addr %s5346, 8
      %s5348 = scalar_lea.vmem %s27, %s5347
      // Predicated region
      $region129: #{tpu_custom_call.1} parent=127 // pred_check
        %p5349 = pneg %p633
      $region130: #{tpu_custom_call.1} parent=127 // pred_check_branch
        %5351 = sbr.rel (%p5349) target = $region132
      $region131: #{tpu_custom_call.1} parent=127 // pred_region
        %s5352 = smul.u32 32, %s38
      $region132: #{tpu_custom_call.1} parent=127 // pred_fallthru
        _
    $region128: #{tpu_custom_call.1} parent=5 // pred_fallthru
      _
    %p5353 = scmp.le.s32.totalorder 2, %s33
    // Predicated region
    $region133: #{tpu_custom_call.1} parent=5 // pred_check
      %p5354 = pneg %p5353
    $region134: #{tpu_custom_call.1} parent=5 // pred_check_branch
      %5356 = sbr.rel (%p5354) target = $region136
    $region135: #{tpu_custom_call.1} parent=5 // pred_region
      %s5357 = ssub.s32 %s33, 2
      // Predicated region
      $region137: #{tpu_custom_call.1} parent=135 // pred_check
        %p5358 = pneg %p639
      $region138: #{tpu_custom_call.1} parent=135 // pred_check_branch
        %5360 = sbr.rel (%p5358) target = $region140
      $region139: #{tpu_custom_call.1} parent=135 // pred_region
        %s5361 = smul.u32 32, %s39
        %p5362 = scmp.lt.s32.totalorder %s5361, 255
        %s5363 = scalar_select %p5362, %s5361, 255
        %s5364 = smul.addr %s5363, 8
        %s5365 = scalar_lea.vmem %s27, %s5364
      $region140: #{tpu_custom_call.1} parent=135 // pred_fallthru
        _
    $region136: #{tpu_custom_call.1} parent=5 // pred_fallthru
      _
  $region6: #{tpu_custom_call.1} parent=0 // loop_footer
    %s37 = sadd.s32 1, %s33
  $region7: #{tpu_custom_call.1} parent=0 // loop_footer_branch
    %32 = sbr.rel target = $region3
  $region8: #{tpu_custom_call.1} parent=0 // loop_exit
    _

</llo_original>
